<compile_context>
chip_gen: v5e
topology: v5e:2x2
jax: 0.10.0
libtpu: 0.0.40
codegen_flags: <defaults>
</compile_context>

<pallas_src>
import jax
import jax.numpy as jnp
from jax import lax
from jax.experimental import pallas as pl
from jax.experimental.pallas import tpu as pltpu

# ---- model dims (small, consistent with the module's forward) ----
B = 2            # batch
P = 20           # word-piece sequence length
W = 8            # word sequence length (pieces2word.size(1))
H = 32           # bert hidden_size
FF = 128         # synthetic BERT FFN dim
LSTM_HID = 32    # config.lstm_hid_size
HH = LSTM_HID // 2          # 16
GW = 8 * HH                 # 128 gate lanes: [i_f i_b | f_f f_b | o_f o_b | g_f g_b]
NUM_LABELS = 9   # config.num_labels
LP = 128         # lane-padded label dim used inside the kernel
VOCAB = 30
NEG = -1e9


# ---------------------------------------------------------------------------
# Single fused kernel: BERT layer -> word pool -> BiLSTM -> classifier -> CRF
# ---------------------------------------------------------------------------
def fused_forward_kernel(tmax_ref, x_ref, amask_ref, p2w_ref, lmask_ref, cmask_ref,
                         onehot_ref, wqkv_ref, wo_ref, w1_ref, w2_ref,
                         wih_ref, whh_ref, bl_ref, wcls_ref, bcls_ref,
                         exptr_ref, start_ref, end_ref,
                         logits_ref, loss_ref, wrep_scr, lstm_scr):
    f32 = jnp.float32
    bf16 = jnp.bfloat16
    Bn, Pn, Hn = x_ref.shape
    Tn = lmask_ref.shape[0]
    Hh = HH
    Lp = exptr_ref.shape[0]

    # ---- 1. synthetic BERT encoder layer, batched over B*P rows --------------------
    x3 = x_ref[...]                                   # (B,P,H)
    x2 = x3.reshape(Bn * Pn, Hn)                      # (B*P,H)
    qkv = jnp.dot(x2.astype(bf16), wqkv_ref[...], preferred_element_type=f32)  # (B*P,3H)
    q = qkv[:, 0:Hn].reshape(Bn, Pn, Hn)
    k = qkv[:, Hn:2 * Hn].reshape(Bn, Pn, Hn)
    v = qkv[:, 2 * Hn:3 * Hn].reshape(Bn, Pn, Hn)
    scale = 1.0 / float(Hn) ** 0.5
    bias = ((1.0 - amask_ref[...]) * NEG)[:, None, :]                # (B,1,P) key mask
    s = jnp.einsum('bqd,bkd->bqk', q.astype(bf16), k.astype(bf16),
                   preferred_element_type=f32) * scale + bias        # (B,P,P)
    m = jnp.max(s, axis=-1, keepdims=True)
    e = jnp.exp(s - m)
    attn = e * pl.reciprocal(jnp.sum(e, axis=-1, keepdims=True), approx=True)
    ctx = jnp.einsum('bqk,bkd->bqd', attn.astype(bf16), v.astype(bf16),
                     preferred_element_type=f32)                     # (B,P,H)
    x1 = x2 + jnp.dot(ctx.reshape(Bn * Pn, Hn).astype(bf16), wo_ref[...],
                      preferred_element_type=f32)                    # (B*P,H)
    hff = jax.nn.gelu(jnp.dot(x1.astype(bf16), w1_ref[...],
                              preferred_element_type=f32), approximate=True)
    bert2 = x1 + jnp.dot(hff.astype(bf16), w2_ref[...],
                         preferred_element_type=f32)                 # (B*P,H)
    minv = jnp.min(bert2)                 # == torch.min(bert_embs), batch-global
    bert3 = bert2.reshape(Bn, Pn, Hn)

    # ---- 2. pieces -> words masked max pooling (per word, batched over B) ----------
    # masked_fill(min) + max over pieces; (B,W,P,H) is never materialized.
    for w in range(Tn):
        m_w = p2w_ref[w]                                             # (B,P)
        masked = jnp.where(m_w[:, :, None] > 0.5, bert3, minv)       # (B,P,H)
        wrep_scr[w * Bn:(w + 1) * Bn, :] = jnp.max(masked, axis=1)   # time-major rows

    # ---- 3. BiLSTM, batched over B, fully unrolled over T (pack/pad via masks) -----
    gx = jnp.dot(wrep_scr[...].astype(bf16), wih_ref[...],
                 preferred_element_type=f32)                         # (T*B, 128)
    whh = whh_ref[...]                                               # (2*Hh, 128) f32
    bl = bl_ref[...]                                                 # (1, 128)
    lane128 = lax.broadcasted_iota(jnp.int32, (1, GW), 1)
    fwd_sel = (lane128 & (2 * Hh - 1)) < Hh     # fwd 16-lane chunk of each gate block
    g_sel = lane128 >= 3 * 2 * Hh               # g-gate block -> tanh, rest sigmoid
    lane32 = lax.broadcasted_iota(jnp.int32, (1, 2 * Hh), 1)
    dirf_sel = lane32 < Hh                      # fwd half of h/c lanes

    h = jnp.zeros((Bn, 2 * Hh), f32)            # [h_f | h_b]
    c = jnp.zeros((Bn, 2 * Hh), f32)
    for t in range(Tn):
        rt = Tn - 1 - t
        rec = jnp.dot(h, whh, preferred_element_type=f32)            # (B,128) block-diag
        pre = jnp.where(fwd_sel, gx[t * Bn:(t + 1) * Bn, :],
                        gx[rt * Bn:(rt + 1) * Bn, :]) + rec + bl     # (B,128)
        sg = jax.nn.sigmoid(pre)                                     # 1 full-lane sigmoid
        th = jnp.tanh(pre)                                           # 1 full-lane tanh
        gates = jnp.where(g_sel, th, sg)
        gi = gates[:, 0 * 2 * Hh:1 * 2 * Hh]
        gf = gates[:, 1 * 2 * Hh:2 * 2 * Hh]
        go = gates[:, 2 * 2 * Hh:3 * 2 * Hh]
        gg = gates[:, 3 * 2 * Hh:4 * 2 * Hh]
        c_new = gf * c + gi * gg                                     # (B,32)
        h_new = go * jnp.tanh(c_new)                                 # (B,32)
        vt = lmask_ref[t]                                            # (B,1) valid at t
        vrt = lmask_ref[rt]                                          # (B,1) valid at rt
        vsel = jnp.where(dirf_sel, vt, vrt)                          # (B,32)
        h = jnp.where(vsel > 0.5, h_new, h)
        c = jnp.where(vsel > 0.5, c_new, c)
        lstm_scr[t * Bn:(t + 1) * Bn, 0:Hh] = vt * h_new[:, 0:Hh]        # fwd out @ t
        lstm_scr[rt * Bn:(rt + 1) * Bn, Hh:2 * Hh] = vrt * h_new[:, Hh:2 * Hh]  # bwd @ rt

    # ---- 4. classifier, lane-padded label dim (Lp=128), lane-dense store -----------
    em = jnp.dot(lstm_scr[...].astype(bf16), wcls_ref[...],
                 preferred_element_type=f32) + bcls_ref[...]         # (T*B, Lp)
    logits_ref[...] = em

    # ---- 5. CRF negative log-likelihood, batched forward recursion -----------------
    gold_em = jnp.sum(em * onehot_ref[...])     # emission part of the gold path score
    tmax = tmax_ref[0, 0]
    exp_tr = exptr_ref[...]                     # exp(trans - tmax), padded rows/cols = 0
    lane = lax.broadcasted_iota(jnp.int32, (1, Lp), 1)
    lab_sel = lane < NUM_LABELS

    alpha = start_ref[...] + em[0:Bn, :]                              # (B, Lp)
    for t in range(1, Tn):
        em_t = em[t * Bn:(t + 1) * Bn, :]                             # (B, Lp)
        amax = jnp.max(alpha, axis=-1, keepdims=True)                 # (B, 1)
        scores = jnp.dot(jnp.exp(alpha - amax), exp_tr,
                         preferred_element_type=f32)                  # (B, Lp)
        nxt = amax + tmax + jnp.log(scores + 1e-30) + em_t
        nxt = jnp.where(lab_sel, nxt, NEG)                            # keep pads dead
        mt = cmask_ref[t]                                             # (B, 1)
        alpha = jnp.where(mt > 0.5, nxt, alpha)
    alpha_fin = alpha + end_ref[...]
    amax_f = jnp.max(alpha_fin, axis=-1, keepdims=True)
    z = amax_f + jnp.log(jnp.sum(jnp.exp(alpha_fin - amax_f),
                                 axis=-1, keepdims=True))             # (B, 1)
    loss_ref[...] = jnp.sum(z, axis=0, keepdims=True) - gold_em


# ---------------------------------------------------------------------------
# Wrapper: fused weight layouts + gold-path (label-only) CRF score + pallas_call
# ---------------------------------------------------------------------------
def _prep_weights(params):
    f32 = jnp.float32
    bf16 = jnp.bfloat16

    def gate(wd, g):               # gate g of source order [i, f, g, o]
        return wd[..., g * HH:(g + 1) * HH]

    def reorder(wf, wb):           # -> lanes [i_f i_b | f_f f_b | o_f o_b | g_f g_b]
        return jnp.concatenate([gate(wf, 0), gate(wb, 0), gate(wf, 1), gate(wb, 1),
                                gate(wf, 3), gate(wb, 3), gate(wf, 2), gate(wb, 2)],
                               axis=-1)

    wqkv = jnp.concatenate([params["wq"], params["wk"], params["wv"]], axis=1).astype(bf16)
    wih = reorder(params["wih_f"], params["wih_b"]).astype(bf16)                 # (H,128)
    zf = jnp.zeros_like(params["whh_f"]); zb = jnp.zeros_like(params["whh_b"])
    whh = jnp.concatenate([reorder(params["whh_f"], zb),
                           reorder(zf, params["whh_b"])], axis=0).astype(f32)    # (32,128)
    bl = reorder(params["b_f"], params["b_b"]).astype(f32)                       # (1,128)

    wcls = jnp.zeros((LSTM_HID, LP), f32).at[:, :NUM_LABELS].set(params["w_cls"]).astype(bf16)
    bcls = jnp.zeros((1, LP), f32).at[:, :NUM_LABELS].set(params["b_cls"])

    trans_pad = jnp.full((LP, LP), NEG, f32).at[:NUM_LABELS, :NUM_LABELS].set(params["crf_trans"])
    tmax = jnp.max(params["crf_trans"]).reshape(1, 1).astype(f32)
    exp_trans = jnp.exp(trans_pad - tmax)                 # padded rows/cols -> exactly 0
    start = jnp.full((1, LP), NEG, f32).at[:, :NUM_LABELS].set(params["crf_start"])
    end = jnp.full((1, LP), NEG, f32).at[:, :NUM_LABELS].set(params["crf_end"])
    return wqkv, wih, whh, bl, wcls, bcls, exp_trans, tmax, start, end


def forward(params, bert_inputs, masks, pieces2word, labels, sent_length):
    f32 = jnp.float32
    bf16 = jnp.bfloat16
    Bn, Pn = bert_inputs.shape
    Tn = labels.shape[1]

    # glue: synthetic BERT embedding lookup + time-major mask/label layouts
    x_emb = (params["tok_emb"][bert_inputs]
             + params["pos_emb"][None, :Pn, :]).astype(f32)                      # (B,P,H)
    amask = (bert_inputs != 0).astype(f32)                                       # (B,P)
    p2w_wm = jnp.transpose(pieces2word.astype(f32), (1, 0, 2))                   # (W,B,P)
    lmask_tm = (jnp.arange(Tn)[:, None] < sent_length[None, :]).astype(f32)[:, :, None]
    cmask_f = masks.astype(f32)
    cmask_tm = jnp.transpose(cmask_f, (1, 0))[:, :, None]                        # (T,B,1)

    labels_i = labels.astype(jnp.int32)
    mprime = cmask_f.at[:, 0].set(1.0)             # torchcrf assumes mask[:,0] == 1
    oh = jax.nn.one_hot(labels_i, LP, dtype=f32) * mprime[:, :, None]            # (B,T,LP)
    onehot_tm = jnp.transpose(oh, (1, 0, 2)).reshape(Tn * Bn, LP)

    # label-only part of the CRF gold path score (start + transitions + end)
    start_g = params["crf_start"][0, labels_i[:, 0]]                             # (B,)
    trans_g = jnp.sum(params["crf_trans"][labels_i[:, :-1], labels_i[:, 1:]]
                      * cmask_f[:, 1:], axis=1)                                  # (B,)
    last_idx = jnp.sum(masks.astype(jnp.int32), axis=1) - 1
    last_tag = jnp.take_along_axis(labels_i, last_idx[:, None], axis=1)[:, 0]
    end_g = params["crf_end"][0, last_tag]
    gold_path = jnp.sum(start_g + trans_g + end_g)

    (wqkv, wih, whh, bl, wcls, bcls, exp_trans, tmax, start, end) = _prep_weights(params)
    wo = params["wo"].astype(bf16)
    w1 = params["w1"].astype(bf16)
    w2 = params["w2"].astype(bf16)

    vmem = pl.BlockSpec(memory_space=pltpu.MemorySpace.VMEM)
    smem = pl.BlockSpec(memory_space=pltpu.MemorySpace.SMEM)

    logits_tm, part = pl.pallas_call(
        fused_forward_kernel,
        out_shape=(jax.ShapeDtypeStruct((Tn * Bn, LP), f32),
                   jax.ShapeDtypeStruct((1, 1), f32)),
        in_specs=[smem] + [vmem] * 18,
        out_specs=(vmem, vmem),
        scratch_shapes=[pltpu.VMEM((Tn * Bn, H), f32),          # pooled word reps (time-major)
                        pltpu.VMEM((Tn * Bn, LSTM_HID), f32)],  # BiLSTM outputs (time-major)
    )(tmax, x_emb, amask, p2w_wm, lmask_tm, cmask_tm, onehot_tm,
      wqkv, wo, w1, w2, wih, whh, bl, wcls, bcls, exp_trans, start, end)

    loss = part[0, 0] - gold_path                        # == -crf(logits, labels, masks)
    logits = logits_tm.reshape(Tn, Bn, LP).transpose(1, 0, 2)[:, :, :NUM_LABELS]
    return loss, logits


def init_params(key):
    ks = jax.random.split(key, 19)
    n = lambda i, shape, s=0.1: jax.random.normal(ks[i], shape, jnp.float32) * s
    return {
        "tok_emb": n(0, (VOCAB, H), 0.5),
        "pos_emb": n(1, (P, H), 0.1),
        "wq": n(2, (H, H)), "wk": n(3, (H, H)), "wv": n(4, (H, H)), "wo": n(5, (H, H)),
        "w1": n(6, (H, FF)), "w2": n(7, (FF, H)),
        "wih_f": n(8, (H, 4 * HH)), "whh_f": n(9, (HH, 4 * HH)), "b_f": n(10, (1, 4 * HH)),
        "wih_b": n(11, (H, 4 * HH)), "whh_b": n(12, (HH, 4 * HH)), "b_b": n(13, (1, 4 * HH)),
        "w_cls": n(14, (LSTM_HID, NUM_LABELS)), "b_cls": n(15, (1, NUM_LABELS)),
        "crf_start": n(16, (1, NUM_LABELS)), "crf_end": n(17, (1, NUM_LABELS)),
        "crf_trans": n(18, (NUM_LABELS, NUM_LABELS)),
    }


if __name__ == "__main__":
    key = jax.random.PRNGKey(0)
    params = init_params(key)
    dk = jax.random.split(jax.random.PRNGKey(0), 4)

    sent_py = [8, 6]
    T = max(sent_py)
    sent_length = jnp.array(sent_py, jnp.int32)

    # bert_inputs: [CLS]=2 at pos 0, 2 word pieces per word, 0 padding
    pos = jnp.arange(P)[None, :]
    valid_piece = (pos >= 1) & (pos <= 2 * sent_length[:, None])
    rand_ids = jax.random.randint(dk[0], (B, P), 3, VOCAB)
    bert_inputs = jnp.where(pos == 0, 2,
                            jnp.where(valid_piece, rand_ids, 0)).astype(jnp.int32)

    # pieces2word: word w -> pieces {1+2w, 2+2w} for w < sent_length[b]
    w_idx = jnp.arange(W)[None, :, None]
    p_idx = jnp.arange(P)[None, None, :]
    lens3 = sent_length[:, None, None]
    pieces2word = ((w_idx < lens3)
                   & ((p_idx == 1 + 2 * w_idx) | (p_idx == 2 + 2 * w_idx))).astype(jnp.int32)

    labels = jax.random.randint(dk[1], (B, T), 0, NUM_LABELS).astype(jnp.int32)
    masks = (jnp.arange(T)[None, :] < sent_length[:, None]).astype(jnp.int32)

    fwd = jax.jit(forward)
    loss, logits = fwd(params, bert_inputs, masks, pieces2word, labels, sent_length)
    loss, logits = jax.block_until_ready((loss, logits))

    assert logits.shape == (B, T, NUM_LABELS)
    assert bool(jnp.isfinite(loss))
    print("KERNEL_OK")
</pallas_src>

<mosaic_0001>
module attributes {stable_mosaic.version = 11 : i64} {
  func.func @fused_forward_kernel(%arg0: memref<1x1xf32, #tpu.memory_space<smem>>, %arg1: memref<2x20x32xf32, #tpu.memory_space<vmem>>, %arg2: memref<2x20xf32, #tpu.memory_space<vmem>>, %arg3: memref<8x2x20xf32, #tpu.memory_space<vmem>>, %arg4: memref<8x2x1xf32, #tpu.memory_space<vmem>>, %arg5: memref<8x2x1xf32, #tpu.memory_space<vmem>>, %arg6: memref<16x128xf32, #tpu.memory_space<vmem>>, %arg7: memref<32x96xbf16, #tpu.memory_space<vmem>>, %arg8: memref<32x32xbf16, #tpu.memory_space<vmem>>, %arg9: memref<32x128xbf16, #tpu.memory_space<vmem>>, %arg10: memref<128x32xbf16, #tpu.memory_space<vmem>>, %arg11: memref<32x128xbf16, #tpu.memory_space<vmem>>, %arg12: memref<32x128xf32, #tpu.memory_space<vmem>>, %arg13: memref<1x128xf32, #tpu.memory_space<vmem>>, %arg14: memref<32x128xbf16, #tpu.memory_space<vmem>>, %arg15: memref<1x128xf32, #tpu.memory_space<vmem>>, %arg16: memref<128x128xf32, #tpu.memory_space<vmem>>, %arg17: memref<1x128xf32, #tpu.memory_space<vmem>>, %arg18: memref<1x128xf32, #tpu.memory_space<vmem>>, %arg19: memref<16x128xf32, #tpu.memory_space<vmem>>, %arg20: memref<1x1xf32, #tpu.memory_space<vmem>>, %arg21: memref<16x32xf32, #tpu.memory_space<vmem>>, %arg22: memref<16x32xf32, #tpu.memory_space<vmem>>) attributes {dimension_semantics = [], scalar_prefetch = 0 : i64, scratch_operands = 2 : i64, tpu.core_type = #tpu.core_type<tc>} {
    %c0 = arith.constant 0 : index
    %c0_0 = arith.constant 0 : index
    %c0_1 = arith.constant 0 : index
    %0 = vector.load %arg1[%c0, %c0_0, %c0_1] : memref<2x20x32xf32, #tpu.memory_space<vmem>>, vector<2x20x32xf32>
    %1 = vector.shape_cast %0 : vector<2x20x32xf32> to vector<40x32xf32>
    %2 = arith.truncf %1 : vector<40x32xf32> to vector<40x32xbf16>
    %c0_2 = arith.constant 0 : index
    %c0_3 = arith.constant 0 : index
    %3 = vector.load %arg7[%c0_2, %c0_3] : memref<32x96xbf16, #tpu.memory_space<vmem>>, vector<32x96xbf16>
    %cst = arith.constant dense<0.000000e+00> : vector<40x96xf32>
    %4 = tpu.matmul %2, %3, %cst {dimension_numbers = #tpu.dot_dimension_numbers<[1], [0], [0], [1], [0, 0, 1, 1], [], []>} : vector<40x32xbf16>, vector<32x96xbf16>, vector<40x96xf32> -> vector<40x96xf32>
    %5 = vector.extract_strided_slice %4 {offsets = [0, 0], sizes = [40, 32], strides = [1, 1]} : vector<40x96xf32> to vector<40x32xf32>
    %6 = vector.shape_cast %5 : vector<40x32xf32> to vector<2x20x32xf32>
    %7 = vector.extract_strided_slice %4 {offsets = [0, 32], sizes = [40, 32], strides = [1, 1]} : vector<40x96xf32> to vector<40x32xf32>
    %8 = vector.shape_cast %7 : vector<40x32xf32> to vector<2x20x32xf32>
    %9 = vector.extract_strided_slice %4 {offsets = [0, 64], sizes = [40, 32], strides = [1, 1]} : vector<40x96xf32> to vector<40x32xf32>
    %10 = vector.shape_cast %9 : vector<40x32xf32> to vector<2x20x32xf32>
    %c0_4 = arith.constant 0 : index
    %c0_5 = arith.constant 0 : index
    %11 = vector.load %arg2[%c0_4, %c0_5] : memref<2x20xf32, #tpu.memory_space<vmem>>, vector<2x20xf32>
    %cst_6 = arith.constant 1.000000e+00 : f32
    %12 = vector.broadcast %cst_6 : f32 to vector<2x20xf32>
    %13 = arith.subf %12, %11 : vector<2x20xf32>
    %cst_7 = arith.constant -1.000000e+09 : f32
    %14 = vector.broadcast %cst_7 : f32 to vector<2x20xf32>
    %15 = arith.mulf %13, %14 : vector<2x20xf32>
    %16 = vector.shape_cast %15 : vector<2x20xf32> to vector<2x1x20xf32>
    %17 = arith.truncf %6 : vector<2x20x32xf32> to vector<2x20x32xbf16>
    %18 = arith.truncf %8 : vector<2x20x32xf32> to vector<2x20x32xbf16>
    "tpu.trace_start"() <{level = 10 : i32, message = "bqd,bkd->bqk"}> : () -> ()
    %cst_8 = arith.constant dense<0.000000e+00> : vector<2x20x20xf32>
    %19 = tpu.matmul %17, %18, %cst_8 {dimension_numbers = #tpu.dot_dimension_numbers<[2], [2], [1], [1], [0, 0, 0, 1, 1, 1], [0], [0]>} : vector<2x20x32xbf16>, vector<2x20x32xbf16>, vector<2x20x20xf32> -> vector<2x20x20xf32>
    "tpu.trace_stop"() : () -> ()
    %cst_9 = arith.constant 0.176776692 : f32
    %20 = vector.broadcast %cst_9 : f32 to vector<2x20x20xf32>
    %21 = arith.mulf %19, %20 : vector<2x20x20xf32>
    %22 = vector.broadcast %16 : vector<2x1x20xf32> to vector<2x20x20xf32>
    %23 = arith.addf %21, %22 : vector<2x20x20xf32>
    %cst_10 = arith.constant dense<0xFF800000> : vector<2x20xf32>
    %24 = vector.multi_reduction <maximumf>, %23, %cst_10 [2] : vector<2x20x20xf32> to vector<2x20xf32>
    %25 = vector.shape_cast %24 : vector<2x20xf32> to vector<2x20x1xf32>
    %26 = vector.broadcast %25 : vector<2x20x1xf32> to vector<2x20x20xf32>
    %27 = arith.subf %23, %26 : vector<2x20x20xf32>
    %28 = math.exp %27 : vector<2x20x20xf32>
    %cst_11 = arith.constant dense<0.000000e+00> : vector<2x20xf32>
    %29 = vector.multi_reduction <add>, %28, %cst_11 [2] : vector<2x20x20xf32> to vector<2x20xf32>
    %30 = vector.shape_cast %29 : vector<2x20xf32> to vector<2x20x1xf32>
    %31 = tpu.reciprocal %30 {approx = true} : vector<2x20x1xf32> -> vector<2x20x1xf32>
    %32 = vector.broadcast %31 : vector<2x20x1xf32> to vector<2x20x20xf32>
    %33 = arith.mulf %28, %32 : vector<2x20x20xf32>
    %34 = arith.truncf %33 : vector<2x20x20xf32> to vector<2x20x20xbf16>
    %35 = arith.truncf %10 : vector<2x20x32xf32> to vector<2x20x32xbf16>
    "tpu.trace_start"() <{level = 10 : i32, message = "bqk,bkd->bqd"}> : () -> ()
    %cst_12 = arith.constant dense<0.000000e+00> : vector<2x20x32xf32>
    %36 = tpu.matmul %34, %35, %cst_12 {dimension_numbers = #tpu.dot_dimension_numbers<[2], [1], [1], [2], [0, 0, 0, 1, 1, 2], [0], [0]>} : vector<2x20x20xbf16>, vector<2x20x32xbf16>, vector<2x20x32xf32> -> vector<2x20x32xf32>
    "tpu.trace_stop"() : () -> ()
    %37 = vector.shape_cast %36 : vector<2x20x32xf32> to vector<40x32xf32>
    %38 = arith.truncf %37 : vector<40x32xf32> to vector<40x32xbf16>
    %c0_13 = arith.constant 0 : index
    %c0_14 = arith.constant 0 : index
    %39 = vector.load %arg8[%c0_13, %c0_14] : memref<32x32xbf16, #tpu.memory_space<vmem>>, vector<32x32xbf16>
    %cst_15 = arith.constant dense<0.000000e+00> : vector<40x32xf32>
    %40 = tpu.matmul %38, %39, %cst_15 {dimension_numbers = #tpu.dot_dimension_numbers<[1], [0], [0], [1], [0, 0, 1, 1], [], []>} : vector<40x32xbf16>, vector<32x32xbf16>, vector<40x32xf32> -> vector<40x32xf32>
    %41 = arith.addf %1, %40 : vector<40x32xf32>
    %42 = arith.truncf %41 : vector<40x32xf32> to vector<40x32xbf16>
    %c0_16 = arith.constant 0 : index
    %c0_17 = arith.constant 0 : index
    %43 = vector.load %arg9[%c0_16, %c0_17] : memref<32x128xbf16, #tpu.memory_space<vmem>>, vector<32x128xbf16>
    %cst_18 = arith.constant dense<0.000000e+00> : vector<40x128xf32>
    %44 = tpu.matmul %42, %43, %cst_18 {dimension_numbers = #tpu.dot_dimension_numbers<[1], [0], [0], [1], [0, 0, 1, 1], [], []>} : vector<40x32xbf16>, vector<32x128xbf16>, vector<40x128xf32> -> vector<40x128xf32>
    %45 = arith.mulf %44, %44 : vector<40x128xf32>
    %46 = arith.mulf %44, %45 : vector<40x128xf32>
    %cst_19 = arith.constant 4.471500e-02 : f32
    %47 = vector.broadcast %cst_19 : f32 to vector<40x128xf32>
    %48 = arith.mulf %47, %46 : vector<40x128xf32>
    %49 = arith.addf %44, %48 : vector<40x128xf32>
    %cst_20 = arith.constant 0.797884583 : f32
    %50 = vector.broadcast %cst_20 : f32 to vector<40x128xf32>
    %51 = arith.mulf %50, %49 : vector<40x128xf32>
    %52 = math.tanh %51 : vector<40x128xf32>
    %cst_21 = arith.constant 1.000000e+00 : f32
    %53 = vector.broadcast %cst_21 : f32 to vector<40x128xf32>
    %54 = arith.addf %53, %52 : vector<40x128xf32>
    %cst_22 = arith.constant 5.000000e-01 : f32
    %55 = vector.broadcast %cst_22 : f32 to vector<40x128xf32>
    %56 = arith.mulf %55, %54 : vector<40x128xf32>
    %57 = arith.mulf %44, %56 : vector<40x128xf32>
    %58 = arith.truncf %57 : vector<40x128xf32> to vector<40x128xbf16>
    %c0_23 = arith.constant 0 : index
    %c0_24 = arith.constant 0 : index
    %59 = vector.load %arg10[%c0_23, %c0_24] : memref<128x32xbf16, #tpu.memory_space<vmem>>, vector<128x32xbf16>
    %cst_25 = arith.constant dense<0.000000e+00> : vector<40x32xf32>
    %60 = tpu.matmul %58, %59, %cst_25 {dimension_numbers = #tpu.dot_dimension_numbers<[1], [0], [0], [1], [0, 0, 1, 1], [], []>} : vector<40x128xbf16>, vector<128x32xbf16>, vector<40x32xf32> -> vector<40x32xf32>
    %61 = arith.addf %41, %60 : vector<40x32xf32>
    %62 = vector.shape_cast %61 : vector<40x32xf32> to vector<1x40x32xf32>
    %cst_26 = arith.constant dense<0x7F800000> : vector<1xf32>
    %63 = vector.multi_reduction <minimumf>, %62, %cst_26 [1, 2] : vector<1x40x32xf32> to vector<1xf32>
    %64 = vector.shape_cast %63 : vector<1xf32> to vector<1x1x1xf32>
    %65 = vector.extract %64[0, 0, 0] : f32 from vector<1x1x1xf32>
    %66 = vector.shape_cast %61 : vector<40x32xf32> to vector<2x20x32xf32>
    %c0_27 = arith.constant 0 : index
    %c0_28 = arith.constant 0 : index
    %c0_29 = arith.constant 0 : index
    %67 = vector.load %arg3[%c0_27, %c0_28, %c0_29] : memref<8x2x20xf32, #tpu.memory_space<vmem>>, vector<1x2x20xf32>
    %68 = vector.shape_cast %67 : vector<1x2x20xf32> to vector<2x20xf32>
    %69 = vector.shape_cast %68 : vector<2x20xf32> to vector<2x20x1xf32>
    %cst_30 = arith.constant 5.000000e-01 : f32
    %70 = vector.broadcast %cst_30 : f32 to vector<2x20x1xf32>
    %71 = arith.cmpf ogt, %69, %70 : vector<2x20x1xf32>
    %72 = vector.shape_cast %71 : vector<2x20x1xi1> to vector<2x20x1xi1>
    %73 = vector.broadcast %72 : vector<2x20x1xi1> to vector<2x20x32xi1>
    %74 = vector.broadcast %65 : f32 to vector<2x20x32xf32>
    %75 = arith.select %73, %66, %74 : vector<2x20x32xi1>, vector<2x20x32xf32>
    %cst_31 = arith.constant dense<0xFF800000> : vector<2x32xf32>
    %76 = vector.multi_reduction <maximumf>, %75, %cst_31 [1] : vector<2x20x32xf32> to vector<2x32xf32>
    %c0_32 = arith.constant 0 : index
    %c0_33 = arith.constant 0 : index
    %77 = vector.load %arg21[%c0_32, %c0_33] : memref<16x32xf32, #tpu.memory_space<vmem>>, vector<2x32xf32>
    tpu.vector_store %arg21[%c0_32, %c0_33], %76 {strides = array<i32>} : memref<16x32xf32, #tpu.memory_space<vmem>>, vector<2x32xf32>,
    %c1 = arith.constant 1 : index
    %c0_34 = arith.constant 0 : index
    %c0_35 = arith.constant 0 : index
    %78 = vector.load %arg3[%c1, %c0_34, %c0_35] : memref<8x2x20xf32, #tpu.memory_space<vmem>>, vector<1x2x20xf32>
    %79 = vector.shape_cast %78 : vector<1x2x20xf32> to vector<2x20xf32>
    %80 = vector.shape_cast %79 : vector<2x20xf32> to vector<2x20x1xf32>
    %cst_36 = arith.constant 5.000000e-01 : f32
    %81 = vector.broadcast %cst_36 : f32 to vector<2x20x1xf32>
    %82 = arith.cmpf ogt, %80, %81 : vector<2x20x1xf32>
    %83 = vector.shape_cast %82 : vector<2x20x1xi1> to vector<2x20x1xi1>
    %84 = vector.broadcast %83 : vector<2x20x1xi1> to vector<2x20x32xi1>
    %85 = vector.broadcast %65 : f32 to vector<2x20x32xf32>
    %86 = arith.select %84, %66, %85 : vector<2x20x32xi1>, vector<2x20x32xf32>
    %cst_37 = arith.constant dense<0xFF800000> : vector<2x32xf32>
    %87 = vector.multi_reduction <maximumf>, %86, %cst_37 [1] : vector<2x20x32xf32> to vector<2x32xf32>
    %c2 = arith.constant 2 : index
    %c0_38 = arith.constant 0 : index
    %88 = vector.load %arg21[%c2, %c0_38] : memref<16x32xf32, #tpu.memory_space<vmem>>, vector<2x32xf32>
    tpu.vector_store %arg21[%c2, %c0_38], %87 {strides = array<i32>} : memref<16x32xf32, #tpu.memory_space<vmem>>, vector<2x32xf32>,
    %c2_39 = arith.constant 2 : index
    %c0_40 = arith.constant 0 : index
    %c0_41 = arith.constant 0 : index
    %89 = vector.load %arg3[%c2_39, %c0_40, %c0_41] : memref<8x2x20xf32, #tpu.memory_space<vmem>>, vector<1x2x20xf32>
    %90 = vector.shape_cast %89 : vector<1x2x20xf32> to vector<2x20xf32>
    %91 = vector.shape_cast %90 : vector<2x20xf32> to vector<2x20x1xf32>
    %cst_42 = arith.constant 5.000000e-01 : f32
    %92 = vector.broadcast %cst_42 : f32 to vector<2x20x1xf32>
    %93 = arith.cmpf ogt, %91, %92 : vector<2x20x1xf32>
    %94 = vector.shape_cast %93 : vector<2x20x1xi1> to vector<2x20x1xi1>
    %95 = vector.broadcast %94 : vector<2x20x1xi1> to vector<2x20x32xi1>
    %96 = vector.broadcast %65 : f32 to vector<2x20x32xf32>
    %97 = arith.select %95, %66, %96 : vector<2x20x32xi1>, vector<2x20x32xf32>
    %cst_43 = arith.constant dense<0xFF800000> : vector<2x32xf32>
    %98 = vector.multi_reduction <maximumf>, %97, %cst_43 [1] : vector<2x20x32xf32> to vector<2x32xf32>
    %c4 = arith.constant 4 : index
    %c0_44 = arith.constant 0 : index
    %99 = vector.load %arg21[%c4, %c0_44] : memref<16x32xf32, #tpu.memory_space<vmem>>, vector<2x32xf32>
    tpu.vector_store %arg21[%c4, %c0_44], %98 {strides = array<i32>} : memref<16x32xf32, #tpu.memory_space<vmem>>, vector<2x32xf32>,
    %c3 = arith.constant 3 : index
    %c0_45 = arith.constant 0 : index
    %c0_46 = arith.constant 0 : index
    %100 = vector.load %arg3[%c3, %c0_45, %c0_46] : memref<8x2x20xf32, #tpu.memory_space<vmem>>, vector<1x2x20xf32>
    %101 = vector.shape_cast %100 : vector<1x2x20xf32> to vector<2x20xf32>
    %102 = vector.shape_cast %101 : vector<2x20xf32> to vector<2x20x1xf32>
    %cst_47 = arith.constant 5.000000e-01 : f32
    %103 = vector.broadcast %cst_47 : f32 to vector<2x20x1xf32>
    %104 = arith.cmpf ogt, %102, %103 : vector<2x20x1xf32>
    %105 = vector.shape_cast %104 : vector<2x20x1xi1> to vector<2x20x1xi1>
    %106 = vector.broadcast %105 : vector<2x20x1xi1> to vector<2x20x32xi1>
    %107 = vector.broadcast %65 : f32 to vector<2x20x32xf32>
    %108 = arith.select %106, %66, %107 : vector<2x20x32xi1>, vector<2x20x32xf32>
    %cst_48 = arith.constant dense<0xFF800000> : vector<2x32xf32>
    %109 = vector.multi_reduction <maximumf>, %108, %cst_48 [1] : vector<2x20x32xf32> to vector<2x32xf32>
    %c6 = arith.constant 6 : index
    %c0_49 = arith.constant 0 : index
    %110 = vector.load %arg21[%c6, %c0_49] : memref<16x32xf32, #tpu.memory_space<vmem>>, vector<2x32xf32>
    tpu.vector_store %arg21[%c6, %c0_49], %109 {strides = array<i32>} : memref<16x32xf32, #tpu.memory_space<vmem>>, vector<2x32xf32>,
    %c4_50 = arith.constant 4 : index
    %c0_51 = arith.constant 0 : index
    %c0_52 = arith.constant 0 : index
    %111 = vector.load %arg3[%c4_50, %c0_51, %c0_52] : memref<8x2x20xf32, #tpu.memory_space<vmem>>, vector<1x2x20xf32>
    %112 = vector.shape_cast %111 : vector<1x2x20xf32> to vector<2x20xf32>
    %113 = vector.shape_cast %112 : vector<2x20xf32> to vector<2x20x1xf32>
    %cst_53 = arith.constant 5.000000e-01 : f32
    %114 = vector.broadcast %cst_53 : f32 to vector<2x20x1xf32>
    %115 = arith.cmpf ogt, %113, %114 : vector<2x20x1xf32>
    %116 = vector.shape_cast %115 : vector<2x20x1xi1> to vector<2x20x1xi1>
    %117 = vector.broadcast %116 : vector<2x20x1xi1> to vector<2x20x32xi1>
    %118 = vector.broadcast %65 : f32 to vector<2x20x32xf32>
    %119 = arith.select %117, %66, %118 : vector<2x20x32xi1>, vector<2x20x32xf32>
    %cst_54 = arith.constant dense<0xFF800000> : vector<2x32xf32>
    %120 = vector.multi_reduction <maximumf>, %119, %cst_54 [1] : vector<2x20x32xf32> to vector<2x32xf32>
    %c8 = arith.constant 8 : index
    %c0_55 = arith.constant 0 : index
    %121 = vector.load %arg21[%c8, %c0_55] : memref<16x32xf32, #tpu.memory_space<vmem>>, vector<2x32xf32>
    tpu.vector_store %arg21[%c8, %c0_55], %120 {strides = array<i32>} : memref<16x32xf32, #tpu.memory_space<vmem>>, vector<2x32xf32>,
    %c5 = arith.constant 5 : index
    %c0_56 = arith.constant 0 : index
    %c0_57 = arith.constant 0 : index
    %122 = vector.load %arg3[%c5, %c0_56, %c0_57] : memref<8x2x20xf32, #tpu.memory_space<vmem>>, vector<1x2x20xf32>
    %123 = vector.shape_cast %122 : vector<1x2x20xf32> to vector<2x20xf32>
    %124 = vector.shape_cast %123 : vector<2x20xf32> to vector<2x20x1xf32>
    %cst_58 = arith.constant 5.000000e-01 : f32
    %125 = vector.broadcast %cst_58 : f32 to vector<2x20x1xf32>
    %126 = arith.cmpf ogt, %124, %125 : vector<2x20x1xf32>
    %127 = vector.shape_cast %126 : vector<2x20x1xi1> to vector<2x20x1xi1>
    %128 = vector.broadcast %127 : vector<2x20x1xi1> to vector<2x20x32xi1>
    %129 = vector.broadcast %65 : f32 to vector<2x20x32xf32>
    %130 = arith.select %128, %66, %129 : vector<2x20x32xi1>, vector<2x20x32xf32>
    %cst_59 = arith.constant dense<0xFF800000> : vector<2x32xf32>
    %131 = vector.multi_reduction <maximumf>, %130, %cst_59 [1] : vector<2x20x32xf32> to vector<2x32xf32>
    %c10 = arith.constant 10 : index
    %c0_60 = arith.constant 0 : index
    %132 = vector.load %arg21[%c10, %c0_60] : memref<16x32xf32, #tpu.memory_space<vmem>>, vector<2x32xf32>
    tpu.vector_store %arg21[%c10, %c0_60], %131 {strides = array<i32>} : memref<16x32xf32, #tpu.memory_space<vmem>>, vector<2x32xf32>,
    %c6_61 = arith.constant 6 : index
    %c0_62 = arith.constant 0 : index
    %c0_63 = arith.constant 0 : index
    %133 = vector.load %arg3[%c6_61, %c0_62, %c0_63] : memref<8x2x20xf32, #tpu.memory_space<vmem>>, vector<1x2x20xf32>
    %134 = vector.shape_cast %133 : vector<1x2x20xf32> to vector<2x20xf32>
    %135 = vector.shape_cast %134 : vector<2x20xf32> to vector<2x20x1xf32>
    %cst_64 = arith.constant 5.000000e-01 : f32
    %136 = vector.broadcast %cst_64 : f32 to vector<2x20x1xf32>
    %137 = arith.cmpf ogt, %135, %136 : vector<2x20x1xf32>
    %138 = vector.shape_cast %137 : vector<2x20x1xi1> to vector<2x20x1xi1>
    %139 = vector.broadcast %138 : vector<2x20x1xi1> to vector<2x20x32xi1>
    %140 = vector.broadcast %65 : f32 to vector<2x20x32xf32>
    %141 = arith.select %139, %66, %140 : vector<2x20x32xi1>, vector<2x20x32xf32>
    %cst_65 = arith.constant dense<0xFF800000> : vector<2x32xf32>
    %142 = vector.multi_reduction <maximumf>, %141, %cst_65 [1] : vector<2x20x32xf32> to vector<2x32xf32>
    %c12 = arith.constant 12 : index
    %c0_66 = arith.constant 0 : index
    %143 = vector.load %arg21[%c12, %c0_66] : memref<16x32xf32, #tpu.memory_space<vmem>>, vector<2x32xf32>
    tpu.vector_store %arg21[%c12, %c0_66], %142 {strides = array<i32>} : memref<16x32xf32, #tpu.memory_space<vmem>>, vector<2x32xf32>,
    %c7 = arith.constant 7 : index
    %c0_67 = arith.constant 0 : index
    %c0_68 = arith.constant 0 : index
    %144 = vector.load %arg3[%c7, %c0_67, %c0_68] : memref<8x2x20xf32, #tpu.memory_space<vmem>>, vector<1x2x20xf32>
    %145 = vector.shape_cast %144 : vector<1x2x20xf32> to vector<2x20xf32>
    %146 = vector.shape_cast %145 : vector<2x20xf32> to vector<2x20x1xf32>
    %cst_69 = arith.constant 5.000000e-01 : f32
    %147 = vector.broadcast %cst_69 : f32 to vector<2x20x1xf32>
    %148 = arith.cmpf ogt, %146, %147 : vector<2x20x1xf32>
    %149 = vector.shape_cast %148 : vector<2x20x1xi1> to vector<2x20x1xi1>
    %150 = vector.broadcast %149 : vector<2x20x1xi1> to vector<2x20x32xi1>
    %151 = vector.broadcast %65 : f32 to vector<2x20x32xf32>
    %152 = arith.select %150, %66, %151 : vector<2x20x32xi1>, vector<2x20x32xf32>
    %cst_70 = arith.constant dense<0xFF800000> : vector<2x32xf32>
    %153 = vector.multi_reduction <maximumf>, %152, %cst_70 [1] : vector<2x20x32xf32> to vector<2x32xf32>
    %c14 = arith.constant 14 : index
    %c0_71 = arith.constant 0 : index
    %154 = vector.load %arg21[%c14, %c0_71] : memref<16x32xf32, #tpu.memory_space<vmem>>, vector<2x32xf32>
    tpu.vector_store %arg21[%c14, %c0_71], %153 {strides = array<i32>} : memref<16x32xf32, #tpu.memory_space<vmem>>, vector<2x32xf32>,
    %c0_72 = arith.constant 0 : index
    %c0_73 = arith.constant 0 : index
    %155 = vector.load %arg21[%c0_72, %c0_73] : memref<16x32xf32, #tpu.memory_space<vmem>>, vector<16x32xf32>
    %156 = arith.truncf %155 : vector<16x32xf32> to vector<16x32xbf16>
    %c0_74 = arith.constant 0 : index
    %c0_75 = arith.constant 0 : index
    %157 = vector.load %arg11[%c0_74, %c0_75] : memref<32x128xbf16, #tpu.memory_space<vmem>>, vector<32x128xbf16>
    %cst_76 = arith.constant dense<0.000000e+00> : vector<16x128xf32>
    %158 = tpu.matmul %156, %157, %cst_76 {dimension_numbers = #tpu.dot_dimension_numbers<[1], [0], [0], [1], [0, 0, 1, 1], [], []>} : vector<16x32xbf16>, vector<32x128xbf16>, vector<16x128xf32> -> vector<16x128xf32>
    %c0_77 = arith.constant 0 : index
    %c0_78 = arith.constant 0 : index
    %159 = vector.load %arg12[%c0_77, %c0_78] : memref<32x128xf32, #tpu.memory_space<vmem>>, vector<32x128xf32>
    %c0_79 = arith.constant 0 : index
    %c0_80 = arith.constant 0 : index
    %160 = vector.load %arg13[%c0_79, %c0_80] : memref<1x128xf32, #tpu.memory_space<vmem>>, vector<1x128xf32>
    %161 = tpu.iota {dimensions = array<i32: 1>} : vector<1x128xi32>
    %c31_i32 = arith.constant 31 : i32
    %162 = vector.broadcast %c31_i32 : i32 to vector<1x128xi32>
    %163 = arith.andi %161, %162 : vector<1x128xi32>
    %c16_i32 = arith.constant 16 : i32
    %164 = vector.broadcast %c16_i32 : i32 to vector<1x128xi32>
    %165 = arith.cmpi slt, %163, %164 : vector<1x128xi32>
    %c96_i32 = arith.constant 96 : i32
    %166 = vector.broadcast %c96_i32 : i32 to vector<1x128xi32>
    %167 = arith.cmpi sge, %161, %166 : vector<1x128xi32>
    %168 = tpu.iota {dimensions = array<i32: 1>} : vector<1x32xi32>
    %c16_i32_81 = arith.constant 16 : i32
    %169 = vector.broadcast %c16_i32_81 : i32 to vector<1x32xi32>
    %170 = arith.cmpi slt, %168, %169 : vector<1x32xi32>
    %cst_82 = arith.constant 0.000000e+00 : f32
    %171 = vector.broadcast %cst_82 : f32 to vector<2x32xf32>
    %cst_83 = arith.constant 0.000000e+00 : f32
    %172 = vector.broadcast %cst_83 : f32 to vector<2x32xf32>
    %cst_84 = arith.constant dense<0.000000e+00> : vector<2x128xf32>
    %173 = tpu.matmul %171, %159, %cst_84 {dimension_numbers = #tpu.dot_dimension_numbers<[1], [0], [0], [1], [0, 0, 1, 1], [], []>} : vector<2x32xf32>, vector<32x128xf32>, vector<2x128xf32> -> vector<2x128xf32>
    %174 = vector.extract_strided_slice %158 {offsets = [0, 0], sizes = [2, 128], strides = [1, 1]} : vector<16x128xf32> to vector<2x128xf32>
    %175 = vector.extract_strided_slice %158 {offsets = [14, 0], sizes = [2, 128], strides = [1, 1]} : vector<16x128xf32> to vector<2x128xf32>
    %176 = vector.shape_cast %165 : vector<1x128xi1> to vector<1x128xi1>
    %177 = vector.broadcast %176 : vector<1x128xi1> to vector<2x128xi1>
    %178 = arith.select %177, %174, %175 : vector<2x128xi1>, vector<2x128xf32>
    %179 = arith.addf %178, %173 : vector<2x128xf32>
    %180 = vector.broadcast %160 : vector<1x128xf32> to vector<2x128xf32>
    %181 = arith.addf %179, %180 : vector<2x128xf32>
    %182 = arith.negf %181 : vector<2x128xf32>
    %183 = math.exp %182 : vector<2x128xf32>
    %cst_85 = arith.constant 1.000000e+00 : f32
    %184 = vector.broadcast %cst_85 : f32 to vector<2x128xf32>
    %185 = arith.addf %184, %183 : vector<2x128xf32>
    %186 = arith.divf %184, %185 : vector<2x128xf32>
    %187 = math.tanh %181 : vector<2x128xf32>
    %188 = vector.shape_cast %167 : vector<1x128xi1> to vector<1x128xi1>
    %189 = vector.broadcast %188 : vector<1x128xi1> to vector<2x128xi1>
    %190 = arith.select %189, %187, %186 : vector<2x128xi1>, vector<2x128xf32>
    %191 = vector.extract_strided_slice %190 {offsets = [0, 0], sizes = [2, 32], strides = [1, 1]} : vector<2x128xf32> to vector<2x32xf32>
    %192 = vector.extract_strided_slice %190 {offsets = [0, 32], sizes = [2, 32], strides = [1, 1]} : vector<2x128xf32> to vector<2x32xf32>
    %193 = vector.extract_strided_slice %190 {offsets = [0, 64], sizes = [2, 32], strides = [1, 1]} : vector<2x128xf32> to vector<2x32xf32>
    %194 = vector.extract_strided_slice %190 {offsets = [0, 96], sizes = [2, 32], strides = [1, 1]} : vector<2x128xf32> to vector<2x32xf32>
    %195 = arith.mulf %192, %172 : vector<2x32xf32>
    %196 = arith.mulf %191, %194 : vector<2x32xf32>
    %197 = arith.addf %195, %196 : vector<2x32xf32>
    %198 = math.tanh %197 : vector<2x32xf32>
    %199 = arith.mulf %193, %198 : vector<2x32xf32>
    %c0_86 = arith.constant 0 : index
    %c0_87 = arith.constant 0 : index
    %c0_88 = arith.constant 0 : index
    %200 = vector.load %arg4[%c0_86, %c0_87, %c0_88] : memref<8x2x1xf32, #tpu.memory_space<vmem>>, vector<1x2x1xf32>
    %201 = vector.shape_cast %200 : vector<1x2x1xf32> to vector<2x1xf32>
    %c7_89 = arith.constant 7 : index
    %c0_90 = arith.constant 0 : index
    %c0_91 = arith.constant 0 : index
    %202 = vector.load %arg4[%c7_89, %c0_90, %c0_91] : memref<8x2x1xf32, #tpu.memory_space<vmem>>, vector<1x2x1xf32>
    %203 = vector.shape_cast %202 : vector<1x2x1xf32> to vector<2x1xf32>
    %204 = vector.shape_cast %170 : vector<1x32xi1> to vector<1x32xi1>
    %205 = vector.broadcast %204 : vector<1x32xi1> to vector<2x32xi1>
    %206 = vector.shape_cast %201 : vector<2x1xf32> to vector<2x1xf32>
    %207 = vector.broadcast %206 : vector<2x1xf32> to vector<2x32xf32>
    %208 = vector.shape_cast %203 : vector<2x1xf32> to vector<2x1xf32>
    %209 = vector.broadcast %208 : vector<2x1xf32> to vector<2x32xf32>
    %210 = arith.select %205, %207, %209 : vector<2x32xi1>, vector<2x32xf32>
    %cst_92 = arith.constant 5.000000e-01 : f32
    %211 = vector.broadcast %cst_92 : f32 to vector<2x32xf32>
    %212 = arith.cmpf ogt, %210, %211 : vector<2x32xf32>
    %213 = arith.select %212, %199, %171 : vector<2x32xi1>, vector<2x32xf32>
    %cst_93 = arith.constant 5.000000e-01 : f32
    %214 = vector.broadcast %cst_93 : f32 to vector<2x32xf32>
    %215 = arith.cmpf ogt, %210, %214 : vector<2x32xf32>
    %216 = arith.select %215, %197, %172 : vector<2x32xi1>, vector<2x32xf32>
    %217 = vector.extract_strided_slice %199 {offsets = [0, 0], sizes = [2, 16], strides = [1, 1]} : vector<2x32xf32> to vector<2x16xf32>
    %218 = vector.broadcast %201 : vector<2x1xf32> to vector<2x16xf32>
    %219 = arith.mulf %218, %217 : vector<2x16xf32>
    %c0_94 = arith.constant 0 : index
    %c0_95 = arith.constant 0 : index
    %220 = vector.load %arg22[%c0_94, %c0_95] : memref<16x32xf32, #tpu.memory_space<vmem>>, vector<2x16xf32>
    tpu.vector_store %arg22[%c0_94, %c0_95], %219 {strides = array<i32>} : memref<16x32xf32, #tpu.memory_space<vmem>>, vector<2x16xf32>,
    %221 = vector.extract_strided_slice %199 {offsets = [0, 16], sizes = [2, 16], strides = [1, 1]} : vector<2x32xf32> to vector<2x16xf32>
    %222 = vector.broadcast %203 : vector<2x1xf32> to vector<2x16xf32>
    %223 = arith.mulf %222, %221 : vector<2x16xf32>
    %c14_96 = arith.constant 14 : index
    %c16 = arith.constant 16 : index
    %224 = vector.load %arg22[%c14_96, %c16] : memref<16x32xf32, #tpu.memory_space<vmem>>, vector<2x16xf32>
    tpu.vector_store %arg22[%c14_96, %c16], %223 {strides = array<i32>} : memref<16x32xf32, #tpu.memory_space<vmem>>, vector<2x16xf32>,
    %cst_97 = arith.constant dense<0.000000e+00> : vector<2x128xf32>
    %225 = tpu.matmul %213, %159, %cst_97 {dimension_numbers = #tpu.dot_dimension_numbers<[1], [0], [0], [1], [0, 0, 1, 1], [], []>} : vector<2x32xf32>, vector<32x128xf32>, vector<2x128xf32> -> vector<2x128xf32>
    %226 = vector.extract_strided_slice %158 {offsets = [2, 0], sizes = [2, 128], strides = [1, 1]} : vector<16x128xf32> to vector<2x128xf32>
    %227 = vector.extract_strided_slice %158 {offsets = [12, 0], sizes = [2, 128], strides = [1, 1]} : vector<16x128xf32> to vector<2x128xf32>
    %228 = vector.shape_cast %165 : vector<1x128xi1> to vector<1x128xi1>
    %229 = vector.broadcast %228 : vector<1x128xi1> to vector<2x128xi1>
    %230 = arith.select %229, %226, %227 : vector<2x128xi1>, vector<2x128xf32>
    %231 = arith.addf %230, %225 : vector<2x128xf32>
    %232 = vector.broadcast %160 : vector<1x128xf32> to vector<2x128xf32>
    %233 = arith.addf %231, %232 : vector<2x128xf32>
    %234 = arith.negf %233 : vector<2x128xf32>
    %235 = math.exp %234 : vector<2x128xf32>
    %cst_98 = arith.constant 1.000000e+00 : f32
    %236 = vector.broadcast %cst_98 : f32 to vector<2x128xf32>
    %237 = arith.addf %236, %235 : vector<2x128xf32>
    %238 = arith.divf %236, %237 : vector<2x128xf32>
    %239 = math.tanh %233 : vector<2x128xf32>
    %240 = vector.shape_cast %167 : vector<1x128xi1> to vector<1x128xi1>
    %241 = vector.broadcast %240 : vector<1x128xi1> to vector<2x128xi1>
    %242 = arith.select %241, %239, %238 : vector<2x128xi1>, vector<2x128xf32>
    %243 = vector.extract_strided_slice %242 {offsets = [0, 0], sizes = [2, 32], strides = [1, 1]} : vector<2x128xf32> to vector<2x32xf32>
    %244 = vector.extract_strided_slice %242 {offsets = [0, 32], sizes = [2, 32], strides = [1, 1]} : vector<2x128xf32> to vector<2x32xf32>
    %245 = vector.extract_strided_slice %242 {offsets = [0, 64], sizes = [2, 32], strides = [1, 1]} : vector<2x128xf32> to vector<2x32xf32>
    %246 = vector.extract_strided_slice %242 {offsets = [0, 96], sizes = [2, 32], strides = [1, 1]} : vector<2x128xf32> to vector<2x32xf32>
    %247 = arith.mulf %244, %216 : vector<2x32xf32>
    %248 = arith.mulf %243, %246 : vector<2x32xf32>
    %249 = arith.addf %247, %248 : vector<2x32xf32>
    %250 = math.tanh %249 : vector<2x32xf32>
    %251 = arith.mulf %245, %250 : vector<2x32xf32>
    %c1_99 = arith.constant 1 : index
    %c0_100 = arith.constant 0 : index
    %c0_101 = arith.constant 0 : index
    %252 = vector.load %arg4[%c1_99, %c0_100, %c0_101] : memref<8x2x1xf32, #tpu.memory_space<vmem>>, vector<1x2x1xf32>
    %253 = vector.shape_cast %252 : vector<1x2x1xf32> to vector<2x1xf32>
    %c6_102 = arith.constant 6 : index
    %c0_103 = arith.constant 0 : index
    %c0_104 = arith.constant 0 : index
    %254 = vector.load %arg4[%c6_102, %c0_103, %c0_104] : memref<8x2x1xf32, #tpu.memory_space<vmem>>, vector<1x2x1xf32>
    %255 = vector.shape_cast %254 : vector<1x2x1xf32> to vector<2x1xf32>
    %256 = vector.shape_cast %170 : vector<1x32xi1> to vector<1x32xi1>
    %257 = vector.broadcast %256 : vector<1x32xi1> to vector<2x32xi1>
    %258 = vector.shape_cast %253 : vector<2x1xf32> to vector<2x1xf32>
    %259 = vector.broadcast %258 : vector<2x1xf32> to vector<2x32xf32>
    %260 = vector.shape_cast %255 : vector<2x1xf32> to vector<2x1xf32>
    %261 = vector.broadcast %260 : vector<2x1xf32> to vector<2x32xf32>
    %262 = arith.select %257, %259, %261 : vector<2x32xi1>, vector<2x32xf32>
    %cst_105 = arith.constant 5.000000e-01 : f32
    %263 = vector.broadcast %cst_105 : f32 to vector<2x32xf32>
    %264 = arith.cmpf ogt, %262, %263 : vector<2x32xf32>
    %265 = arith.select %264, %251, %213 : vector<2x32xi1>, vector<2x32xf32>
    %cst_106 = arith.constant 5.000000e-01 : f32
    %266 = vector.broadcast %cst_106 : f32 to vector<2x32xf32>
    %267 = arith.cmpf ogt, %262, %266 : vector<2x32xf32>
    %268 = arith.select %267, %249, %216 : vector<2x32xi1>, vector<2x32xf32>
    %269 = vector.extract_strided_slice %251 {offsets = [0, 0], sizes = [2, 16], strides = [1, 1]} : vector<2x32xf32> to vector<2x16xf32>
    %270 = vector.broadcast %253 : vector<2x1xf32> to vector<2x16xf32>
    %271 = arith.mulf %270, %269 : vector<2x16xf32>
    %c2_107 = arith.constant 2 : index
    %c0_108 = arith.constant 0 : index
    %272 = vector.load %arg22[%c2_107, %c0_108] : memref<16x32xf32, #tpu.memory_space<vmem>>, vector<2x16xf32>
    tpu.vector_store %arg22[%c2_107, %c0_108], %271 {strides = array<i32>} : memref<16x32xf32, #tpu.memory_space<vmem>>, vector<2x16xf32>,
    %273 = vector.extract_strided_slice %251 {offsets = [0, 16], sizes = [2, 16], strides = [1, 1]} : vector<2x32xf32> to vector<2x16xf32>
    %274 = vector.broadcast %255 : vector<2x1xf32> to vector<2x16xf32>
    %275 = arith.mulf %274, %273 : vector<2x16xf32>
    %c12_109 = arith.constant 12 : index
    %c16_110 = arith.constant 16 : index
    %276 = vector.load %arg22[%c12_109, %c16_110] : memref<16x32xf32, #tpu.memory_space<vmem>>, vector<2x16xf32>
    tpu.vector_store %arg22[%c12_109, %c16_110], %275 {strides = array<i32>} : memref<16x32xf32, #tpu.memory_space<vmem>>, vector<2x16xf32>,
    %cst_111 = arith.constant dense<0.000000e+00> : vector<2x128xf32>
    %277 = tpu.matmul %265, %159, %cst_111 {dimension_numbers = #tpu.dot_dimension_numbers<[1], [0], [0], [1], [0, 0, 1, 1], [], []>} : vector<2x32xf32>, vector<32x128xf32>, vector<2x128xf32> -> vector<2x128xf32>
    %278 = vector.extract_strided_slice %158 {offsets = [4, 0], sizes = [2, 128], strides = [1, 1]} : vector<16x128xf32> to vector<2x128xf32>
    %279 = vector.extract_strided_slice %158 {offsets = [10, 0], sizes = [2, 128], strides = [1, 1]} : vector<16x128xf32> to vector<2x128xf32>
    %280 = vector.shape_cast %165 : vector<1x128xi1> to vector<1x128xi1>
    %281 = vector.broadcast %280 : vector<1x128xi1> to vector<2x128xi1>
    %282 = arith.select %281, %278, %279 : vector<2x128xi1>, vector<2x128xf32>
    %283 = arith.addf %282, %277 : vector<2x128xf32>
    %284 = vector.broadcast %160 : vector<1x128xf32> to vector<2x128xf32>
    %285 = arith.addf %283, %284 : vector<2x128xf32>
    %286 = arith.negf %285 : vector<2x128xf32>
    %287 = math.exp %286 : vector<2x128xf32>
    %cst_112 = arith.constant 1.000000e+00 : f32
    %288 = vector.broadcast %cst_112 : f32 to vector<2x128xf32>
    %289 = arith.addf %288, %287 : vector<2x128xf32>
    %290 = arith.divf %288, %289 : vector<2x128xf32>
    %291 = math.tanh %285 : vector<2x128xf32>
    %292 = vector.shape_cast %167 : vector<1x128xi1> to vector<1x128xi1>
    %293 = vector.broadcast %292 : vector<1x128xi1> to vector<2x128xi1>
    %294 = arith.select %293, %291, %290 : vector<2x128xi1>, vector<2x128xf32>
    %295 = vector.extract_strided_slice %294 {offsets = [0, 0], sizes = [2, 32], strides = [1, 1]} : vector<2x128xf32> to vector<2x32xf32>
    %296 = vector.extract_strided_slice %294 {offsets = [0, 32], sizes = [2, 32], strides = [1, 1]} : vector<2x128xf32> to vector<2x32xf32>
    %297 = vector.extract_strided_slice %294 {offsets = [0, 64], sizes = [2, 32], strides = [1, 1]} : vector<2x128xf32> to vector<2x32xf32>
    %298 = vector.extract_strided_slice %294 {offsets = [0, 96], sizes = [2, 32], strides = [1, 1]} : vector<2x128xf32> to vector<2x32xf32>
    %299 = arith.mulf %296, %268 : vector<2x32xf32>
    %300 = arith.mulf %295, %298 : vector<2x32xf32>
    %301 = arith.addf %299, %300 : vector<2x32xf32>
    %302 = math.tanh %301 : vector<2x32xf32>
    %303 = arith.mulf %297, %302 : vector<2x32xf32>
    %c2_113 = arith.constant 2 : index
    %c0_114 = arith.constant 0 : index
    %c0_115 = arith.constant 0 : index
    %304 = vector.load %arg4[%c2_113, %c0_114, %c0_115] : memref<8x2x1xf32, #tpu.memory_space<vmem>>, vector<1x2x1xf32>
    %305 = vector.shape_cast %304 : vector<1x2x1xf32> to vector<2x1xf32>
    %c5_116 = arith.constant 5 : index
    %c0_117 = arith.constant 0 : index
    %c0_118 = arith.constant 0 : index
    %306 = vector.load %arg4[%c5_116, %c0_117, %c0_118] : memref<8x2x1xf32, #tpu.memory_space<vmem>>, vector<1x2x1xf32>
    %307 = vector.shape_cast %306 : vector<1x2x1xf32> to vector<2x1xf32>
    %308 = vector.shape_cast %170 : vector<1x32xi1> to vector<1x32xi1>
    %309 = vector.broadcast %308 : vector<1x32xi1> to vector<2x32xi1>
    %310 = vector.shape_cast %305 : vector<2x1xf32> to vector<2x1xf32>
    %311 = vector.broadcast %310 : vector<2x1xf32> to vector<2x32xf32>
    %312 = vector.shape_cast %307 : vector<2x1xf32> to vector<2x1xf32>
    %313 = vector.broadcast %312 : vector<2x1xf32> to vector<2x32xf32>
    %314 = arith.select %309, %311, %313 : vector<2x32xi1>, vector<2x32xf32>
    %cst_119 = arith.constant 5.000000e-01 : f32
    %315 = vector.broadcast %cst_119 : f32 to vector<2x32xf32>
    %316 = arith.cmpf ogt, %314, %315 : vector<2x32xf32>
    %317 = arith.select %316, %303, %265 : vector<2x32xi1>, vector<2x32xf32>
    %cst_120 = arith.constant 5.000000e-01 : f32
    %318 = vector.broadcast %cst_120 : f32 to vector<2x32xf32>
    %319 = arith.cmpf ogt, %314, %318 : vector<2x32xf32>
    %320 = arith.select %319, %301, %268 : vector<2x32xi1>, vector<2x32xf32>
    %321 = vector.extract_strided_slice %303 {offsets = [0, 0], sizes = [2, 16], strides = [1, 1]} : vector<2x32xf32> to vector<2x16xf32>
    %322 = vector.broadcast %305 : vector<2x1xf32> to vector<2x16xf32>
    %323 = arith.mulf %322, %321 : vector<2x16xf32>
    %c4_121 = arith.constant 4 : index
    %c0_122 = arith.constant 0 : index
    %324 = vector.load %arg22[%c4_121, %c0_122] : memref<16x32xf32, #tpu.memory_space<vmem>>, vector<2x16xf32>
    tpu.vector_store %arg22[%c4_121, %c0_122], %323 {strides = array<i32>} : memref<16x32xf32, #tpu.memory_space<vmem>>, vector<2x16xf32>,
    %325 = vector.extract_strided_slice %303 {offsets = [0, 16], sizes = [2, 16], strides = [1, 1]} : vector<2x32xf32> to vector<2x16xf32>
    %326 = vector.broadcast %307 : vector<2x1xf32> to vector<2x16xf32>
    %327 = arith.mulf %326, %325 : vector<2x16xf32>
    %c10_123 = arith.constant 10 : index
    %c16_124 = arith.constant 16 : index
    %328 = vector.load %arg22[%c10_123, %c16_124] : memref<16x32xf32, #tpu.memory_space<vmem>>, vector<2x16xf32>
    tpu.vector_store %arg22[%c10_123, %c16_124], %327 {strides = array<i32>} : memref<16x32xf32, #tpu.memory_space<vmem>>, vector<2x16xf32>,
    %cst_125 = arith.constant dense<0.000000e+00> : vector<2x128xf32>
    %329 = tpu.matmul %317, %159, %cst_125 {dimension_numbers = #tpu.dot_dimension_numbers<[1], [0], [0], [1], [0, 0, 1, 1], [], []>} : vector<2x32xf32>, vector<32x128xf32>, vector<2x128xf32> -> vector<2x128xf32>
    %330 = vector.extract_strided_slice %158 {offsets = [6, 0], sizes = [2, 128], strides = [1, 1]} : vector<16x128xf32> to vector<2x128xf32>
    %331 = vector.extract_strided_slice %158 {offsets = [8, 0], sizes = [2, 128], strides = [1, 1]} : vector<16x128xf32> to vector<2x128xf32>
    %332 = vector.shape_cast %165 : vector<1x128xi1> to vector<1x128xi1>
    %333 = vector.broadcast %332 : vector<1x128xi1> to vector<2x128xi1>
    %334 = arith.select %333, %330, %331 : vector<2x128xi1>, vector<2x128xf32>
    %335 = arith.addf %334, %329 : vector<2x128xf32>
    %336 = vector.broadcast %160 : vector<1x128xf32> to vector<2x128xf32>
    %337 = arith.addf %335, %336 : vector<2x128xf32>
    %338 = arith.negf %337 : vector<2x128xf32>
    %339 = math.exp %338 : vector<2x128xf32>
    %cst_126 = arith.constant 1.000000e+00 : f32
    %340 = vector.broadcast %cst_126 : f32 to vector<2x128xf32>
    %341 = arith.addf %340, %339 : vector<2x128xf32>
    %342 = arith.divf %340, %341 : vector<2x128xf32>
    %343 = math.tanh %337 : vector<2x128xf32>
    %344 = vector.shape_cast %167 : vector<1x128xi1> to vector<1x128xi1>
    %345 = vector.broadcast %344 : vector<1x128xi1> to vector<2x128xi1>
    %346 = arith.select %345, %343, %342 : vector<2x128xi1>, vector<2x128xf32>
    %347 = vector.extract_strided_slice %346 {offsets = [0, 0], sizes = [2, 32], strides = [1, 1]} : vector<2x128xf32> to vector<2x32xf32>
    %348 = vector.extract_strided_slice %346 {offsets = [0, 32], sizes = [2, 32], strides = [1, 1]} : vector<2x128xf32> to vector<2x32xf32>
    %349 = vector.extract_strided_slice %346 {offsets = [0, 64], sizes = [2, 32], strides = [1, 1]} : vector<2x128xf32> to vector<2x32xf32>
    %350 = vector.extract_strided_slice %346 {offsets = [0, 96], sizes = [2, 32], strides = [1, 1]} : vector<2x128xf32> to vector<2x32xf32>
    %351 = arith.mulf %348, %320 : vector<2x32xf32>
    %352 = arith.mulf %347, %350 : vector<2x32xf32>
    %353 = arith.addf %351, %352 : vector<2x32xf32>
    %354 = math.tanh %353 : vector<2x32xf32>
    %355 = arith.mulf %349, %354 : vector<2x32xf32>
    %c3_127 = arith.constant 3 : index
    %c0_128 = arith.constant 0 : index
    %c0_129 = arith.constant 0 : index
    %356 = vector.load %arg4[%c3_127, %c0_128, %c0_129] : memref<8x2x1xf32, #tpu.memory_space<vmem>>, vector<1x2x1xf32>
    %357 = vector.shape_cast %356 : vector<1x2x1xf32> to vector<2x1xf32>
    %c4_130 = arith.constant 4 : index
    %c0_131 = arith.constant 0 : index
    %c0_132 = arith.constant 0 : index
    %358 = vector.load %arg4[%c4_130, %c0_131, %c0_132] : memref<8x2x1xf32, #tpu.memory_space<vmem>>, vector<1x2x1xf32>
    %359 = vector.shape_cast %358 : vector<1x2x1xf32> to vector<2x1xf32>
    %360 = vector.shape_cast %170 : vector<1x32xi1> to vector<1x32xi1>
    %361 = vector.broadcast %360 : vector<1x32xi1> to vector<2x32xi1>
    %362 = vector.shape_cast %357 : vector<2x1xf32> to vector<2x1xf32>
    %363 = vector.broadcast %362 : vector<2x1xf32> to vector<2x32xf32>
    %364 = vector.shape_cast %359 : vector<2x1xf32> to vector<2x1xf32>
    %365 = vector.broadcast %364 : vector<2x1xf32> to vector<2x32xf32>
    %366 = arith.select %361, %363, %365 : vector<2x32xi1>, vector<2x32xf32>
    %cst_133 = arith.constant 5.000000e-01 : f32
    %367 = vector.broadcast %cst_133 : f32 to vector<2x32xf32>
    %368 = arith.cmpf ogt, %366, %367 : vector<2x32xf32>
    %369 = arith.select %368, %355, %317 : vector<2x32xi1>, vector<2x32xf32>
    %cst_134 = arith.constant 5.000000e-01 : f32
    %370 = vector.broadcast %cst_134 : f32 to vector<2x32xf32>
    %371 = arith.cmpf ogt, %366, %370 : vector<2x32xf32>
    %372 = arith.select %371, %353, %320 : vector<2x32xi1>, vector<2x32xf32>
    %373 = vector.extract_strided_slice %355 {offsets = [0, 0], sizes = [2, 16], strides = [1, 1]} : vector<2x32xf32> to vector<2x16xf32>
    %374 = vector.broadcast %357 : vector<2x1xf32> to vector<2x16xf32>
    %375 = arith.mulf %374, %373 : vector<2x16xf32>
    %c6_135 = arith.constant 6 : index
    %c0_136 = arith.constant 0 : index
    %376 = vector.load %arg22[%c6_135, %c0_136] : memref<16x32xf32, #tpu.memory_space<vmem>>, vector<2x16xf32>
    tpu.vector_store %arg22[%c6_135, %c0_136], %375 {strides = array<i32>} : memref<16x32xf32, #tpu.memory_space<vmem>>, vector<2x16xf32>,
    %377 = vector.extract_strided_slice %355 {offsets = [0, 16], sizes = [2, 16], strides = [1, 1]} : vector<2x32xf32> to vector<2x16xf32>
    %378 = vector.broadcast %359 : vector<2x1xf32> to vector<2x16xf32>
    %379 = arith.mulf %378, %377 : vector<2x16xf32>
    %c8_137 = arith.constant 8 : index
    %c16_138 = arith.constant 16 : index
    %380 = vector.load %arg22[%c8_137, %c16_138] : memref<16x32xf32, #tpu.memory_space<vmem>>, vector<2x16xf32>
    tpu.vector_store %arg22[%c8_137, %c16_138], %379 {strides = array<i32>} : memref<16x32xf32, #tpu.memory_space<vmem>>, vector<2x16xf32>,
    %cst_139 = arith.constant dense<0.000000e+00> : vector<2x128xf32>
    %381 = tpu.matmul %369, %159, %cst_139 {dimension_numbers = #tpu.dot_dimension_numbers<[1], [0], [0], [1], [0, 0, 1, 1], [], []>} : vector<2x32xf32>, vector<32x128xf32>, vector<2x128xf32> -> vector<2x128xf32>
    %382 = vector.extract_strided_slice %158 {offsets = [8, 0], sizes = [2, 128], strides = [1, 1]} : vector<16x128xf32> to vector<2x128xf32>
    %383 = vector.extract_strided_slice %158 {offsets = [6, 0], sizes = [2, 128], strides = [1, 1]} : vector<16x128xf32> to vector<2x128xf32>
    %384 = vector.shape_cast %165 : vector<1x128xi1> to vector<1x128xi1>
    %385 = vector.broadcast %384 : vector<1x128xi1> to vector<2x128xi1>
    %386 = arith.select %385, %382, %383 : vector<2x128xi1>, vector<2x128xf32>
    %387 = arith.addf %386, %381 : vector<2x128xf32>
    %388 = vector.broadcast %160 : vector<1x128xf32> to vector<2x128xf32>
    %389 = arith.addf %387, %388 : vector<2x128xf32>
    %390 = arith.negf %389 : vector<2x128xf32>
    %391 = math.exp %390 : vector<2x128xf32>
    %cst_140 = arith.constant 1.000000e+00 : f32
    %392 = vector.broadcast %cst_140 : f32 to vector<2x128xf32>
    %393 = arith.addf %392, %391 : vector<2x128xf32>
    %394 = arith.divf %392, %393 : vector<2x128xf32>
    %395 = math.tanh %389 : vector<2x128xf32>
    %396 = vector.shape_cast %167 : vector<1x128xi1> to vector<1x128xi1>
    %397 = vector.broadcast %396 : vector<1x128xi1> to vector<2x128xi1>
    %398 = arith.select %397, %395, %394 : vector<2x128xi1>, vector<2x128xf32>
    %399 = vector.extract_strided_slice %398 {offsets = [0, 0], sizes = [2, 32], strides = [1, 1]} : vector<2x128xf32> to vector<2x32xf32>
    %400 = vector.extract_strided_slice %398 {offsets = [0, 32], sizes = [2, 32], strides = [1, 1]} : vector<2x128xf32> to vector<2x32xf32>
    %401 = vector.extract_strided_slice %398 {offsets = [0, 64], sizes = [2, 32], strides = [1, 1]} : vector<2x128xf32> to vector<2x32xf32>
    %402 = vector.extract_strided_slice %398 {offsets = [0, 96], sizes = [2, 32], strides = [1, 1]} : vector<2x128xf32> to vector<2x32xf32>
    %403 = arith.mulf %400, %372 : vector<2x32xf32>
    %404 = arith.mulf %399, %402 : vector<2x32xf32>
    %405 = arith.addf %403, %404 : vector<2x32xf32>
    %406 = math.tanh %405 : vector<2x32xf32>
    %407 = arith.mulf %401, %406 : vector<2x32xf32>
    %c4_141 = arith.constant 4 : index
    %c0_142 = arith.constant 0 : index
    %c0_143 = arith.constant 0 : index
    %408 = vector.load %arg4[%c4_141, %c0_142, %c0_143] : memref<8x2x1xf32, #tpu.memory_space<vmem>>, vector<1x2x1xf32>
    %409 = vector.shape_cast %408 : vector<1x2x1xf32> to vector<2x1xf32>
    %c3_144 = arith.constant 3 : index
    %c0_145 = arith.constant 0 : index
    %c0_146 = arith.constant 0 : index
    %410 = vector.load %arg4[%c3_144, %c0_145, %c0_146] : memref<8x2x1xf32, #tpu.memory_space<vmem>>, vector<1x2x1xf32>
    %411 = vector.shape_cast %410 : vector<1x2x1xf32> to vector<2x1xf32>
    %412 = vector.shape_cast %170 : vector<1x32xi1> to vector<1x32xi1>
    %413 = vector.broadcast %412 : vector<1x32xi1> to vector<2x32xi1>
    %414 = vector.shape_cast %409 : vector<2x1xf32> to vector<2x1xf32>
    %415 = vector.broadcast %414 : vector<2x1xf32> to vector<2x32xf32>
    %416 = vector.shape_cast %411 : vector<2x1xf32> to vector<2x1xf32>
    %417 = vector.broadcast %416 : vector<2x1xf32> to vector<2x32xf32>
    %418 = arith.select %413, %415, %417 : vector<2x32xi1>, vector<2x32xf32>
    %cst_147 = arith.constant 5.000000e-01 : f32
    %419 = vector.broadcast %cst_147 : f32 to vector<2x32xf32>
    %420 = arith.cmpf ogt, %418, %419 : vector<2x32xf32>
    %421 = arith.select %420, %407, %369 : vector<2x32xi1>, vector<2x32xf32>
    %cst_148 = arith.constant 5.000000e-01 : f32
    %422 = vector.broadcast %cst_148 : f32 to vector<2x32xf32>
    %423 = arith.cmpf ogt, %418, %422 : vector<2x32xf32>
    %424 = arith.select %423, %405, %372 : vector<2x32xi1>, vector<2x32xf32>
    %425 = vector.extract_strided_slice %407 {offsets = [0, 0], sizes = [2, 16], strides = [1, 1]} : vector<2x32xf32> to vector<2x16xf32>
    %426 = vector.broadcast %409 : vector<2x1xf32> to vector<2x16xf32>
    %427 = arith.mulf %426, %425 : vector<2x16xf32>
    %c8_149 = arith.constant 8 : index
    %c0_150 = arith.constant 0 : index
    %428 = vector.load %arg22[%c8_149, %c0_150] : memref<16x32xf32, #tpu.memory_space<vmem>>, vector<2x16xf32>
    tpu.vector_store %arg22[%c8_149, %c0_150], %427 {strides = array<i32>} : memref<16x32xf32, #tpu.memory_space<vmem>>, vector<2x16xf32>,
    %429 = vector.extract_strided_slice %407 {offsets = [0, 16], sizes = [2, 16], strides = [1, 1]} : vector<2x32xf32> to vector<2x16xf32>
    %430 = vector.broadcast %411 : vector<2x1xf32> to vector<2x16xf32>
    %431 = arith.mulf %430, %429 : vector<2x16xf32>
    %c6_151 = arith.constant 6 : index
    %c16_152 = arith.constant 16 : index
    %432 = vector.load %arg22[%c6_151, %c16_152] : memref<16x32xf32, #tpu.memory_space<vmem>>, vector<2x16xf32>
    tpu.vector_store %arg22[%c6_151, %c16_152], %431 {strides = array<i32>} : memref<16x32xf32, #tpu.memory_space<vmem>>, vector<2x16xf32>,
    %cst_153 = arith.constant dense<0.000000e+00> : vector<2x128xf32>
    %433 = tpu.matmul %421, %159, %cst_153 {dimension_numbers = #tpu.dot_dimension_numbers<[1], [0], [0], [1], [0, 0, 1, 1], [], []>} : vector<2x32xf32>, vector<32x128xf32>, vector<2x128xf32> -> vector<2x128xf32>
    %434 = vector.extract_strided_slice %158 {offsets = [10, 0], sizes = [2, 128], strides = [1, 1]} : vector<16x128xf32> to vector<2x128xf32>
    %435 = vector.extract_strided_slice %158 {offsets = [4, 0], sizes = [2, 128], strides = [1, 1]} : vector<16x128xf32> to vector<2x128xf32>
    %436 = vector.shape_cast %165 : vector<1x128xi1> to vector<1x128xi1>
    %437 = vector.broadcast %436 : vector<1x128xi1> to vector<2x128xi1>
    %438 = arith.select %437, %434, %435 : vector<2x128xi1>, vector<2x128xf32>
    %439 = arith.addf %438, %433 : vector<2x128xf32>
    %440 = vector.broadcast %160 : vector<1x128xf32> to vector<2x128xf32>
    %441 = arith.addf %439, %440 : vector<2x128xf32>
    %442 = arith.negf %441 : vector<2x128xf32>
    %443 = math.exp %442 : vector<2x128xf32>
    %cst_154 = arith.constant 1.000000e+00 : f32
    %444 = vector.broadcast %cst_154 : f32 to vector<2x128xf32>
    %445 = arith.addf %444, %443 : vector<2x128xf32>
    %446 = arith.divf %444, %445 : vector<2x128xf32>
    %447 = math.tanh %441 : vector<2x128xf32>
    %448 = vector.shape_cast %167 : vector<1x128xi1> to vector<1x128xi1>
    %449 = vector.broadcast %448 : vector<1x128xi1> to vector<2x128xi1>
    %450 = arith.select %449, %447, %446 : vector<2x128xi1>, vector<2x128xf32>
    %451 = vector.extract_strided_slice %450 {offsets = [0, 0], sizes = [2, 32], strides = [1, 1]} : vector<2x128xf32> to vector<2x32xf32>
    %452 = vector.extract_strided_slice %450 {offsets = [0, 32], sizes = [2, 32], strides = [1, 1]} : vector<2x128xf32> to vector<2x32xf32>
    %453 = vector.extract_strided_slice %450 {offsets = [0, 64], sizes = [2, 32], strides = [1, 1]} : vector<2x128xf32> to vector<2x32xf32>
    %454 = vector.extract_strided_slice %450 {offsets = [0, 96], sizes = [2, 32], strides = [1, 1]} : vector<2x128xf32> to vector<2x32xf32>
    %455 = arith.mulf %452, %424 : vector<2x32xf32>
    %456 = arith.mulf %451, %454 : vector<2x32xf32>
    %457 = arith.addf %455, %456 : vector<2x32xf32>
    %458 = math.tanh %457 : vector<2x32xf32>
    %459 = arith.mulf %453, %458 : vector<2x32xf32>
    %c5_155 = arith.constant 5 : index
    %c0_156 = arith.constant 0 : index
    %c0_157 = arith.constant 0 : index
    %460 = vector.load %arg4[%c5_155, %c0_156, %c0_157] : memref<8x2x1xf32, #tpu.memory_space<vmem>>, vector<1x2x1xf32>
    %461 = vector.shape_cast %460 : vector<1x2x1xf32> to vector<2x1xf32>
    %c2_158 = arith.constant 2 : index
    %c0_159 = arith.constant 0 : index
    %c0_160 = arith.constant 0 : index
    %462 = vector.load %arg4[%c2_158, %c0_159, %c0_160] : memref<8x2x1xf32, #tpu.memory_space<vmem>>, vector<1x2x1xf32>
    %463 = vector.shape_cast %462 : vector<1x2x1xf32> to vector<2x1xf32>
    %464 = vector.shape_cast %170 : vector<1x32xi1> to vector<1x32xi1>
    %465 = vector.broadcast %464 : vector<1x32xi1> to vector<2x32xi1>
    %466 = vector.shape_cast %461 : vector<2x1xf32> to vector<2x1xf32>
    %467 = vector.broadcast %466 : vector<2x1xf32> to vector<2x32xf32>
    %468 = vector.shape_cast %463 : vector<2x1xf32> to vector<2x1xf32>
    %469 = vector.broadcast %468 : vector<2x1xf32> to vector<2x32xf32>
    %470 = arith.select %465, %467, %469 : vector<2x32xi1>, vector<2x32xf32>
    %cst_161 = arith.constant 5.000000e-01 : f32
    %471 = vector.broadcast %cst_161 : f32 to vector<2x32xf32>
    %472 = arith.cmpf ogt, %470, %471 : vector<2x32xf32>
    %473 = arith.select %472, %459, %421 : vector<2x32xi1>, vector<2x32xf32>
    %cst_162 = arith.constant 5.000000e-01 : f32
    %474 = vector.broadcast %cst_162 : f32 to vector<2x32xf32>
    %475 = arith.cmpf ogt, %470, %474 : vector<2x32xf32>
    %476 = arith.select %475, %457, %424 : vector<2x32xi1>, vector<2x32xf32>
    %477 = vector.extract_strided_slice %459 {offsets = [0, 0], sizes = [2, 16], strides = [1, 1]} : vector<2x32xf32> to vector<2x16xf32>
    %478 = vector.broadcast %461 : vector<2x1xf32> to vector<2x16xf32>
    %479 = arith.mulf %478, %477 : vector<2x16xf32>
    %c10_163 = arith.constant 10 : index
    %c0_164 = arith.constant 0 : index
    %480 = vector.load %arg22[%c10_163, %c0_164] : memref<16x32xf32, #tpu.memory_space<vmem>>, vector<2x16xf32>
    tpu.vector_store %arg22[%c10_163, %c0_164], %479 {strides = array<i32>} : memref<16x32xf32, #tpu.memory_space<vmem>>, vector<2x16xf32>,
    %481 = vector.extract_strided_slice %459 {offsets = [0, 16], sizes = [2, 16], strides = [1, 1]} : vector<2x32xf32> to vector<2x16xf32>
    %482 = vector.broadcast %463 : vector<2x1xf32> to vector<2x16xf32>
    %483 = arith.mulf %482, %481 : vector<2x16xf32>
    %c4_165 = arith.constant 4 : index
    %c16_166 = arith.constant 16 : index
    %484 = vector.load %arg22[%c4_165, %c16_166] : memref<16x32xf32, #tpu.memory_space<vmem>>, vector<2x16xf32>
    tpu.vector_store %arg22[%c4_165, %c16_166], %483 {strides = array<i32>} : memref<16x32xf32, #tpu.memory_space<vmem>>, vector<2x16xf32>,
    %cst_167 = arith.constant dense<0.000000e+00> : vector<2x128xf32>
    %485 = tpu.matmul %473, %159, %cst_167 {dimension_numbers = #tpu.dot_dimension_numbers<[1], [0], [0], [1], [0, 0, 1, 1], [], []>} : vector<2x32xf32>, vector<32x128xf32>, vector<2x128xf32> -> vector<2x128xf32>
    %486 = vector.extract_strided_slice %158 {offsets = [12, 0], sizes = [2, 128], strides = [1, 1]} : vector<16x128xf32> to vector<2x128xf32>
    %487 = vector.extract_strided_slice %158 {offsets = [2, 0], sizes = [2, 128], strides = [1, 1]} : vector<16x128xf32> to vector<2x128xf32>
    %488 = vector.shape_cast %165 : vector<1x128xi1> to vector<1x128xi1>
    %489 = vector.broadcast %488 : vector<1x128xi1> to vector<2x128xi1>
    %490 = arith.select %489, %486, %487 : vector<2x128xi1>, vector<2x128xf32>
    %491 = arith.addf %490, %485 : vector<2x128xf32>
    %492 = vector.broadcast %160 : vector<1x128xf32> to vector<2x128xf32>
    %493 = arith.addf %491, %492 : vector<2x128xf32>
    %494 = arith.negf %493 : vector<2x128xf32>
    %495 = math.exp %494 : vector<2x128xf32>
    %cst_168 = arith.constant 1.000000e+00 : f32
    %496 = vector.broadcast %cst_168 : f32 to vector<2x128xf32>
    %497 = arith.addf %496, %495 : vector<2x128xf32>
    %498 = arith.divf %496, %497 : vector<2x128xf32>
    %499 = math.tanh %493 : vector<2x128xf32>
    %500 = vector.shape_cast %167 : vector<1x128xi1> to vector<1x128xi1>
    %501 = vector.broadcast %500 : vector<1x128xi1> to vector<2x128xi1>
    %502 = arith.select %501, %499, %498 : vector<2x128xi1>, vector<2x128xf32>
    %503 = vector.extract_strided_slice %502 {offsets = [0, 0], sizes = [2, 32], strides = [1, 1]} : vector<2x128xf32> to vector<2x32xf32>
    %504 = vector.extract_strided_slice %502 {offsets = [0, 32], sizes = [2, 32], strides = [1, 1]} : vector<2x128xf32> to vector<2x32xf32>
    %505 = vector.extract_strided_slice %502 {offsets = [0, 64], sizes = [2, 32], strides = [1, 1]} : vector<2x128xf32> to vector<2x32xf32>
    %506 = vector.extract_strided_slice %502 {offsets = [0, 96], sizes = [2, 32], strides = [1, 1]} : vector<2x128xf32> to vector<2x32xf32>
    %507 = arith.mulf %504, %476 : vector<2x32xf32>
    %508 = arith.mulf %503, %506 : vector<2x32xf32>
    %509 = arith.addf %507, %508 : vector<2x32xf32>
    %510 = math.tanh %509 : vector<2x32xf32>
    %511 = arith.mulf %505, %510 : vector<2x32xf32>
    %c6_169 = arith.constant 6 : index
    %c0_170 = arith.constant 0 : index
    %c0_171 = arith.constant 0 : index
    %512 = vector.load %arg4[%c6_169, %c0_170, %c0_171] : memref<8x2x1xf32, #tpu.memory_space<vmem>>, vector<1x2x1xf32>
    %513 = vector.shape_cast %512 : vector<1x2x1xf32> to vector<2x1xf32>
    %c1_172 = arith.constant 1 : index
    %c0_173 = arith.constant 0 : index
    %c0_174 = arith.constant 0 : index
    %514 = vector.load %arg4[%c1_172, %c0_173, %c0_174] : memref<8x2x1xf32, #tpu.memory_space<vmem>>, vector<1x2x1xf32>
    %515 = vector.shape_cast %514 : vector<1x2x1xf32> to vector<2x1xf32>
    %516 = vector.shape_cast %170 : vector<1x32xi1> to vector<1x32xi1>
    %517 = vector.broadcast %516 : vector<1x32xi1> to vector<2x32xi1>
    %518 = vector.shape_cast %513 : vector<2x1xf32> to vector<2x1xf32>
    %519 = vector.broadcast %518 : vector<2x1xf32> to vector<2x32xf32>
    %520 = vector.shape_cast %515 : vector<2x1xf32> to vector<2x1xf32>
    %521 = vector.broadcast %520 : vector<2x1xf32> to vector<2x32xf32>
    %522 = arith.select %517, %519, %521 : vector<2x32xi1>, vector<2x32xf32>
    %cst_175 = arith.constant 5.000000e-01 : f32
    %523 = vector.broadcast %cst_175 : f32 to vector<2x32xf32>
    %524 = arith.cmpf ogt, %522, %523 : vector<2x32xf32>
    %525 = arith.select %524, %511, %473 : vector<2x32xi1>, vector<2x32xf32>
    %cst_176 = arith.constant 5.000000e-01 : f32
    %526 = vector.broadcast %cst_176 : f32 to vector<2x32xf32>
    %527 = arith.cmpf ogt, %522, %526 : vector<2x32xf32>
    %528 = arith.select %527, %509, %476 : vector<2x32xi1>, vector<2x32xf32>
    %529 = vector.extract_strided_slice %511 {offsets = [0, 0], sizes = [2, 16], strides = [1, 1]} : vector<2x32xf32> to vector<2x16xf32>
    %530 = vector.broadcast %513 : vector<2x1xf32> to vector<2x16xf32>
    %531 = arith.mulf %530, %529 : vector<2x16xf32>
    %c12_177 = arith.constant 12 : index
    %c0_178 = arith.constant 0 : index
    %532 = vector.load %arg22[%c12_177, %c0_178] : memref<16x32xf32, #tpu.memory_space<vmem>>, vector<2x16xf32>
    tpu.vector_store %arg22[%c12_177, %c0_178], %531 {strides = array<i32>} : memref<16x32xf32, #tpu.memory_space<vmem>>, vector<2x16xf32>,
    %533 = vector.extract_strided_slice %511 {offsets = [0, 16], sizes = [2, 16], strides = [1, 1]} : vector<2x32xf32> to vector<2x16xf32>
    %534 = vector.broadcast %515 : vector<2x1xf32> to vector<2x16xf32>
    %535 = arith.mulf %534, %533 : vector<2x16xf32>
    %c2_179 = arith.constant 2 : index
    %c16_180 = arith.constant 16 : index
    %536 = vector.load %arg22[%c2_179, %c16_180] : memref<16x32xf32, #tpu.memory_space<vmem>>, vector<2x16xf32>
    tpu.vector_store %arg22[%c2_179, %c16_180], %535 {strides = array<i32>} : memref<16x32xf32, #tpu.memory_space<vmem>>, vector<2x16xf32>,
    %cst_181 = arith.constant dense<0.000000e+00> : vector<2x128xf32>
    %537 = tpu.matmul %525, %159, %cst_181 {dimension_numbers = #tpu.dot_dimension_numbers<[1], [0], [0], [1], [0, 0, 1, 1], [], []>} : vector<2x32xf32>, vector<32x128xf32>, vector<2x128xf32> -> vector<2x128xf32>
    %538 = vector.extract_strided_slice %158 {offsets = [14, 0], sizes = [2, 128], strides = [1, 1]} : vector<16x128xf32> to vector<2x128xf32>
    %539 = vector.extract_strided_slice %158 {offsets = [0, 0], sizes = [2, 128], strides = [1, 1]} : vector<16x128xf32> to vector<2x128xf32>
    %540 = vector.shape_cast %165 : vector<1x128xi1> to vector<1x128xi1>
    %541 = vector.broadcast %540 : vector<1x128xi1> to vector<2x128xi1>
    %542 = arith.select %541, %538, %539 : vector<2x128xi1>, vector<2x128xf32>
    %543 = arith.addf %542, %537 : vector<2x128xf32>
    %544 = vector.broadcast %160 : vector<1x128xf32> to vector<2x128xf32>
    %545 = arith.addf %543, %544 : vector<2x128xf32>
    %546 = arith.negf %545 : vector<2x128xf32>
    %547 = math.exp %546 : vector<2x128xf32>
    %cst_182 = arith.constant 1.000000e+00 : f32
    %548 = vector.broadcast %cst_182 : f32 to vector<2x128xf32>
    %549 = arith.addf %548, %547 : vector<2x128xf32>
    %550 = arith.divf %548, %549 : vector<2x128xf32>
    %551 = math.tanh %545 : vector<2x128xf32>
    %552 = vector.shape_cast %167 : vector<1x128xi1> to vector<1x128xi1>
    %553 = vector.broadcast %552 : vector<1x128xi1> to vector<2x128xi1>
    %554 = arith.select %553, %551, %550 : vector<2x128xi1>, vector<2x128xf32>
    %555 = vector.extract_strided_slice %554 {offsets = [0, 0], sizes = [2, 32], strides = [1, 1]} : vector<2x128xf32> to vector<2x32xf32>
    %556 = vector.extract_strided_slice %554 {offsets = [0, 32], sizes = [2, 32], strides = [1, 1]} : vector<2x128xf32> to vector<2x32xf32>
    %557 = vector.extract_strided_slice %554 {offsets = [0, 64], sizes = [2, 32], strides = [1, 1]} : vector<2x128xf32> to vector<2x32xf32>
    %558 = vector.extract_strided_slice %554 {offsets = [0, 96], sizes = [2, 32], strides = [1, 1]} : vector<2x128xf32> to vector<2x32xf32>
    %559 = arith.mulf %556, %528 : vector<2x32xf32>
    %560 = arith.mulf %555, %558 : vector<2x32xf32>
    %561 = arith.addf %559, %560 : vector<2x32xf32>
    %562 = math.tanh %561 : vector<2x32xf32>
    %563 = arith.mulf %557, %562 : vector<2x32xf32>
    %c7_183 = arith.constant 7 : index
    %c0_184 = arith.constant 0 : index
    %c0_185 = arith.constant 0 : index
    %564 = vector.load %arg4[%c7_183, %c0_184, %c0_185] : memref<8x2x1xf32, #tpu.memory_space<vmem>>, vector<1x2x1xf32>
    %565 = vector.shape_cast %564 : vector<1x2x1xf32> to vector<2x1xf32>
    %c0_186 = arith.constant 0 : index
    %c0_187 = arith.constant 0 : index
    %c0_188 = arith.constant 0 : index
    %566 = vector.load %arg4[%c0_186, %c0_187, %c0_188] : memref<8x2x1xf32, #tpu.memory_space<vmem>>, vector<1x2x1xf32>
    %567 = vector.shape_cast %566 : vector<1x2x1xf32> to vector<2x1xf32>
    %568 = vector.extract_strided_slice %563 {offsets = [0, 0], sizes = [2, 16], strides = [1, 1]} : vector<2x32xf32> to vector<2x16xf32>
    %569 = vector.broadcast %565 : vector<2x1xf32> to vector<2x16xf32>
    %570 = arith.mulf %569, %568 : vector<2x16xf32>
    %c14_189 = arith.constant 14 : index
    %c0_190 = arith.constant 0 : index
    %571 = vector.load %arg22[%c14_189, %c0_190] : memref<16x32xf32, #tpu.memory_space<vmem>>, vector<2x16xf32>
    tpu.vector_store %arg22[%c14_189, %c0_190], %570 {strides = array<i32>} : memref<16x32xf32, #tpu.memory_space<vmem>>, vector<2x16xf32>,
    %572 = vector.extract_strided_slice %563 {offsets = [0, 16], sizes = [2, 16], strides = [1, 1]} : vector<2x32xf32> to vector<2x16xf32>
    %573 = vector.broadcast %567 : vector<2x1xf32> to vector<2x16xf32>
    %574 = arith.mulf %573, %572 : vector<2x16xf32>
    %c0_191 = arith.constant 0 : index
    %c16_192 = arith.constant 16 : index
    %575 = vector.load %arg22[%c0_191, %c16_192] : memref<16x32xf32, #tpu.memory_space<vmem>>, vector<2x16xf32>
    tpu.vector_store %arg22[%c0_191, %c16_192], %574 {strides = array<i32>} : memref<16x32xf32, #tpu.memory_space<vmem>>, vector<2x16xf32>,
    %c0_193 = arith.constant 0 : index
    %c0_194 = arith.constant 0 : index
    %576 = vector.load %arg22[%c0_193, %c0_194] : memref<16x32xf32, #tpu.memory_space<vmem>>, vector<16x32xf32>
    %577 = arith.truncf %576 : vector<16x32xf32> to vector<16x32xbf16>
    %c0_195 = arith.constant 0 : index
    %c0_196 = arith.constant 0 : index
    %578 = vector.load %arg14[%c0_195, %c0_196] : memref<32x128xbf16, #tpu.memory_space<vmem>>, vector<32x128xbf16>
    %cst_197 = arith.constant dense<0.000000e+00> : vector<16x128xf32>
    %579 = tpu.matmul %577, %578, %cst_197 {dimension_numbers = #tpu.dot_dimension_numbers<[1], [0], [0], [1], [0, 0, 1, 1], [], []>} : vector<16x32xbf16>, vector<32x128xbf16>, vector<16x128xf32> -> vector<16x128xf32>
    %c0_198 = arith.constant 0 : index
    %c0_199 = arith.constant 0 : index
    %580 = vector.load %arg15[%c0_198, %c0_199] : memref<1x128xf32, #tpu.memory_space<vmem>>, vector<1x128xf32>
    %581 = vector.broadcast %580 : vector<1x128xf32> to vector<16x128xf32>
    %582 = arith.addf %579, %581 : vector<16x128xf32>
    %c0_200 = arith.constant 0 : index
    %c0_201 = arith.constant 0 : index
    %583 = vector.load %arg19[%c0_200, %c0_201] : memref<16x128xf32, #tpu.memory_space<vmem>>, vector<16x128xf32>
    tpu.vector_store %arg19[%c0_200, %c0_201], %582 {strides = array<i32>} : memref<16x128xf32, #tpu.memory_space<vmem>>, vector<16x128xf32>,
    %c0_202 = arith.constant 0 : index
    %c0_203 = arith.constant 0 : index
    %584 = vector.load %arg6[%c0_202, %c0_203] : memref<16x128xf32, #tpu.memory_space<vmem>>, vector<16x128xf32>
    %585 = arith.mulf %582, %584 : vector<16x128xf32>
    %586 = vector.shape_cast %585 : vector<16x128xf32> to vector<1x16x128xf32>
    %cst_204 = arith.constant dense<0.000000e+00> : vector<1xf32>
    %587 = vector.multi_reduction <add>, %586, %cst_204 [1, 2] : vector<1x16x128xf32> to vector<1xf32>
    %588 = vector.shape_cast %587 : vector<1xf32> to vector<1x1x1xf32>
    %589 = vector.extract %588[0, 0, 0] : f32 from vector<1x1x1xf32>
    %c0_205 = arith.constant 0 : index
    %c0_206 = arith.constant 0 : index
    %590 = memref.load %arg0[%c0_205, %c0_206] : memref<1x1xf32, #tpu.memory_space<smem>>
    %c0_207 = arith.constant 0 : index
    %c0_208 = arith.constant 0 : index
    %591 = vector.load %arg16[%c0_207, %c0_208] : memref<128x128xf32, #tpu.memory_space<vmem>>, vector<128x128xf32>
    %592 = tpu.iota {dimensions = array<i32: 1>} : vector<1x128xi32>
    %c9_i32 = arith.constant 9 : i32
    %593 = vector.broadcast %c9_i32 : i32 to vector<1x128xi32>
    %594 = arith.cmpi slt, %592, %593 : vector<1x128xi32>
    %c0_209 = arith.constant 0 : index
    %c0_210 = arith.constant 0 : index
    %595 = vector.load %arg17[%c0_209, %c0_210] : memref<1x128xf32, #tpu.memory_space<vmem>>, vector<1x128xf32>
    %596 = vector.extract_strided_slice %582 {offsets = [0, 0], sizes = [2, 128], strides = [1, 1]} : vector<16x128xf32> to vector<2x128xf32>
    %597 = vector.broadcast %595 : vector<1x128xf32> to vector<2x128xf32>
    %598 = arith.addf %597, %596 : vector<2x128xf32>
    %599 = vector.extract_strided_slice %582 {offsets = [2, 0], sizes = [2, 128], strides = [1, 1]} : vector<16x128xf32> to vector<2x128xf32>
    %cst_211 = arith.constant dense<0xFF800000> : vector<2xf32>
    %600 = vector.multi_reduction <maximumf>, %598, %cst_211 [1] : vector<2x128xf32> to vector<2xf32>
    %601 = vector.shape_cast %600 : vector<2xf32> to vector<2x1xf32>
    %602 = vector.broadcast %601 : vector<2x1xf32> to vector<2x128xf32>
    %603 = arith.subf %598, %602 : vector<2x128xf32>
    %604 = math.exp %603 : vector<2x128xf32>
    %cst_212 = arith.constant dense<0.000000e+00> : vector<2x128xf32>
    %605 = tpu.matmul %604, %591, %cst_212 {dimension_numbers = #tpu.dot_dimension_numbers<[1], [0], [0], [1], [0, 0, 1, 1], [], []>} : vector<2x128xf32>, vector<128x128xf32>, vector<2x128xf32> -> vector<2x128xf32>
    %606 = vector.broadcast %590 : f32 to vector<2x1xf32>
    %607 = arith.addf %601, %606 : vector<2x1xf32>
    %cst_213 = arith.constant 1.000000e-30 : f32
    %608 = vector.broadcast %cst_213 : f32 to vector<2x128xf32>
    %609 = arith.addf %605, %608 : vector<2x128xf32>
    %610 = math.log %609 : vector<2x128xf32>
    %611 = vector.broadcast %607 : vector<2x1xf32> to vector<2x128xf32>
    %612 = arith.addf %611, %610 : vector<2x128xf32>
    %613 = arith.addf %612, %599 : vector<2x128xf32>
    %cst_214 = arith.constant -1.000000e+09 : f32
    %614 = vector.shape_cast %594 : vector<1x128xi1> to vector<1x128xi1>
    %615 = vector.broadcast %614 : vector<1x128xi1> to vector<2x128xi1>
    %616 = vector.broadcast %cst_214 : f32 to vector<2x128xf32>
    %617 = arith.select %615, %613, %616 : vector<2x128xi1>, vector<2x128xf32>
    %c1_215 = arith.constant 1 : index
    %c0_216 = arith.constant 0 : index
    %c0_217 = arith.constant 0 : index
    %618 = vector.load %arg5[%c1_215, %c0_216, %c0_217] : memref<8x2x1xf32, #tpu.memory_space<vmem>>, vector<1x2x1xf32>
    %619 = vector.shape_cast %618 : vector<1x2x1xf32> to vector<2x1xf32>
    %cst_218 = arith.constant 5.000000e-01 : f32
    %620 = vector.broadcast %cst_218 : f32 to vector<2x1xf32>
    %621 = arith.cmpf ogt, %619, %620 : vector<2x1xf32>
    %622 = vector.shape_cast %621 : vector<2x1xi1> to vector<2x1xi1>
    %623 = vector.broadcast %622 : vector<2x1xi1> to vector<2x128xi1>
    %624 = arith.select %623, %617, %598 : vector<2x128xi1>, vector<2x128xf32>
    %625 = vector.extract_strided_slice %582 {offsets = [4, 0], sizes = [2, 128], strides = [1, 1]} : vector<16x128xf32> to vector<2x128xf32>
    %cst_219 = arith.constant dense<0xFF800000> : vector<2xf32>
    %626 = vector.multi_reduction <maximumf>, %624, %cst_219 [1] : vector<2x128xf32> to vector<2xf32>
    %627 = vector.shape_cast %626 : vector<2xf32> to vector<2x1xf32>
    %628 = vector.broadcast %627 : vector<2x1xf32> to vector<2x128xf32>
    %629 = arith.subf %624, %628 : vector<2x128xf32>
    %630 = math.exp %629 : vector<2x128xf32>
    %cst_220 = arith.constant dense<0.000000e+00> : vector<2x128xf32>
    %631 = tpu.matmul %630, %591, %cst_220 {dimension_numbers = #tpu.dot_dimension_numbers<[1], [0], [0], [1], [0, 0, 1, 1], [], []>} : vector<2x128xf32>, vector<128x128xf32>, vector<2x128xf32> -> vector<2x128xf32>
    %632 = vector.broadcast %590 : f32 to vector<2x1xf32>
    %633 = arith.addf %627, %632 : vector<2x1xf32>
    %cst_221 = arith.constant 1.000000e-30 : f32
    %634 = vector.broadcast %cst_221 : f32 to vector<2x128xf32>
    %635 = arith.addf %631, %634 : vector<2x128xf32>
    %636 = math.log %635 : vector<2x128xf32>
    %637 = vector.broadcast %633 : vector<2x1xf32> to vector<2x128xf32>
    %638 = arith.addf %637, %636 : vector<2x128xf32>
    %639 = arith.addf %638, %625 : vector<2x128xf32>
    %cst_222 = arith.constant -1.000000e+09 : f32
    %640 = vector.shape_cast %594 : vector<1x128xi1> to vector<1x128xi1>
    %641 = vector.broadcast %640 : vector<1x128xi1> to vector<2x128xi1>
    %642 = vector.broadcast %cst_222 : f32 to vector<2x128xf32>
    %643 = arith.select %641, %639, %642 : vector<2x128xi1>, vector<2x128xf32>
    %c2_223 = arith.constant 2 : index
    %c0_224 = arith.constant 0 : index
    %c0_225 = arith.constant 0 : index
    %644 = vector.load %arg5[%c2_223, %c0_224, %c0_225] : memref<8x2x1xf32, #tpu.memory_space<vmem>>, vector<1x2x1xf32>
    %645 = vector.shape_cast %644 : vector<1x2x1xf32> to vector<2x1xf32>
    %cst_226 = arith.constant 5.000000e-01 : f32
    %646 = vector.broadcast %cst_226 : f32 to vector<2x1xf32>
    %647 = arith.cmpf ogt, %645, %646 : vector<2x1xf32>
    %648 = vector.shape_cast %647 : vector<2x1xi1> to vector<2x1xi1>
    %649 = vector.broadcast %648 : vector<2x1xi1> to vector<2x128xi1>
    %650 = arith.select %649, %643, %624 : vector<2x128xi1>, vector<2x128xf32>
    %651 = vector.extract_strided_slice %582 {offsets = [6, 0], sizes = [2, 128], strides = [1, 1]} : vector<16x128xf32> to vector<2x128xf32>
    %cst_227 = arith.constant dense<0xFF800000> : vector<2xf32>
    %652 = vector.multi_reduction <maximumf>, %650, %cst_227 [1] : vector<2x128xf32> to vector<2xf32>
    %653 = vector.shape_cast %652 : vector<2xf32> to vector<2x1xf32>
    %654 = vector.broadcast %653 : vector<2x1xf32> to vector<2x128xf32>
    %655 = arith.subf %650, %654 : vector<2x128xf32>
    %656 = math.exp %655 : vector<2x128xf32>
    %cst_228 = arith.constant dense<0.000000e+00> : vector<2x128xf32>
    %657 = tpu.matmul %656, %591, %cst_228 {dimension_numbers = #tpu.dot_dimension_numbers<[1], [0], [0], [1], [0, 0, 1, 1], [], []>} : vector<2x128xf32>, vector<128x128xf32>, vector<2x128xf32> -> vector<2x128xf32>
    %658 = vector.broadcast %590 : f32 to vector<2x1xf32>
    %659 = arith.addf %653, %658 : vector<2x1xf32>
    %cst_229 = arith.constant 1.000000e-30 : f32
    %660 = vector.broadcast %cst_229 : f32 to vector<2x128xf32>
    %661 = arith.addf %657, %660 : vector<2x128xf32>
    %662 = math.log %661 : vector<2x128xf32>
    %663 = vector.broadcast %659 : vector<2x1xf32> to vector<2x128xf32>
    %664 = arith.addf %663, %662 : vector<2x128xf32>
    %665 = arith.addf %664, %651 : vector<2x128xf32>
    %cst_230 = arith.constant -1.000000e+09 : f32
    %666 = vector.shape_cast %594 : vector<1x128xi1> to vector<1x128xi1>
    %667 = vector.broadcast %666 : vector<1x128xi1> to vector<2x128xi1>
    %668 = vector.broadcast %cst_230 : f32 to vector<2x128xf32>
    %669 = arith.select %667, %665, %668 : vector<2x128xi1>, vector<2x128xf32>
    %c3_231 = arith.constant 3 : index
    %c0_232 = arith.constant 0 : index
    %c0_233 = arith.constant 0 : index
    %670 = vector.load %arg5[%c3_231, %c0_232, %c0_233] : memref<8x2x1xf32, #tpu.memory_space<vmem>>, vector<1x2x1xf32>
    %671 = vector.shape_cast %670 : vector<1x2x1xf32> to vector<2x1xf32>
    %cst_234 = arith.constant 5.000000e-01 : f32
    %672 = vector.broadcast %cst_234 : f32 to vector<2x1xf32>
    %673 = arith.cmpf ogt, %671, %672 : vector<2x1xf32>
    %674 = vector.shape_cast %673 : vector<2x1xi1> to vector<2x1xi1>
    %675 = vector.broadcast %674 : vector<2x1xi1> to vector<2x128xi1>
    %676 = arith.select %675, %669, %650 : vector<2x128xi1>, vector<2x128xf32>
    %677 = vector.extract_strided_slice %582 {offsets = [8, 0], sizes = [2, 128], strides = [1, 1]} : vector<16x128xf32> to vector<2x128xf32>
    %cst_235 = arith.constant dense<0xFF800000> : vector<2xf32>
    %678 = vector.multi_reduction <maximumf>, %676, %cst_235 [1] : vector<2x128xf32> to vector<2xf32>
    %679 = vector.shape_cast %678 : vector<2xf32> to vector<2x1xf32>
    %680 = vector.broadcast %679 : vector<2x1xf32> to vector<2x128xf32>
    %681 = arith.subf %676, %680 : vector<2x128xf32>
    %682 = math.exp %681 : vector<2x128xf32>
    %cst_236 = arith.constant dense<0.000000e+00> : vector<2x128xf32>
    %683 = tpu.matmul %682, %591, %cst_236 {dimension_numbers = #tpu.dot_dimension_numbers<[1], [0], [0], [1], [0, 0, 1, 1], [], []>} : vector<2x128xf32>, vector<128x128xf32>, vector<2x128xf32> -> vector<2x128xf32>
    %684 = vector.broadcast %590 : f32 to vector<2x1xf32>
    %685 = arith.addf %679, %684 : vector<2x1xf32>
    %cst_237 = arith.constant 1.000000e-30 : f32
    %686 = vector.broadcast %cst_237 : f32 to vector<2x128xf32>
    %687 = arith.addf %683, %686 : vector<2x128xf32>
    %688 = math.log %687 : vector<2x128xf32>
    %689 = vector.broadcast %685 : vector<2x1xf32> to vector<2x128xf32>
    %690 = arith.addf %689, %688 : vector<2x128xf32>
    %691 = arith.addf %690, %677 : vector<2x128xf32>
    %cst_238 = arith.constant -1.000000e+09 : f32
    %692 = vector.shape_cast %594 : vector<1x128xi1> to vector<1x128xi1>
    %693 = vector.broadcast %692 : vector<1x128xi1> to vector<2x128xi1>
    %694 = vector.broadcast %cst_238 : f32 to vector<2x128xf32>
    %695 = arith.select %693, %691, %694 : vector<2x128xi1>, vector<2x128xf32>
    %c4_239 = arith.constant 4 : index
    %c0_240 = arith.constant 0 : index
    %c0_241 = arith.constant 0 : index
    %696 = vector.load %arg5[%c4_239, %c0_240, %c0_241] : memref<8x2x1xf32, #tpu.memory_space<vmem>>, vector<1x2x1xf32>
    %697 = vector.shape_cast %696 : vector<1x2x1xf32> to vector<2x1xf32>
    %cst_242 = arith.constant 5.000000e-01 : f32
    %698 = vector.broadcast %cst_242 : f32 to vector<2x1xf32>
    %699 = arith.cmpf ogt, %697, %698 : vector<2x1xf32>
    %700 = vector.shape_cast %699 : vector<2x1xi1> to vector<2x1xi1>
    %701 = vector.broadcast %700 : vector<2x1xi1> to vector<2x128xi1>
    %702 = arith.select %701, %695, %676 : vector<2x128xi1>, vector<2x128xf32>
    %703 = vector.extract_strided_slice %582 {offsets = [10, 0], sizes = [2, 128], strides = [1, 1]} : vector<16x128xf32> to vector<2x128xf32>
    %cst_243 = arith.constant dense<0xFF800000> : vector<2xf32>
    %704 = vector.multi_reduction <maximumf>, %702, %cst_243 [1] : vector<2x128xf32> to vector<2xf32>
    %705 = vector.shape_cast %704 : vector<2xf32> to vector<2x1xf32>
    %706 = vector.broadcast %705 : vector<2x1xf32> to vector<2x128xf32>
    %707 = arith.subf %702, %706 : vector<2x128xf32>
    %708 = math.exp %707 : vector<2x128xf32>
    %cst_244 = arith.constant dense<0.000000e+00> : vector<2x128xf32>
    %709 = tpu.matmul %708, %591, %cst_244 {dimension_numbers = #tpu.dot_dimension_numbers<[1], [0], [0], [1], [0, 0, 1, 1], [], []>} : vector<2x128xf32>, vector<128x128xf32>, vector<2x128xf32> -> vector<2x128xf32>
    %710 = vector.broadcast %590 : f32 to vector<2x1xf32>
    %711 = arith.addf %705, %710 : vector<2x1xf32>
    %cst_245 = arith.constant 1.000000e-30 : f32
    %712 = vector.broadcast %cst_245 : f32 to vector<2x128xf32>
    %713 = arith.addf %709, %712 : vector<2x128xf32>
    %714 = math.log %713 : vector<2x128xf32>
    %715 = vector.broadcast %711 : vector<2x1xf32> to vector<2x128xf32>
    %716 = arith.addf %715, %714 : vector<2x128xf32>
    %717 = arith.addf %716, %703 : vector<2x128xf32>
    %cst_246 = arith.constant -1.000000e+09 : f32
    %718 = vector.shape_cast %594 : vector<1x128xi1> to vector<1x128xi1>
    %719 = vector.broadcast %718 : vector<1x128xi1> to vector<2x128xi1>
    %720 = vector.broadcast %cst_246 : f32 to vector<2x128xf32>
    %721 = arith.select %719, %717, %720 : vector<2x128xi1>, vector<2x128xf32>
    %c5_247 = arith.constant 5 : index
    %c0_248 = arith.constant 0 : index
    %c0_249 = arith.constant 0 : index
    %722 = vector.load %arg5[%c5_247, %c0_248, %c0_249] : memref<8x2x1xf32, #tpu.memory_space<vmem>>, vector<1x2x1xf32>
    %723 = vector.shape_cast %722 : vector<1x2x1xf32> to vector<2x1xf32>
    %cst_250 = arith.constant 5.000000e-01 : f32
    %724 = vector.broadcast %cst_250 : f32 to vector<2x1xf32>
    %725 = arith.cmpf ogt, %723, %724 : vector<2x1xf32>
    %726 = vector.shape_cast %725 : vector<2x1xi1> to vector<2x1xi1>
    %727 = vector.broadcast %726 : vector<2x1xi1> to vector<2x128xi1>
    %728 = arith.select %727, %721, %702 : vector<2x128xi1>, vector<2x128xf32>
    %729 = vector.extract_strided_slice %582 {offsets = [12, 0], sizes = [2, 128], strides = [1, 1]} : vector<16x128xf32> to vector<2x128xf32>
    %cst_251 = arith.constant dense<0xFF800000> : vector<2xf32>
    %730 = vector.multi_reduction <maximumf>, %728, %cst_251 [1] : vector<2x128xf32> to vector<2xf32>
    %731 = vector.shape_cast %730 : vector<2xf32> to vector<2x1xf32>
    %732 = vector.broadcast %731 : vector<2x1xf32> to vector<2x128xf32>
    %733 = arith.subf %728, %732 : vector<2x128xf32>
    %734 = math.exp %733 : vector<2x128xf32>
    %cst_252 = arith.constant dense<0.000000e+00> : vector<2x128xf32>
    %735 = tpu.matmul %734, %591, %cst_252 {dimension_numbers = #tpu.dot_dimension_numbers<[1], [0], [0], [1], [0, 0, 1, 1], [], []>} : vector<2x128xf32>, vector<128x128xf32>, vector<2x128xf32> -> vector<2x128xf32>
    %736 = vector.broadcast %590 : f32 to vector<2x1xf32>
    %737 = arith.addf %731, %736 : vector<2x1xf32>
    %cst_253 = arith.constant 1.000000e-30 : f32
    %738 = vector.broadcast %cst_253 : f32 to vector<2x128xf32>
    %739 = arith.addf %735, %738 : vector<2x128xf32>
    %740 = math.log %739 : vector<2x128xf32>
    %741 = vector.broadcast %737 : vector<2x1xf32> to vector<2x128xf32>
    %742 = arith.addf %741, %740 : vector<2x128xf32>
    %743 = arith.addf %742, %729 : vector<2x128xf32>
    %cst_254 = arith.constant -1.000000e+09 : f32
    %744 = vector.shape_cast %594 : vector<1x128xi1> to vector<1x128xi1>
    %745 = vector.broadcast %744 : vector<1x128xi1> to vector<2x128xi1>
    %746 = vector.broadcast %cst_254 : f32 to vector<2x128xf32>
    %747 = arith.select %745, %743, %746 : vector<2x128xi1>, vector<2x128xf32>
    %c6_255 = arith.constant 6 : index
    %c0_256 = arith.constant 0 : index
    %c0_257 = arith.constant 0 : index
    %748 = vector.load %arg5[%c6_255, %c0_256, %c0_257] : memref<8x2x1xf32, #tpu.memory_space<vmem>>, vector<1x2x1xf32>
    %749 = vector.shape_cast %748 : vector<1x2x1xf32> to vector<2x1xf32>
    %cst_258 = arith.constant 5.000000e-01 : f32
    %750 = vector.broadcast %cst_258 : f32 to vector<2x1xf32>
    %751 = arith.cmpf ogt, %749, %750 : vector<2x1xf32>
    %752 = vector.shape_cast %751 : vector<2x1xi1> to vector<2x1xi1>
    %753 = vector.broadcast %752 : vector<2x1xi1> to vector<2x128xi1>
    %754 = arith.select %753, %747, %728 : vector<2x128xi1>, vector<2x128xf32>
    %755 = vector.extract_strided_slice %582 {offsets = [14, 0], sizes = [2, 128], strides = [1, 1]} : vector<16x128xf32> to vector<2x128xf32>
    %cst_259 = arith.constant dense<0xFF800000> : vector<2xf32>
    %756 = vector.multi_reduction <maximumf>, %754, %cst_259 [1] : vector<2x128xf32> to vector<2xf32>
    %757 = vector.shape_cast %756 : vector<2xf32> to vector<2x1xf32>
    %758 = vector.broadcast %757 : vector<2x1xf32> to vector<2x128xf32>
    %759 = arith.subf %754, %758 : vector<2x128xf32>
    %760 = math.exp %759 : vector<2x128xf32>
    %cst_260 = arith.constant dense<0.000000e+00> : vector<2x128xf32>
    %761 = tpu.matmul %760, %591, %cst_260 {dimension_numbers = #tpu.dot_dimension_numbers<[1], [0], [0], [1], [0, 0, 1, 1], [], []>} : vector<2x128xf32>, vector<128x128xf32>, vector<2x128xf32> -> vector<2x128xf32>
    %762 = vector.broadcast %590 : f32 to vector<2x1xf32>
    %763 = arith.addf %757, %762 : vector<2x1xf32>
    %cst_261 = arith.constant 1.000000e-30 : f32
    %764 = vector.broadcast %cst_261 : f32 to vector<2x128xf32>
    %765 = arith.addf %761, %764 : vector<2x128xf32>
    %766 = math.log %765 : vector<2x128xf32>
    %767 = vector.broadcast %763 : vector<2x1xf32> to vector<2x128xf32>
    %768 = arith.addf %767, %766 : vector<2x128xf32>
    %769 = arith.addf %768, %755 : vector<2x128xf32>
    %cst_262 = arith.constant -1.000000e+09 : f32
    %770 = vector.shape_cast %594 : vector<1x128xi1> to vector<1x128xi1>
    %771 = vector.broadcast %770 : vector<1x128xi1> to vector<2x128xi1>
    %772 = vector.broadcast %cst_262 : f32 to vector<2x128xf32>
    %773 = arith.select %771, %769, %772 : vector<2x128xi1>, vector<2x128xf32>
    %c7_263 = arith.constant 7 : index
    %c0_264 = arith.constant 0 : index
    %c0_265 = arith.constant 0 : index
    %774 = vector.load %arg5[%c7_263, %c0_264, %c0_265] : memref<8x2x1xf32, #tpu.memory_space<vmem>>, vector<1x2x1xf32>
    %775 = vector.shape_cast %774 : vector<1x2x1xf32> to vector<2x1xf32>
    %cst_266 = arith.constant 5.000000e-01 : f32
    %776 = vector.broadcast %cst_266 : f32 to vector<2x1xf32>
    %777 = arith.cmpf ogt, %775, %776 : vector<2x1xf32>
    %778 = vector.shape_cast %777 : vector<2x1xi1> to vector<2x1xi1>
    %779 = vector.broadcast %778 : vector<2x1xi1> to vector<2x128xi1>
    %780 = arith.select %779, %773, %754 : vector<2x128xi1>, vector<2x128xf32>
    %c0_267 = arith.constant 0 : index
    %c0_268 = arith.constant 0 : index
    %781 = vector.load %arg18[%c0_267, %c0_268] : memref<1x128xf32, #tpu.memory_space<vmem>>, vector<1x128xf32>
    %782 = vector.broadcast %781 : vector<1x128xf32> to vector<2x128xf32>
    %783 = arith.addf %780, %782 : vector<2x128xf32>
    %cst_269 = arith.constant dense<0xFF800000> : vector<2xf32>
    %784 = vector.multi_reduction <maximumf>, %783, %cst_269 [1] : vector<2x128xf32> to vector<2xf32>
    %785 = vector.shape_cast %784 : vector<2xf32> to vector<2x1xf32>
    %786 = vector.broadcast %785 : vector<2x1xf32> to vector<2x128xf32>
    %787 = arith.subf %783, %786 : vector<2x128xf32>
    %788 = math.exp %787 : vector<2x128xf32>
    %cst_270 = arith.constant dense<0.000000e+00> : vector<2xf32>
    %789 = vector.multi_reduction <add>, %788, %cst_270 [1] : vector<2x128xf32> to vector<2xf32>
    %790 = vector.shape_cast %789 : vector<2xf32> to vector<2x1xf32>
    %791 = math.log %790 : vector<2x1xf32>
    %792 = arith.addf %785, %791 : vector<2x1xf32>
    %cst_271 = arith.constant dense<0.000000e+00> : vector<1xf32>
    %793 = vector.multi_reduction <add>, %792, %cst_271 [0] : vector<2x1xf32> to vector<1xf32>
    %794 = vector.shape_cast %793 : vector<1xf32> to vector<1x1xf32>
    %795 = vector.broadcast %589 : f32 to vector<1x1xf32>
    %796 = arith.subf %794, %795 : vector<1x1xf32>
    %c0_272 = arith.constant 0 : index
    %c0_273 = arith.constant 0 : index
    %797 = vector.load %arg20[%c0_272, %c0_273] : memref<1x1xf32, #tpu.memory_space<vmem>>, vector<1x1xf32>
    tpu.vector_store %arg20[%c0_272, %c0_273], %796 {strides = array<i32>} : memref<1x1xf32, #tpu.memory_space<vmem>>, vector<1x1xf32>,
    return
  }
}

</mosaic_0001>

<llo_original>
// kernel: forward.1
$region0: #{forward.1}
  #allocation0 [shape = 'u32[]', space=smem, size = 0x4, offset = 0x4, fixed_abs, tag = 'smem constant byte address 0x4 - core index']
  #allocation1 [shape = 'u32[72,128]{1,0:T(1,128)}', space=vmem, size = 0x9000, scoped, tag = 'internal scratch']
  #allocation2 [shape = 'f32[16,32]{1,0:T(8,128)}', space=vmem, size = 0x2000, scoped, tag = 'scratch operand']
  #allocation3 [shape = 'f32[16,32]{1,0:T(8,128)}', space=vmem, size = 0x2000, scoped, tag = 'scratch operand']
  #allocation4 [shape = 'f32[1,1]{1,0:T(1,128)S(6)}', space=smem, size = 0x200, scoped, tag = 'scoped memory for forward.1']
  %s0 = inlined_call_operand.<no memory space> [shape: f32[1,1], index: 0, kind: input, shape index: {}]
  %s1 = inlined_call_operand.vmem [shape: f32[2,20,32], index: 1, kind: input, shape index: {}]
  %s2 = inlined_call_operand.vmem [shape: f32[2,20], index: 2, kind: input, shape index: {}]
  %s3 = inlined_call_operand.vmem [shape: f32[8,2,20], index: 3, kind: input, shape index: {}]
  %s4 = inlined_call_operand.vmem [shape: f32[8,2,1], index: 4, kind: input, shape index: {}]
  %s5 = inlined_call_operand.vmem [shape: f32[8,2,1], index: 5, kind: input, shape index: {}]
  %s6 = inlined_call_operand.vmem [shape: f32[16,128], index: 6, kind: input, shape index: {}]
  %s7 = inlined_call_operand.vmem [shape: bf16[32,96], index: 7, kind: input, shape index: {}]
  %s8 = inlined_call_operand.vmem [shape: bf16[32,32], index: 8, kind: input, shape index: {}]
  %s9 = inlined_call_operand.vmem [shape: bf16[32,128], index: 9, kind: input, shape index: {}]
  %s10 = inlined_call_operand.vmem [shape: bf16[128,32], index: 10, kind: input, shape index: {}]
  %s11 = inlined_call_operand.vmem [shape: bf16[32,128], index: 11, kind: input, shape index: {}]
  %s12 = inlined_call_operand.vmem [shape: f32[32,128], index: 12, kind: input, shape index: {}]
  %s13 = inlined_call_operand.vmem [shape: f32[1,128], index: 13, kind: input, shape index: {}]
  %s14 = inlined_call_operand.vmem [shape: bf16[32,128], index: 14, kind: input, shape index: {}]
  %s15 = inlined_call_operand.vmem [shape: f32[1,128], index: 15, kind: input, shape index: {}]
  %s16 = inlined_call_operand.vmem [shape: f32[128,128], index: 16, kind: input, shape index: {}]
  %s17 = inlined_call_operand.vmem [shape: f32[1,128], index: 17, kind: input, shape index: {}]
  %s18 = inlined_call_operand.vmem [shape: f32[1,128], index: 18, kind: input, shape index: {}]
  %s19 = inlined_call_operand.vmem [shape: f32[16,128], index: 19, kind: output, shape index: {0}]
  %s20 = inlined_call_operand.hbm [shape: f32[1,1], index: 20, kind: output, shape index: {1}]
  %21 = xla_tuple %s19, %s20
  %s22 = sld [smem:[#allocation0]]
  $region94: #{forward.1} parent=0
    _
  %s24 = ssub.s32 1, %s22
  %s25 = scalar_select 0, %s24, %s22
  %26 = sst [smem:[#allocation4]] %s0
  $region1: #{forward.1} parent=0
    #allocation5 [shape = 'u8[512]{0}', space=vmem, size = 0x400, scoped, tag = 'output window, operand 1, single buffered']
    #allocation6 [shape = 's32[1]{0}', space=sflag, size = 0x4, scoped, tag = 'scoped memory for forward.1']
    %27 = vsyncpa [#allocation6], 0
    // Predicated region
    $region2: #{forward.1} parent=1 // pred_check
      _
    $region3: #{forward.1} parent=1 // pred_check_branch
      %29 = sbr.rel (0) target = $region5
    $region4: #{forward.1} parent=1 // pred_region
      _
    $region5: #{forward.1} parent=1 // pred_fallthru
      _
    // Predicated region
    $region6: #{forward.1} parent=1 // pred_check
      _
    $region7: #{forward.1} parent=1 // pred_check_branch
      %31 = sbr.rel (0) target = $region9
    $region8: #{forward.1} parent=1 // pred_region
      _
    $region9: #{forward.1} parent=1 // pred_fallthru
      _
    // Predicated region
    $region10: #{forward.1} parent=1 // pred_check
      _
    $region11: #{forward.1} parent=1 // pred_check_branch
      %33 = sbr.rel (0) target = $region13
    $region12: #{forward.1} parent=1 // pred_region
      _
    $region13: #{forward.1} parent=1 // pred_fallthru
      _
    // Predicated region
    $region14: #{forward.1} parent=1 // pred_check
      _
    $region15: #{forward.1} parent=1 // pred_check_branch
      %35 = sbr.rel (0) target = $region17
    $region16: #{forward.1} parent=1 // pred_region
      _
    $region17: #{forward.1} parent=1 // pred_fallthru
      _
    // Predicated region
    $region18: #{forward.1} parent=1 // pred_check
      _
    $region19: #{forward.1} parent=1 // pred_check_branch
      %37 = sbr.rel (0) target = $region21
    $region20: #{forward.1} parent=1 // pred_region
      _
    $region21: #{forward.1} parent=1 // pred_fallthru
      _
    // Predicated region
    $region22: #{forward.1} parent=1 // pred_check
      _
    $region23: #{forward.1} parent=1 // pred_check_branch
      %39 = sbr.rel (0) target = $region25
    $region24: #{forward.1} parent=1 // pred_region
      _
    $region25: #{forward.1} parent=1 // pred_fallthru
      _
    // Predicated region
    $region26: #{forward.1} parent=1 // pred_check
      _
    $region27: #{forward.1} parent=1 // pred_check_branch
      %41 = sbr.rel (0) target = $region29
    $region28: #{forward.1} parent=1 // pred_region
      _
    $region29: #{forward.1} parent=1 // pred_fallthru
      _
    // Predicated region
    $region30: #{forward.1} parent=1 // pred_check
      _
    $region31: #{forward.1} parent=1 // pred_check_branch
      %43 = sbr.rel (0) target = $region33
    $region32: #{forward.1} parent=1 // pred_region
      _
    $region33: #{forward.1} parent=1 // pred_fallthru
      _
    // Predicated region
    $region34: #{forward.1} parent=1 // pred_check
      _
    $region35: #{forward.1} parent=1 // pred_check_branch
      %45 = sbr.rel (0) target = $region37
    $region36: #{forward.1} parent=1 // pred_region
      _
    $region37: #{forward.1} parent=1 // pred_fallthru
      _
    // Predicated region
    $region38: #{forward.1} parent=1 // pred_check
      _
    $region39: #{forward.1} parent=1 // pred_check_branch
      %47 = sbr.rel (0) target = $region41
    $region40: #{forward.1} parent=1 // pred_region
      _
    $region41: #{forward.1} parent=1 // pred_fallthru
      _
    // Predicated region
    $region42: #{forward.1} parent=1 // pred_check
      _
    $region43: #{forward.1} parent=1 // pred_check_branch
      %49 = sbr.rel (0) target = $region45
    $region44: #{forward.1} parent=1 // pred_region
      _
    $region45: #{forward.1} parent=1 // pred_fallthru
      _
    // Predicated region
    $region46: #{forward.1} parent=1 // pred_check
      _
    $region47: #{forward.1} parent=1 // pred_check_branch
      %51 = sbr.rel (0) target = $region49
    $region48: #{forward.1} parent=1 // pred_region
      _
    $region49: #{forward.1} parent=1 // pred_fallthru
      _
    // Predicated region
    $region50: #{forward.1} parent=1 // pred_check
      _
    $region51: #{forward.1} parent=1 // pred_check_branch
      %53 = sbr.rel (0) target = $region53
    $region52: #{forward.1} parent=1 // pred_region
      _
    $region53: #{forward.1} parent=1 // pred_fallthru
      _
    // Predicated region
    $region54: #{forward.1} parent=1 // pred_check
      _
    $region55: #{forward.1} parent=1 // pred_check_branch
      %55 = sbr.rel (0) target = $region57
    $region56: #{forward.1} parent=1 // pred_region
      _
    $region57: #{forward.1} parent=1 // pred_fallthru
      _
    // Predicated region
    $region58: #{forward.1} parent=1 // pred_check
      _
    $region59: #{forward.1} parent=1 // pred_check_branch
      %57 = sbr.rel (0) target = $region61
    $region60: #{forward.1} parent=1 // pred_region
      _
    $region61: #{forward.1} parent=1 // pred_fallthru
      _
    // Predicated region
    $region62: #{forward.1} parent=1 // pred_check
      _
    $region63: #{forward.1} parent=1 // pred_check_branch
      %59 = sbr.rel (0) target = $region65
    $region64: #{forward.1} parent=1 // pred_region
      _
    $region65: #{forward.1} parent=1 // pred_fallthru
      _
    // Predicated region
    $region66: #{forward.1} parent=1 // pred_check
      _
    $region67: #{forward.1} parent=1 // pred_check_branch
      %61 = sbr.rel (0) target = $region69
    $region68: #{forward.1} parent=1 // pred_region
      _
    $region69: #{forward.1} parent=1 // pred_fallthru
      _
    // Predicated region
    $region70: #{forward.1} parent=1 // pred_check
      _
    $region71: #{forward.1} parent=1 // pred_check_branch
      %63 = sbr.rel (0) target = $region73
    $region72: #{forward.1} parent=1 // pred_region
      _
    $region73: #{forward.1} parent=1 // pred_fallthru
      _
    // Predicated region
    $region74: #{forward.1} parent=1 // pred_check
      _
    $region75: #{forward.1} parent=1 // pred_check_branch
      %65 = sbr.rel (0) target = $region77
    $region76: #{forward.1} parent=1 // pred_region
      _
    $region77: #{forward.1} parent=1 // pred_fallthru
      _
    %v67 = vld [vmem:[%s1] sm:$0xff]
    %v68 = vld [vmem:[%s1 + $0x8] sm:$0xff]
    %v69 = vld [vmem:[%s1 + $0x10] sm:$0xf]
    %v70 = vld [vmem:[%s1 + $0x18] sm:$0xff]
    %v71 = vld [vmem:[%s1 + $0x20] sm:$0xff]
    %v72 = vld [vmem:[%s1 + $0x28] sm:$0xf]
    %v79 = vrot.slane %v67, 4
    %v80 = vrot.slane %v68, 4
    %v81 = vrot.slane %v70, 4
    %v82 = vrot.slane %v71, 4
    %87 = vst [vmem:[#allocation1] ss:$2 sm:$0xff] %v67
    %s88 = scalar_lea.vmem [#allocation1], 1
    %89 = vst [vmem:[%s88] ss:$2 sm:$0xff] %v79
    %s90 = scalar_lea.vmem [#allocation1], 16
    %91 = vst [vmem:[%s90] ss:$2 sm:$0xff] %v68
    %s92 = scalar_lea.vmem [#allocation1], 17
    %93 = vst [vmem:[%s92] ss:$2 sm:$0xff] %v80
    %s94 = scalar_lea.vmem [#allocation1], 32
    %95 = vst [vmem:[%s94] ss:$2 sm:$0xff] %v69
    %s96 = scalar_lea.vmem [#allocation1], 33
    %97 = vst [vmem:[%s96] ss:$2 sm:$0xff] %v70
    %s98 = scalar_lea.vmem [#allocation1], 48
    %99 = vst [vmem:[%s98] ss:$2 sm:$0xff] %v81
    %s100 = scalar_lea.vmem [#allocation1], 49
    %101 = vst [vmem:[%s100] ss:$2 sm:$0xff] %v71
    %v102 = vld.sshfl [vmem:[#allocation1] sm:$0xff pattern:$0x75316420]
    %v103 = vld.sshfl [vmem:[#allocation1 + $0x10] sm:$0xff pattern:$0x75316420]
    %v104 = vld.sshfl [vmem:[#allocation1 + $0x20] sm:$0xff pattern:$0x75316420]
    %v105 = vld.sshfl [vmem:[#allocation1 + $0x30] sm:$0xff pattern:$0x75316420]
    %106 = vst [vmem:[#allocation1] ss:$2 sm:$0xff] %v82
    %107 = vst [vmem:[%s88] ss:$2 sm:$0xff] %v72
    %v108 = vld.sshfl [vmem:[#allocation1] sm:$0xff pattern:$0x75316420]
    %v114 = vpack.c.bf16 %v103, %v102
    %v115 = vpack.c.bf16 %v105, %v104
    %v116 = vpack.c.bf16 %v108, %v108
    %v117 = vld [vmem:[%s7] sm:$0xf]
    %v118 = vld [vmem:[%s7 + $0x4] sm:$0xf]
    %v119 = vld [vmem:[%s7 + $0x8] sm:$0xf]
    %v120 = vld [vmem:[%s7 + $0xc] sm:$0xf]
    %v125 = vunpack.c.l.b16 %v117
    %v126 = vunpack.c.l.b16 %v118
    %v127 = vunpack.c.l.b16 %v119
    %v128 = vunpack.c.l.b16 %v120
    %v129 = vpack.c.b16 %v126, %v125
    %v130 = vpack.c.b16 %v128, %v127
    %vm133 = vcmask 261120
    %v135 = vsel %vm133, %v114, 0
    %v138 = vsel %vm133, %v115, 0
    %v141 = vsel %vm133, %v116, 0
    %143 = vmatpush.bf16.msra.mxu0 0
    %144 = vmatpush.bf16.msra.mxu0 0
    %145 = vmatpush.bf16.msra.mxu0 0
    %146 = vmatpush.bf16.msra.mxu0 0
    %147 = vmatpush.bf16.msra.mxu0 0
    %148 = vmatpush.bf16.msra.mxu0 0
    %149 = vmatpush.bf16.msra.mxu0 %v130
    %150 = vmatpush.bf16.msra.mxu0 %v129
    %151 = vmatmul.bf16.gmra.mxu0 %v135
    %v152 = vpop.f32.mrf.mxu0
    %v153 = vadd.f32 0.0, %v152
    %v154 = vpop.f32.mrf.mxu0
    %v155 = vadd.f32 0.0, %v154
    %156 = vmatmul.bf16.gmra.mxu0 %v138
    %v157 = vpop.f32.mrf.mxu0
    %v158 = vadd.f32 0.0, %v157
    %v159 = vpop.f32.mrf.mxu0
    %v160 = vadd.f32 0.0, %v159
    %161 = vmatmul.bf16.gmra.mxu0 %v141
    %v162 = vpop.f32.mrf.mxu0
    %v163 = vadd.f32 0.0, %v162
    %v164 = vpop.f32.mrf.mxu0
    %165 = vdwg.mxu0
    %v171 = vrot.slane %v153, 4
    %v172 = vrot.slane %v155, 4
    %v173 = vrot.slane %v158, 4
    %v174 = vrot.slane %v160, 4
    %v175 = vrot.slane %v163, 4
    %v176 = vld [vmem:[%s2] sm:$0x3]
    %v177 = vsub.f32 1.0, %v176
    %v178 = vmul.f32 %v177, -1e+09
    %v180 = vrot.slane %v178, 1
    %181 = vst [vmem:[#allocation1] ss:$2 sm:$0xff] %v153
    %s182 = scalar_lea.vmem [#allocation1], 1
    %183 = vst [vmem:[%s182] ss:$2 sm:$0xff] %v171
    %s184 = scalar_lea.vmem [#allocation1], 16
    %185 = vst [vmem:[%s184] ss:$2 sm:$0xff] %v155
    %s186 = scalar_lea.vmem [#allocation1], 17
    %187 = vst [vmem:[%s186] ss:$2 sm:$0xff] %v172
    %s188 = scalar_lea.vmem [#allocation1], 32
    %189 = vst [vmem:[%s188] ss:$2 sm:$0xff] %v158
    %v190 = vld.sshfl [vmem:[#allocation1] sm:$0xff pattern:$0x75316420]
    %v191 = vld.sshfl [vmem:[#allocation1 + $0x10] sm:$0xff pattern:$0x75316420]
    %v192 = vld.sshfl [vmem:[#allocation1 + $0x20] sm:$0xff pattern:$0x75316420]
    %s193 = scalar_lea.vmem [#allocation1], 48
    %194 = vst [vmem:[%s193] ss:$2 sm:$0xff] %v173
    %s195 = scalar_lea.vmem [#allocation1], 49
    %196 = vst [vmem:[%s195] ss:$2 sm:$0xff] %v160
    %v197 = vld.sshfl [vmem:[#allocation1 + $0x30] sm:$0xff pattern:$0x75316420]
    %198 = vst [vmem:[#allocation1] ss:$2 sm:$0xff] %v174
    %199 = vst [vmem:[%s182] ss:$2 sm:$0xff] %v163
    %200 = vst [vmem:[%s184] ss:$2 sm:$0xff] %v175
    %v201 = vld.sshfl [vmem:[#allocation1] sm:$0xff pattern:$0x75316420]
    %v202 = vld.sshfl [vmem:[#allocation1 + $0x10] sm:$0xff pattern:$0x75316420]
    %v209 = vpack.c.bf16 %v190, %v190
    %v210 = vpack.c.bf16 %v191, %v191
    %v211 = vpack.c.bf16 %v192, %v192
    %v212 = vpack.c.bf16 %v197, %v197
    %v213 = vpack.c.bf16 %v201, %v201
    %v214 = vpack.c.bf16 %v202, %v202
    %215 = vst [vmem:[#allocation1] ss:$2 sm:$0xff] %v153
    %s216 = scalar_lea.vmem [#allocation1], 1
    %217 = vst [vmem:[%s216] ss:$2 sm:$0xff] %v171
    %s218 = scalar_lea.vmem [#allocation1], 16
    %219 = vst [vmem:[%s218] ss:$2 sm:$0xff] %v155
    %s220 = scalar_lea.vmem [#allocation1], 17
    %221 = vst [vmem:[%s220] ss:$2 sm:$0xff] %v172
    %s222 = scalar_lea.vmem [#allocation1], 32
    %223 = vst [vmem:[%s222] ss:$2 sm:$0xff] %v158
    %v224 = vld.sshfl [vmem:[#allocation1] sm:$0xff pattern:$0x75316420]
    %v225 = vld.sshfl [vmem:[#allocation1 + $0x10] sm:$0xff pattern:$0x75316420]
    %v226 = vld.sshfl [vmem:[#allocation1 + $0x20] sm:$0xff pattern:$0x75316420]
    %s227 = scalar_lea.vmem [#allocation1], 48
    %228 = vst [vmem:[%s227] ss:$2 sm:$0xff] %v173
    %s229 = scalar_lea.vmem [#allocation1], 49
    %230 = vst [vmem:[%s229] ss:$2 sm:$0xff] %v160
    %v231 = vld.sshfl [vmem:[#allocation1 + $0x30] sm:$0xff pattern:$0x75316420]
    %232 = vst [vmem:[#allocation1] ss:$2 sm:$0xff] %v174
    %233 = vst [vmem:[%s216] ss:$2 sm:$0xff] %v163
    %234 = vst [vmem:[%s218] ss:$2 sm:$0xff] %v175
    %v235 = vld.sshfl [vmem:[#allocation1] sm:$0xff pattern:$0x75316420]
    %v236 = vld.sshfl [vmem:[#allocation1 + $0x10] sm:$0xff pattern:$0x75316420]
    %v243 = vpack.c.bf16 %v224, %v224
    %v244 = vpack.c.bf16 %v225, %v225
    %v245 = vpack.c.bf16 %v226, %v226
    %v246 = vpack.c.bf16 %v231, %v231
    %v247 = vpack.c.bf16 %v235, %v235
    %v248 = vpack.c.bf16 %v236, %v236
    %v252 = vunpack.c.l.b16 %v209
    %v253 = vunpack.c.l.b16 %v210
    %v254 = vunpack.c.l.b16 %v211
    %v255 = vpack.c.b16 %v253, %v252
    %v256 = vpack.c.b16 %v254, %v254
    %v260 = vunpack.c.l.b16 %v243
    %v261 = vunpack.c.l.b16 %v244
    %v262 = vunpack.c.l.b16 %v245
    %v263 = vpack.c.b16 %v261, %v260
    %v264 = vpack.c.b16 %v262, %v262
    %265 = vrot.lane.b32.xlu0 %v263, 96
    %v266 = vpop.permute.xlu0 %265
    %267 = vrot.lane.b32.xlu0 %v264, 96
    %v268 = vpop.permute.xlu0 %267
    %v270 = vsel %vm133, %v255, 0
    %v273 = vsel %vm133, %v256, 0
    %v276 = vsel %vm133, %v266, 0
    %v279 = vsel %vm133, %v268, 0
    %281 = vmatpush.bf16.xpose.msra.mxu0 0
    %282 = vmatpush.bf16.xpose.msra.mxu0 0
    %283 = vmatpush.bf16.xpose.msra.mxu0 0
    %284 = vmatpush.bf16.xpose.msra.mxu0 0
    %285 = vmatpush.bf16.xpose.msra.mxu0 0
    %286 = vmatpush.bf16.xpose.msra.mxu0 0
    %287 = vmatpush.bf16.xpose.msra.mxu0 %v279
    %288 = vmatpush.bf16.xpose.msra.mxu0 %v276
    %289 = vmatmul.bf16.gmra.mxu0 %v270
    %v290 = vpop.f32.mrf.mxu0
    %v291 = vadd.f32 0.0, %v290
    %v292 = vpop.f32.mrf.mxu0
    %v293 = vadd.f32 0.0, %v292
    %294 = vmatmul.bf16.gmra.mxu0 %v273
    %v295 = vpop.f32.mrf.mxu0
    %v296 = vadd.f32 0.0, %v295
    %v297 = vpop.f32.mrf.mxu0
    %298 = vdwg.mxu0
    %v302 = vunpack.c.l.b16 %v212
    %v303 = vunpack.c.l.b16 %v213
    %v304 = vunpack.c.l.b16 %v214
    %v305 = vpack.c.b16 %v303, %v302
    %v306 = vpack.c.b16 %v304, %v304
    %v310 = vunpack.c.l.b16 %v246
    %v311 = vunpack.c.l.b16 %v247
    %v312 = vunpack.c.l.b16 %v248
    %v313 = vpack.c.b16 %v311, %v310
    %v314 = vpack.c.b16 %v312, %v312
    %315 = vrot.lane.b32.xlu0 %v313, 96
    %v316 = vpop.permute.xlu0 %315
    %317 = vrot.lane.b32.xlu0 %v314, 96
    %v318 = vpop.permute.xlu0 %317
    %v320 = vsel %vm133, %v305, 0
    %v323 = vsel %vm133, %v306, 0
    %v326 = vsel %vm133, %v316, 0
    %v329 = vsel %vm133, %v318, 0
    %331 = vmatpush.bf16.xpose.msra.mxu0 0
    %332 = vmatpush.bf16.xpose.msra.mxu0 0
    %333 = vmatpush.bf16.xpose.msra.mxu0 0
    %334 = vmatpush.bf16.xpose.msra.mxu0 0
    %335 = vmatpush.bf16.xpose.msra.mxu0 0
    %336 = vmatpush.bf16.xpose.msra.mxu0 0
    %337 = vmatpush.bf16.xpose.msra.mxu0 %v329
    %338 = vmatpush.bf16.xpose.msra.mxu0 %v326
    %339 = vmatmul.bf16.gmra.mxu0 %v320
    %v340 = vpop.f32.mrf.mxu0
    %v341 = vadd.f32 0.0, %v340
    %v342 = vpop.f32.mrf.mxu0
    %v343 = vadd.f32 0.0, %v342
    %344 = vmatmul.bf16.gmra.mxu0 %v323
    %v345 = vpop.f32.mrf.mxu0
    %v346 = vadd.f32 0.0, %v345
    %v347 = vpop.f32.mrf.mxu0
    %348 = vdwg.mxu0
    %v349 = vmul.f32 %v291, 0.17677669
    %v350 = vmul.f32 %v293, 0.17677669
    %v351 = vmul.f32 %v296, 0.17677669
    %v352 = vmul.f32 %v341, 0.17677669
    %v353 = vmul.f32 %v343, 0.17677669
    %v354 = vmul.f32 %v346, 0.17677669
    %v355 = vperm.slane %v178, 0
    %v356 = vperm.slane %v180, 0
    %v359 = vadd.f32 %v349, %v355
    %v360 = vadd.f32 %v350, %v355
    %v361 = vadd.f32 %v351, %v355
    %v362 = vadd.f32 %v352, %v356
    %v363 = vadd.f32 %v353, %v356
    %v364 = vadd.f32 %v354, %v356
    %vm365 = vcmask 162816
    %v366 = vsel %vm365, %v359, -inf
    %367 = vmax.xlane.f32.xlu0 %v366
    %v368 = vpop.xlane.xlu0 %367
    %v369 = vsel %vm365, %v360, -inf
    %370 = vmax.xlane.f32.xlu0 %v369
    %v371 = vpop.xlane.xlu0 %370
    %vm372 = vcmask 158720
    %v373 = vsel %vm372, %v361, -inf
    %374 = vmax.xlane.f32.xlu0 %v373
    %v375 = vpop.xlane.xlu0 %374
    %v376 = vsel %vm365, %v362, -inf
    %377 = vmax.xlane.f32.xlu0 %v376
    %v378 = vpop.xlane.xlu0 %377
    %v379 = vsel %vm365, %v363, -inf
    %380 = vmax.xlane.f32.xlu0 %v379
    %v381 = vpop.xlane.xlu0 %380
    %v382 = vsel %vm372, %v364, -inf
    %383 = vmax.xlane.f32.xlu0 %v382
    %v384 = vpop.xlane.xlu0 %383
    %v385 = vsub.f32 %v359, %v368
    %v386 = vsub.f32 %v360, %v371
    %v387 = vsub.f32 %v361, %v375
    %v388 = vsub.f32 %v362, %v378
    %v389 = vsub.f32 %v363, %v381
    %v390 = vsub.f32 %v364, %v384
    %v391 = vmul.f32 %v385, 1.442695
    %v392 = vpow.pop %v391
    %v393 = vmul.f32 %v386, 1.442695
    %v394 = vpow.pop %v393
    %v395 = vmul.f32 %v387, 1.442695
    %v396 = vpow.pop %v395
    %v397 = vmul.f32 %v388, 1.442695
    %v398 = vpow.pop %v397
    %v399 = vmul.f32 %v389, 1.442695
    %v400 = vpow.pop %v399
    %v401 = vmul.f32 %v390, 1.442695
    %v402 = vpow.pop %v401
    %v403 = vsel %vm365, %v392, 0.0
    %404 = vadd.xlane.f32.xlu0 %v403
    %v405 = vpop.xlane.xlu0 %404
    %v406 = vsel %vm365, %v394, 0.0
    %407 = vadd.xlane.f32.xlu0 %v406
    %v408 = vpop.xlane.xlu0 %407
    %v409 = vsel %vm372, %v396, 0.0
    %410 = vadd.xlane.f32.xlu0 %v409
    %v411 = vpop.xlane.xlu0 %410
    %v412 = vsel %vm365, %v398, 0.0
    %413 = vadd.xlane.f32.xlu0 %v412
    %v414 = vpop.xlane.xlu0 %413
    %v415 = vsel %vm365, %v400, 0.0
    %416 = vadd.xlane.f32.xlu0 %v415
    %v417 = vpop.xlane.xlu0 %416
    %v418 = vsel %vm372, %v402, 0.0
    %419 = vadd.xlane.f32.xlu0 %v418
    %v420 = vpop.xlane.xlu0 %419
    %v421 = vrcp.pop %v405
    %v422 = vrcp.pop %v408
    %v423 = vrcp.pop %v411
    %v424 = vrcp.pop %v414
    %v425 = vrcp.pop %v417
    %v426 = vrcp.pop %v420
    %v427 = vmul.f32 %v392, %v421
    %v428 = vmul.f32 %v394, %v422
    %v429 = vmul.f32 %v396, %v423
    %v430 = vmul.f32 %v398, %v424
    %v431 = vmul.f32 %v400, %v425
    %v432 = vmul.f32 %v402, %v426
    %v433 = vpack.c.bf16 %v427, %v427
    %v434 = vpack.c.bf16 %v428, %v428
    %v435 = vpack.c.bf16 %v429, %v429
    %v436 = vpack.c.bf16 %v430, %v430
    %v437 = vpack.c.bf16 %v431, %v431
    %v438 = vpack.c.bf16 %v432, %v432
    %439 = vst [vmem:[#allocation1] ss:$2 sm:$0xff] %v153
    %s440 = scalar_lea.vmem [#allocation1], 1
    %441 = vst [vmem:[%s440] ss:$2 sm:$0xff] %v171
    %s442 = scalar_lea.vmem [#allocation1], 16
    %443 = vst [vmem:[%s442] ss:$2 sm:$0xff] %v155
    %s444 = scalar_lea.vmem [#allocation1], 17
    %445 = vst [vmem:[%s444] ss:$2 sm:$0xff] %v172
    %s446 = scalar_lea.vmem [#allocation1], 32
    %447 = vst [vmem:[%s446] ss:$2 sm:$0xff] %v158
    %v448 = vld.sshfl [vmem:[#allocation1] sm:$0xff pattern:$0x75316420]
    %v449 = vld.sshfl [vmem:[#allocation1 + $0x10] sm:$0xff pattern:$0x75316420]
    %v450 = vld.sshfl [vmem:[#allocation1 + $0x20] sm:$0xff pattern:$0x75316420]
    %s451 = scalar_lea.vmem [#allocation1], 48
    %452 = vst [vmem:[%s451] ss:$2 sm:$0xff] %v173
    %s453 = scalar_lea.vmem [#allocation1], 49
    %454 = vst [vmem:[%s453] ss:$2 sm:$0xff] %v160
    %v455 = vld.sshfl [vmem:[#allocation1 + $0x30] sm:$0xff pattern:$0x75316420]
    %456 = vst [vmem:[#allocation1] ss:$2 sm:$0xff] %v174
    %457 = vst [vmem:[%s440] ss:$2 sm:$0xff] %v163
    %458 = vst [vmem:[%s442] ss:$2 sm:$0xff] %v175
    %v459 = vld.sshfl [vmem:[#allocation1] sm:$0xff pattern:$0x75316420]
    %v460 = vld.sshfl [vmem:[#allocation1 + $0x10] sm:$0xff pattern:$0x75316420]
    %v467 = vpack.c.bf16 %v448, %v448
    %v468 = vpack.c.bf16 %v449, %v449
    %v469 = vpack.c.bf16 %v450, %v450
    %v470 = vpack.c.bf16 %v455, %v455
    %v471 = vpack.c.bf16 %v459, %v459
    %v472 = vpack.c.bf16 %v460, %v460
    %v476 = vunpack.c.l.b16 %v433
    %v477 = vunpack.c.l.b16 %v434
    %v478 = vunpack.c.l.b16 %v435
    %v479 = vpack.c.b16 %v477, %v476
    %v480 = vpack.c.b16 %v478, %v478
    %v484 = vunpack.c.l.b16 %v467
    %v485 = vunpack.c.l.b16 %v468
    %v486 = vunpack.c.l.b16 %v469
    %v487 = vpack.c.b16 %v485, %v484
    %v488 = vpack.c.b16 %v486, %v486
    %489 = vrot.lane.b32.xlu0 %v487, 64
    %v490 = vpop.permute.xlu0 %489
    %491 = vrot.lane.b32.xlu0 %v488, 64
    %v492 = vpop.permute.xlu0 %491
    %v495 = vsel %vm365, %v479, 0
    %v498 = vsel %vm365, %v480, 0
    %vm500 = vcmask 1041408
    %v502 = vsel %vm500, %v492, 0
    %504 = vmatpush.bf16.msra.mxu0 0
    %505 = vmatpush.bf16.msra.mxu0 0
    %506 = vmatpush.bf16.msra.mxu0 0
    %507 = vmatpush.bf16.msra.mxu0 0
    %508 = vmatpush.bf16.msra.mxu0 0
    %509 = vmatpush.bf16.msra.mxu0 0
    %510 = vmatpush.bf16.msra.mxu0 %v502
    %511 = vmatpush.bf16.msra.mxu0 %v490
    %512 = vmatmul.bf16.gmra.mxu0 %v495
    %v513 = vpop.f32.mrf.mxu0
    %v514 = vadd.f32 0.0, %v513
    %v515 = vpop.f32.mrf.mxu0
    %v516 = vadd.f32 0.0, %v515
    %517 = vmatmul.bf16.gmra.mxu0 %v498
    %v518 = vpop.f32.mrf.mxu0
    %v519 = vadd.f32 0.0, %v518
    %v520 = vpop.f32.mrf.mxu0
    %521 = vdwg.mxu0
    %v525 = vunpack.c.l.b16 %v436
    %v526 = vunpack.c.l.b16 %v437
    %v527 = vunpack.c.l.b16 %v438
    %v528 = vpack.c.b16 %v526, %v525
    %v529 = vpack.c.b16 %v527, %v527
    %v533 = vunpack.c.l.b16 %v470
    %v534 = vunpack.c.l.b16 %v471
    %v535 = vunpack.c.l.b16 %v472
    %v536 = vpack.c.b16 %v534, %v533
    %v537 = vpack.c.b16 %v535, %v535
    %538 = vrot.lane.b32.xlu0 %v536, 64
    %v539 = vpop.permute.xlu0 %538
    %540 = vrot.lane.b32.xlu0 %v537, 64
    %v541 = vpop.permute.xlu0 %540
    %v544 = vsel %vm365, %v528, 0
    %v547 = vsel %vm365, %v529, 0
    %v550 = vsel %vm500, %v541, 0
    %552 = vmatpush.bf16.msra.mxu0 0
    %553 = vmatpush.bf16.msra.mxu0 0
    %554 = vmatpush.bf16.msra.mxu0 0
    %555 = vmatpush.bf16.msra.mxu0 0
    %556 = vmatpush.bf16.msra.mxu0 0
    %557 = vmatpush.bf16.msra.mxu0 0
    %558 = vmatpush.bf16.msra.mxu0 %v550
    %559 = vmatpush.bf16.msra.mxu0 %v539
    %560 = vmatmul.bf16.gmra.mxu0 %v544
    %v561 = vpop.f32.mrf.mxu0
    %v562 = vadd.f32 0.0, %v561
    %v563 = vpop.f32.mrf.mxu0
    %v564 = vadd.f32 0.0, %v563
    %565 = vmatmul.bf16.gmra.mxu0 %v547
    %v566 = vpop.f32.mrf.mxu0
    %v567 = vadd.f32 0.0, %v566
    %v568 = vpop.f32.mrf.mxu0
    %569 = vdwg.mxu0
    %v576 = vrot.slane %v514, 4
    %v577 = vrot.slane %v516, 4
    %v578 = vrot.slane %v562, 4
    %v579 = vrot.slane %v564, 4
    %580 = vst [vmem:[#allocation1] ss:$2 sm:$0xff] %v514
    %s581 = scalar_lea.vmem [#allocation1], 1
    %582 = vst [vmem:[%s581] ss:$2 sm:$0xff] %v576
    %s583 = scalar_lea.vmem [#allocation1], 16
    %584 = vst [vmem:[%s583] ss:$2 sm:$0xff] %v516
    %s585 = scalar_lea.vmem [#allocation1], 17
    %586 = vst [vmem:[%s585] ss:$2 sm:$0xff] %v577
    %s587 = scalar_lea.vmem [#allocation1], 32
    %588 = vst [vmem:[%s587] ss:$2 sm:$0xff] %v519
    %s589 = scalar_lea.vmem [#allocation1], 33
    %590 = vst [vmem:[%s589] ss:$2 sm:$0xff] %v562
    %s591 = scalar_lea.vmem [#allocation1], 48
    %592 = vst [vmem:[%s591] ss:$2 sm:$0xff] %v578
    %s593 = scalar_lea.vmem [#allocation1], 49
    %594 = vst [vmem:[%s593] ss:$2 sm:$0xff] %v564
    %v595 = vld.sshfl [vmem:[#allocation1] sm:$0xff pattern:$0x75316420]
    %v596 = vld.sshfl [vmem:[#allocation1 + $0x10] sm:$0xff pattern:$0x75316420]
    %v597 = vld.sshfl [vmem:[#allocation1 + $0x20] sm:$0xff pattern:$0x75316420]
    %v598 = vld.sshfl [vmem:[#allocation1 + $0x30] sm:$0xff pattern:$0x75316420]
    %599 = vst [vmem:[#allocation1] ss:$2 sm:$0xff] %v579
    %600 = vst [vmem:[%s581] ss:$2 sm:$0xff] %v567
    %v601 = vld.sshfl [vmem:[#allocation1] sm:$0xff pattern:$0x75316420]
    %v607 = vpack.c.bf16 %v596, %v595
    %v608 = vpack.c.bf16 %v598, %v597
    %v609 = vpack.c.bf16 %v601, %v601
    %v610 = vld [vmem:[%s8] sm:$0xf]
    %v611 = vld [vmem:[%s8 + $0x4] sm:$0xf]
    %v612 = vld [vmem:[%s8 + $0x8] sm:$0xf]
    %v613 = vld [vmem:[%s8 + $0xc] sm:$0xf]
    %v618 = vunpack.c.l.b16 %v610
    %v619 = vunpack.c.l.b16 %v611
    %v620 = vunpack.c.l.b16 %v612
    %v621 = vunpack.c.l.b16 %v613
    %v622 = vpack.c.b16 %v619, %v618
    %v623 = vpack.c.b16 %v621, %v620
    %v627 = vsel %vm133, %v607, 0
    %v630 = vsel %vm133, %v608, 0
    %v633 = vsel %vm133, %v609, 0
    %635 = vmatpush.bf16.msra.mxu0 0
    %636 = vmatpush.bf16.msra.mxu0 0
    %637 = vmatpush.bf16.msra.mxu0 0
    %638 = vmatpush.bf16.msra.mxu0 0
    %639 = vmatpush.bf16.msra.mxu0 0
    %640 = vmatpush.bf16.msra.mxu0 0
    %641 = vmatpush.bf16.msra.mxu0 %v623
    %642 = vmatpush.bf16.msra.mxu0 %v622
    %643 = vmatmul.bf16.gmra.mxu0 %v627
    %v644 = vpop.f32.mrf.mxu0
    %v645 = vadd.f32 0.0, %v644
    %v646 = vpop.f32.mrf.mxu0
    %v647 = vadd.f32 0.0, %v646
    %648 = vmatmul.bf16.gmra.mxu0 %v630
    %v649 = vpop.f32.mrf.mxu0
    %v650 = vadd.f32 0.0, %v649
    %v651 = vpop.f32.mrf.mxu0
    %v652 = vadd.f32 0.0, %v651
    %653 = vmatmul.bf16.gmra.mxu0 %v633
    %v654 = vpop.f32.mrf.mxu0
    %v655 = vadd.f32 0.0, %v654
    %v656 = vpop.f32.mrf.mxu0
    %657 = vdwg.mxu0
    %v663 = vrot.slane %v645, 4
    %v664 = vrot.slane %v647, 4
    %v665 = vrot.slane %v650, 4
    %v666 = vrot.slane %v652, 4
    %v667 = vrot.slane %v655, 4
    %v673 = vadd.f32 %v67, %v645
    %v674 = vadd.f32 %v79, %v663
    %v675 = vadd.f32 %v68, %v647
    %v676 = vadd.f32 %v80, %v664
    %v677 = vadd.f32 %v69, %v650
    %v678 = vadd.f32 %v70, %v665
    %v679 = vadd.f32 %v81, %v652
    %v680 = vadd.f32 %v71, %v666
    %v681 = vadd.f32 %v82, %v655
    %v682 = vadd.f32 %v72, %v667
    %693 = vst [vmem:[#allocation1] ss:$2 sm:$0xff] %v673
    %s694 = scalar_lea.vmem [#allocation1], 1
    %695 = vst [vmem:[%s694] ss:$2 sm:$0xff] %v674
    %s696 = scalar_lea.vmem [#allocation1], 16
    %697 = vst [vmem:[%s696] ss:$2 sm:$0xff] %v675
    %s698 = scalar_lea.vmem [#allocation1], 17
    %699 = vst [vmem:[%s698] ss:$2 sm:$0xff] %v676
    %s700 = scalar_lea.vmem [#allocation1], 32
    %701 = vst [vmem:[%s700] ss:$2 sm:$0xff] %v677
    %s702 = scalar_lea.vmem [#allocation1], 33
    %703 = vst [vmem:[%s702] ss:$2 sm:$0xff] %v678
    %s704 = scalar_lea.vmem [#allocation1], 48
    %705 = vst [vmem:[%s704] ss:$2 sm:$0xff] %v679
    %s706 = scalar_lea.vmem [#allocation1], 49
    %707 = vst [vmem:[%s706] ss:$2 sm:$0xff] %v680
    %v708 = vld.sshfl [vmem:[#allocation1] sm:$0xff pattern:$0x75316420]
    %v709 = vld.sshfl [vmem:[#allocation1 + $0x10] sm:$0xff pattern:$0x75316420]
    %v710 = vld.sshfl [vmem:[#allocation1 + $0x20] sm:$0xff pattern:$0x75316420]
    %v711 = vld.sshfl [vmem:[#allocation1 + $0x30] sm:$0xff pattern:$0x75316420]
    %712 = vst [vmem:[#allocation1] ss:$2 sm:$0xff] %v681
    %713 = vst [vmem:[%s694] ss:$2 sm:$0xff] %v682
    %v714 = vld.sshfl [vmem:[#allocation1] sm:$0xff pattern:$0x75316420]
    %v720 = vpack.c.bf16 %v709, %v708
    %v721 = vpack.c.bf16 %v711, %v710
    %v722 = vpack.c.bf16 %v714, %v714
    %v723 = vld [vmem:[%s9] sm:$0xf]
    %v724 = vld [vmem:[%s9 + $0x4] sm:$0xf]
    %v725 = vld [vmem:[%s9 + $0x8] sm:$0xf]
    %v726 = vld [vmem:[%s9 + $0xc] sm:$0xf]
    %v731 = vunpack.c.l.b16 %v723
    %v732 = vunpack.c.l.b16 %v724
    %v733 = vunpack.c.l.b16 %v725
    %v734 = vunpack.c.l.b16 %v726
    %v735 = vpack.c.b16 %v732, %v731
    %v736 = vpack.c.b16 %v734, %v733
    %v740 = vsel %vm133, %v720, 0
    %v743 = vsel %vm133, %v721, 0
    %v746 = vsel %vm133, %v722, 0
    %748 = vmatpush.bf16.msra.mxu0 0
    %749 = vmatpush.bf16.msra.mxu0 0
    %750 = vmatpush.bf16.msra.mxu0 0
    %751 = vmatpush.bf16.msra.mxu0 0
    %752 = vmatpush.bf16.msra.mxu0 0
    %753 = vmatpush.bf16.msra.mxu0 0
    %754 = vmatpush.bf16.msra.mxu0 %v736
    %755 = vmatpush.bf16.msra.mxu0 %v735
    %756 = vmatmul.bf16.gmra.mxu0 %v740
    %v757 = vpop.f32.mrf.mxu0
    %v758 = vadd.f32 0.0, %v757
    %v759 = vpop.f32.mrf.mxu0
    %v760 = vadd.f32 0.0, %v759
    %761 = vmatmul.bf16.gmra.mxu0 %v743
    %v762 = vpop.f32.mrf.mxu0
    %v763 = vadd.f32 0.0, %v762
    %v764 = vpop.f32.mrf.mxu0
    %v765 = vadd.f32 0.0, %v764
    %766 = vmatmul.bf16.gmra.mxu0 %v746
    %v767 = vpop.f32.mrf.mxu0
    %v768 = vadd.f32 0.0, %v767
    %v769 = vpop.f32.mrf.mxu0
    %770 = vdwg.mxu0
    %v771 = vmul.f32 %v758, %v758
    %v772 = vmul.f32 %v760, %v760
    %v773 = vmul.f32 %v763, %v763
    %v774 = vmul.f32 %v765, %v765
    %v775 = vmul.f32 %v768, %v768
    %v776 = vmul.f32 %v758, %v771
    %v777 = vmul.f32 %v760, %v772
    %v778 = vmul.f32 %v763, %v773
    %v779 = vmul.f32 %v765, %v774
    %v780 = vmul.f32 %v768, %v775
    %v781 = vmul.f32 %v776, 0.044715
    %v782 = vmul.f32 %v777, 0.044715
    %v783 = vmul.f32 %v778, 0.044715
    %v784 = vmul.f32 %v779, 0.044715
    %v785 = vmul.f32 %v780, 0.044715
    %v786 = vadd.f32 %v758, %v781
    %v787 = vadd.f32 %v760, %v782
    %v788 = vadd.f32 %v763, %v783
    %v789 = vadd.f32 %v765, %v784
    %v790 = vadd.f32 %v768, %v785
    %v791 = vmul.f32 %v786, 0.7978846
    %v792 = vmul.f32 %v787, 0.7978846
    %v793 = vmul.f32 %v788, 0.7978846
    %v794 = vmul.f32 %v789, 0.7978846
    %v795 = vmul.f32 %v790, 0.7978846
    %v796 = vtanh.pop %v791
    %v797 = vtanh.pop %v792
    %v798 = vtanh.pop %v793
    %v799 = vtanh.pop %v794
    %v800 = vtanh.pop %v795
    %v801 = vadd.f32 %v796, 1.0
    %v802 = vadd.f32 %v797, 1.0
    %v803 = vadd.f32 %v798, 1.0
    %v804 = vadd.f32 %v799, 1.0
    %v805 = vadd.f32 %v800, 1.0
    %v806 = vmul.f32 %v801, 0.5
    %v807 = vmul.f32 %v802, 0.5
    %v808 = vmul.f32 %v803, 0.5
    %v809 = vmul.f32 %v804, 0.5
    %v810 = vmul.f32 %v805, 0.5
    %v811 = vmul.f32 %v758, %v806
    %v812 = vmul.f32 %v760, %v807
    %v813 = vmul.f32 %v763, %v808
    %v814 = vmul.f32 %v765, %v809
    %v815 = vmul.f32 %v768, %v810
    %v816 = vpack.c.bf16 %v812, %v811
    %v817 = vpack.c.bf16 %v814, %v813
    %v818 = vpack.c.bf16 %v815, %v815
    %v819 = vld [vmem:[%s10] sm:$0xf]
    %v820 = vld [vmem:[%s10 + $0x4] sm:$0xf]
    %v821 = vld [vmem:[%s10 + $0x8] sm:$0xf]
    %v822 = vld [vmem:[%s10 + $0xc] sm:$0xf]
    %v823 = vld [vmem:[%s10 + $0x10] sm:$0xf]
    %v824 = vld [vmem:[%s10 + $0x14] sm:$0xf]
    %v825 = vld [vmem:[%s10 + $0x18] sm:$0xf]
    %v826 = vld [vmem:[%s10 + $0x1c] sm:$0xf]
    %v827 = vld [vmem:[%s10 + $0x20] sm:$0xf]
    %v828 = vld [vmem:[%s10 + $0x24] sm:$0xf]
    %v829 = vld [vmem:[%s10 + $0x28] sm:$0xf]
    %v830 = vld [vmem:[%s10 + $0x2c] sm:$0xf]
    %v831 = vld [vmem:[%s10 + $0x30] sm:$0xf]
    %v832 = vld [vmem:[%s10 + $0x34] sm:$0xf]
    %v833 = vld [vmem:[%s10 + $0x38] sm:$0xf]
    %v834 = vld [vmem:[%s10 + $0x3c] sm:$0xf]
    %v851 = vunpack.c.l.b16 %v819
    %v852 = vunpack.c.l.b16 %v820
    %v853 = vunpack.c.l.b16 %v821
    %v854 = vunpack.c.l.b16 %v822
    %v855 = vunpack.c.l.b16 %v823
    %v856 = vunpack.c.l.b16 %v824
    %v857 = vunpack.c.l.b16 %v825
    %v858 = vunpack.c.l.b16 %v826
    %v859 = vunpack.c.l.b16 %v827
    %v860 = vunpack.c.l.b16 %v828
    %v861 = vunpack.c.l.b16 %v829
    %v862 = vunpack.c.l.b16 %v830
    %v863 = vunpack.c.l.b16 %v831
    %v864 = vunpack.c.l.b16 %v832
    %v865 = vunpack.c.l.b16 %v833
    %v866 = vunpack.c.l.b16 %v834
    %v867 = vpack.c.b16 %v852, %v851
    %v868 = vpack.c.b16 %v854, %v853
    %v869 = vpack.c.b16 %v856, %v855
    %v870 = vpack.c.b16 %v858, %v857
    %v871 = vpack.c.b16 %v860, %v859
    %v872 = vpack.c.b16 %v862, %v861
    %v873 = vpack.c.b16 %v864, %v863
    %v874 = vpack.c.b16 %v866, %v865
    %883 = vmatpush.bf16.msra.mxu0 %v874
    %884 = vmatpush.bf16.msra.mxu0 %v873
    %885 = vmatpush.bf16.msra.mxu0 %v872
    %886 = vmatpush.bf16.msra.mxu0 %v871
    %887 = vmatpush.bf16.msra.mxu0 %v870
    %888 = vmatpush.bf16.msra.mxu0 %v869
    %889 = vmatpush.bf16.msra.mxu0 %v868
    %890 = vmatpush.bf16.msra.mxu0 %v867
    %891 = vmatmul.bf16.gmra.mxu0 %v816
    %v892 = vpop.f32.mrf.mxu0
    %v893 = vadd.f32 0.0, %v892
    %v894 = vpop.f32.mrf.mxu0
    %v895 = vadd.f32 0.0, %v894
    %896 = vmatmul.bf16.gmra.mxu0 %v817
    %v897 = vpop.f32.mrf.mxu0
    %v898 = vadd.f32 0.0, %v897
    %v899 = vpop.f32.mrf.mxu0
    %v900 = vadd.f32 0.0, %v899
    %901 = vmatmul.bf16.gmra.mxu0 %v818
    %v902 = vpop.f32.mrf.mxu0
    %v903 = vadd.f32 0.0, %v902
    %v904 = vpop.f32.mrf.mxu0
    %905 = vdwg.mxu0
    %v911 = vrot.slane %v893, 4
    %v912 = vrot.slane %v895, 4
    %v913 = vrot.slane %v898, 4
    %v914 = vrot.slane %v900, 4
    %v915 = vrot.slane %v903, 4
    %v921 = vadd.f32 %v673, %v893
    %v922 = vadd.f32 %v674, %v911
    %v923 = vadd.f32 %v675, %v895
    %v924 = vadd.f32 %v676, %v912
    %v925 = vadd.f32 %v677, %v898
    %v926 = vadd.f32 %v678, %v913
    %v927 = vadd.f32 %v679, %v900
    %v928 = vadd.f32 %v680, %v914
    %v929 = vadd.f32 %v681, %v903
    %v930 = vadd.f32 %v682, %v915
    %941 = vst [vmem:[#allocation1] ss:$2 sm:$0xff] %v921
    %s942 = scalar_lea.vmem [#allocation1], 1
    %943 = vst [vmem:[%s942] ss:$2 sm:$0xff] %v922
    %s944 = scalar_lea.vmem [#allocation1], 16
    %945 = vst [vmem:[%s944] ss:$2 sm:$0xff] %v923
    %s946 = scalar_lea.vmem [#allocation1], 17
    %947 = vst [vmem:[%s946] ss:$2 sm:$0xff] %v924
    %s948 = scalar_lea.vmem [#allocation1], 32
    %949 = vst [vmem:[%s948] ss:$2 sm:$0xff] %v925
    %s950 = scalar_lea.vmem [#allocation1], 33
    %951 = vst [vmem:[%s950] ss:$2 sm:$0xff] %v926
    %s952 = scalar_lea.vmem [#allocation1], 48
    %953 = vst [vmem:[%s952] ss:$2 sm:$0xff] %v927
    %s954 = scalar_lea.vmem [#allocation1], 49
    %955 = vst [vmem:[%s954] ss:$2 sm:$0xff] %v928
    %v956 = vld.sshfl [vmem:[#allocation1] sm:$0xff pattern:$0x75316420]
    %v957 = vld.sshfl [vmem:[#allocation1 + $0x10] sm:$0xff pattern:$0x75316420]
    %v958 = vld.sshfl [vmem:[#allocation1 + $0x20] sm:$0xff pattern:$0x75316420]
    %v959 = vld.sshfl [vmem:[#allocation1 + $0x30] sm:$0xff pattern:$0x75316420]
    %960 = vst [vmem:[#allocation1] ss:$2 sm:$0xff] %v929
    %961 = vst [vmem:[%s942] ss:$2 sm:$0xff] %v930
    %v962 = vld.sshfl [vmem:[#allocation1] sm:$0xff pattern:$0x75316420]
    %v968 = vsel %vm133, %v956, inf
    %v969 = vsel %vm133, %v957, inf
    %v970 = vsel %vm133, %v958, inf
    %v971 = vsel %vm133, %v959, inf
    %v972 = vsel %vm133, %v962, inf
    %v973 = vmin.f32 %v968, %v972
    %v974 = vmin.f32 %v973, %v969
    %v975 = vmin.f32 %v970, %v971
    %v976 = vmin.f32 %v974, %v975
    %977 = vmin.xlane.f32.xlu0 %v976
    %v978 = vpop.xlane.xlu0 %977
    %v979 = vrot.slane %v978, 4
    %v980 = vmin.f32 %v978, %v979
    %v981 = vrot.slane %v980, 2
    %v982 = vmin.f32 %v980, %v981
    %v983 = vrot.slane %v982, 1
    %v984 = vmin.f32 %v982, %v983
    %s985 = vtos %v984
    %v986 = vld [vmem:[%s3] sm:$0x3]
    %v987 = vperm.slane %v986, 0
    %v988 = vlaneseq
    %v989 = vshrl.u32 %v988, 7
    %991 = vset.pattern.permute.xlu0 %v989
    %992 = vperm.xlu0 %991, %v987
    %v993 = vpop.permute.xlu0 %992
    %v994 = vlaneseq
    %v995 = vshrl.u32 %v994, 7
    %v996 = vadd.s32 %v995, 8
    %997 = vset.pattern.permute.xlu0 %v996
    %998 = vperm.xlu0 %997, %v987
    %v999 = vpop.permute.xlu0 %998
    %v1000 = vlaneseq
    %v1001 = vshrl.u32 %v1000, 7
    %v1002 = vadd.s32 %v1001, 16
    %1003 = vset.pattern.permute.xlu0 %v1002
    %1004 = vperm.xlu0 %1003, %v987
    %v1005 = vpop.permute.xlu0 %1004
    %v1006 = vperm.slane %v986, 1
    %v1007 = vlaneseq
    %v1008 = vshrl.u32 %v1007, 7
    %1010 = vset.pattern.permute.xlu0 %v1008
    %1011 = vperm.xlu0 %1010, %v1006
    %v1012 = vpop.permute.xlu0 %1011
    %v1013 = vlaneseq
    %v1014 = vshrl.u32 %v1013, 7
    %v1015 = vadd.s32 %v1014, 8
    %1016 = vset.pattern.permute.xlu0 %v1015
    %1017 = vperm.xlu0 %1016, %v1006
    %v1018 = vpop.permute.xlu0 %1017
    %v1019 = vlaneseq
    %v1020 = vshrl.u32 %v1019, 7
    %v1021 = vadd.s32 %v1020, 16
    %1022 = vset.pattern.permute.xlu0 %v1021
    %1023 = vperm.xlu0 %1022, %v1006
    %v1024 = vpop.permute.xlu0 %1023
    %vm1025 = vcmp.gt.f32.partialorder %v993, 0.5
    %vm1026 = vcmp.gt.f32.partialorder %v999, 0.5
    %vm1027 = vcmp.gt.f32.partialorder %v1005, 0.5
    %vm1028 = vcmp.gt.f32.partialorder %v1012, 0.5
    %vm1029 = vcmp.gt.f32.partialorder %v1018, 0.5
    %vm1030 = vcmp.gt.f32.partialorder %v1024, 0.5
    %v1031 = vsel %vm1025, 1, 0
    %v1032 = vsel %vm1026, 1, 0
    %v1033 = vsel %vm1027, 1, 0
    %v1034 = vsel %vm1028, 1, 0
    %v1035 = vsel %vm1029, 1, 0
    %v1036 = vsel %vm1030, 1, 0
    %vm1037 = vcmp.eq.s32.totalorder %v1031, 1
    %vm1038 = vcmp.eq.s32.totalorder %v1032, 1
    %vm1039 = vcmp.eq.s32.totalorder %v1033, 1
    %vm1040 = vcmp.eq.s32.totalorder %v1034, 1
    %vm1041 = vcmp.eq.s32.totalorder %v1035, 1
    %vm1042 = vcmp.eq.s32.totalorder %v1036, 1
    %v1043 = vstv %s985
    %1044 = vst [vmem:[#allocation1] ss:$2 sm:$0xff] %v921
    %s1045 = scalar_lea.vmem [#allocation1], 1
    %1046 = vst [vmem:[%s1045] ss:$2 sm:$0xff] %v922
    %s1047 = scalar_lea.vmem [#allocation1], 16
    %1048 = vst [vmem:[%s1047] ss:$2 sm:$0xff] %v923
    %s1049 = scalar_lea.vmem [#allocation1], 17
    %1050 = vst [vmem:[%s1049] ss:$2 sm:$0xff] %v924
    %s1051 = scalar_lea.vmem [#allocation1], 32
    %1052 = vst [vmem:[%s1051] ss:$2 sm:$0xff] %v925
    %v1053 = vld.sshfl [vmem:[#allocation1] sm:$0xff pattern:$0x75316420]
    %v1054 = vld.sshfl [vmem:[#allocation1 + $0x10] sm:$0xff pattern:$0x75316420]
    %v1055 = vld.sshfl [vmem:[#allocation1 + $0x20] sm:$0xff pattern:$0x75316420]
    %s1056 = scalar_lea.vmem [#allocation1], 48
    %1057 = vst [vmem:[%s1056] ss:$2 sm:$0xff] %v926
    %s1058 = scalar_lea.vmem [#allocation1], 49
    %1059 = vst [vmem:[%s1058] ss:$2 sm:$0xff] %v927
    %v1060 = vld.sshfl [vmem:[#allocation1 + $0x30] sm:$0xff pattern:$0x75316420]
    %1061 = vst [vmem:[#allocation1] ss:$2 sm:$0xff] %v928
    %1062 = vst [vmem:[%s1045] ss:$2 sm:$0xff] %v929
    %1063 = vst [vmem:[%s1047] ss:$2 sm:$0xff] %v930
    %v1064 = vld.sshfl [vmem:[#allocation1] sm:$0xff pattern:$0x75316420]
    %v1065 = vld.sshfl [vmem:[#allocation1 + $0x10] sm:$0xff pattern:$0x75316420]
    %v1072 = vsel %vm1037, %v1053, %v1043
    %v1073 = vsel %vm1038, %v1054, %v1043
    %v1074 = vsel %vm1039, %v1055, %v1043
    %v1075 = vsel %vm1040, %v1060, %v1043
    %v1076 = vsel %vm1041, %v1064, %v1043
    %v1077 = vsel %vm1042, %v1065, %v1043
    %v1078 = vsel %vm133, %v1072, -inf
    %v1079 = vsel %vm133, %v1073, -inf
    %vm1080 = vcmask 257024
    %v1081 = vsel %vm1080, %v1074, -inf
    %v1082 = vmax.f32 %v1078, %v1081
    %v1083 = vmax.f32 %v1082, %v1079
    %v1084 = vrot.slane %v1083, 4
    %v1085 = vmax.f32 %v1083, %v1084
    %v1086 = vrot.slane %v1085, 2
    %v1087 = vmax.f32 %v1085, %v1086
    %v1088 = vrot.slane %v1087, 1
    %v1089 = vmax.f32 %v1087, %v1088
    %v1090 = vsel %vm133, %v1075, -inf
    %v1091 = vsel %vm133, %v1076, -inf
    %v1092 = vsel %vm1080, %v1077, -inf
    %v1093 = vmax.f32 %v1090, %v1092
    %v1094 = vmax.f32 %v1093, %v1091
    %v1095 = vrot.slane %v1094, 4
    %v1096 = vmax.f32 %v1094, %v1095
    %v1097 = vrot.slane %v1096, 2
    %v1098 = vmax.f32 %v1096, %v1097
    %v1099 = vrot.slane %v1098, 1
    %v1100 = vmax.f32 %v1098, %v1099
    %vm1103 = vcmask 1041409
    %v1104 = vsel %vm1103, %v1100, %v1089
    %vm1106 = vcmask 254976
    %1107 = vst.msk [vmem:[#allocation2] sm:$0x3] %vm1106, %v1104
    %s1108 = scalar_lea.vmem %s3, 2
    %v1109 = vld [vmem:[%s1108] sm:$0x3]
    %v1110 = vperm.slane %v1109, 0
    %v1111 = vlaneseq
    %v1112 = vshrl.u32 %v1111, 7
    %1114 = vset.pattern.permute.xlu0 %v1112
    %1115 = vperm.xlu0 %1114, %v1110
    %v1116 = vpop.permute.xlu0 %1115
    %v1117 = vlaneseq
    %v1118 = vshrl.u32 %v1117, 7
    %v1119 = vadd.s32 %v1118, 8
    %1120 = vset.pattern.permute.xlu0 %v1119
    %1121 = vperm.xlu0 %1120, %v1110
    %v1122 = vpop.permute.xlu0 %1121
    %v1123 = vlaneseq
    %v1124 = vshrl.u32 %v1123, 7
    %v1125 = vadd.s32 %v1124, 16
    %1126 = vset.pattern.permute.xlu0 %v1125
    %1127 = vperm.xlu0 %1126, %v1110
    %v1128 = vpop.permute.xlu0 %1127
    %v1129 = vperm.slane %v1109, 1
    %v1130 = vlaneseq
    %v1131 = vshrl.u32 %v1130, 7
    %1133 = vset.pattern.permute.xlu0 %v1131
    %1134 = vperm.xlu0 %1133, %v1129
    %v1135 = vpop.permute.xlu0 %1134
    %v1136 = vlaneseq
    %v1137 = vshrl.u32 %v1136, 7
    %v1138 = vadd.s32 %v1137, 8
    %1139 = vset.pattern.permute.xlu0 %v1138
    %1140 = vperm.xlu0 %1139, %v1129
    %v1141 = vpop.permute.xlu0 %1140
    %v1142 = vlaneseq
    %v1143 = vshrl.u32 %v1142, 7
    %v1144 = vadd.s32 %v1143, 16
    %1145 = vset.pattern.permute.xlu0 %v1144
    %1146 = vperm.xlu0 %1145, %v1129
    %v1147 = vpop.permute.xlu0 %1146
    %vm1148 = vcmp.gt.f32.partialorder %v1116, 0.5
    %vm1149 = vcmp.gt.f32.partialorder %v1122, 0.5
    %vm1150 = vcmp.gt.f32.partialorder %v1128, 0.5
    %vm1151 = vcmp.gt.f32.partialorder %v1135, 0.5
    %vm1152 = vcmp.gt.f32.partialorder %v1141, 0.5
    %vm1153 = vcmp.gt.f32.partialorder %v1147, 0.5
    %v1154 = vsel %vm1148, 1, 0
    %v1155 = vsel %vm1149, 1, 0
    %v1156 = vsel %vm1150, 1, 0
    %v1157 = vsel %vm1151, 1, 0
    %v1158 = vsel %vm1152, 1, 0
    %v1159 = vsel %vm1153, 1, 0
    %vm1160 = vcmp.eq.s32.totalorder %v1154, 1
    %vm1161 = vcmp.eq.s32.totalorder %v1155, 1
    %vm1162 = vcmp.eq.s32.totalorder %v1156, 1
    %vm1163 = vcmp.eq.s32.totalorder %v1157, 1
    %vm1164 = vcmp.eq.s32.totalorder %v1158, 1
    %vm1165 = vcmp.eq.s32.totalorder %v1159, 1
    %1166 = vst [vmem:[#allocation1] ss:$2 sm:$0xff] %v921
    %s1167 = scalar_lea.vmem [#allocation1], 1
    %1168 = vst [vmem:[%s1167] ss:$2 sm:$0xff] %v922
    %s1169 = scalar_lea.vmem [#allocation1], 16
    %1170 = vst [vmem:[%s1169] ss:$2 sm:$0xff] %v923
    %s1171 = scalar_lea.vmem [#allocation1], 17
    %1172 = vst [vmem:[%s1171] ss:$2 sm:$0xff] %v924
    %s1173 = scalar_lea.vmem [#allocation1], 32
    %1174 = vst [vmem:[%s1173] ss:$2 sm:$0xff] %v925
    %v1175 = vld.sshfl [vmem:[#allocation1] sm:$0xff pattern:$0x75316420]
    %v1176 = vld.sshfl [vmem:[#allocation1 + $0x10] sm:$0xff pattern:$0x75316420]
    %v1177 = vld.sshfl [vmem:[#allocation1 + $0x20] sm:$0xff pattern:$0x75316420]
    %s1178 = scalar_lea.vmem [#allocation1], 48
    %1179 = vst [vmem:[%s1178] ss:$2 sm:$0xff] %v926
    %s1180 = scalar_lea.vmem [#allocation1], 49
    %1181 = vst [vmem:[%s1180] ss:$2 sm:$0xff] %v927
    %v1182 = vld.sshfl [vmem:[#allocation1 + $0x30] sm:$0xff pattern:$0x75316420]
    %1183 = vst [vmem:[#allocation1] ss:$2 sm:$0xff] %v928
    %1184 = vst [vmem:[%s1167] ss:$2 sm:$0xff] %v929
    %1185 = vst [vmem:[%s1169] ss:$2 sm:$0xff] %v930
    %v1186 = vld.sshfl [vmem:[#allocation1] sm:$0xff pattern:$0x75316420]
    %v1187 = vld.sshfl [vmem:[#allocation1 + $0x10] sm:$0xff pattern:$0x75316420]
    %v1194 = vsel %vm1160, %v1175, %v1043
    %v1195 = vsel %vm1161, %v1176, %v1043
    %v1196 = vsel %vm1162, %v1177, %v1043
    %v1197 = vsel %vm1163, %v1182, %v1043
    %v1198 = vsel %vm1164, %v1186, %v1043
    %v1199 = vsel %vm1165, %v1187, %v1043
    %v1200 = vsel %vm133, %v1194, -inf
    %v1201 = vsel %vm133, %v1195, -inf
    %v1202 = vsel %vm1080, %v1196, -inf
    %v1203 = vmax.f32 %v1200, %v1202
    %v1204 = vmax.f32 %v1203, %v1201
    %v1205 = vrot.slane %v1204, 4
    %v1206 = vmax.f32 %v1204, %v1205
    %v1207 = vrot.slane %v1206, 2
    %v1208 = vmax.f32 %v1206, %v1207
    %v1209 = vrot.slane %v1208, 1
    %v1210 = vmax.f32 %v1208, %v1209
    %v1211 = vsel %vm133, %v1197, -inf
    %v1212 = vsel %vm133, %v1198, -inf
    %v1213 = vsel %vm1080, %v1199, -inf
    %v1214 = vmax.f32 %v1211, %v1213
    %v1215 = vmax.f32 %v1214, %v1212
    %v1216 = vrot.slane %v1215, 4
    %v1217 = vmax.f32 %v1215, %v1216
    %v1218 = vrot.slane %v1217, 2
    %v1219 = vmax.f32 %v1217, %v1218
    %v1220 = vrot.slane %v1219, 1
    %v1221 = vmax.f32 %v1219, %v1220
    %v1224 = vsel %vm1103, %v1221, %v1210
    %1226 = vst.msk [vmem:[#allocation2 + $0x2] sm:$0x3] %vm1106, %v1224
    %s1227 = scalar_lea.vmem %s3, 4
    %v1228 = vld [vmem:[%s1227] sm:$0x3]
    %v1229 = vperm.slane %v1228, 0
    %v1230 = vlaneseq
    %v1231 = vshrl.u32 %v1230, 7
    %1233 = vset.pattern.permute.xlu0 %v1231
    %1234 = vperm.xlu0 %1233, %v1229
    %v1235 = vpop.permute.xlu0 %1234
    %v1236 = vlaneseq
    %v1237 = vshrl.u32 %v1236, 7
    %v1238 = vadd.s32 %v1237, 8
    %1239 = vset.pattern.permute.xlu0 %v1238
    %1240 = vperm.xlu0 %1239, %v1229
    %v1241 = vpop.permute.xlu0 %1240
    %v1242 = vlaneseq
    %v1243 = vshrl.u32 %v1242, 7
    %v1244 = vadd.s32 %v1243, 16
    %1245 = vset.pattern.permute.xlu0 %v1244
    %1246 = vperm.xlu0 %1245, %v1229
    %v1247 = vpop.permute.xlu0 %1246
    %v1248 = vperm.slane %v1228, 1
    %v1249 = vlaneseq
    %v1250 = vshrl.u32 %v1249, 7
    %1252 = vset.pattern.permute.xlu0 %v1250
    %1253 = vperm.xlu0 %1252, %v1248
    %v1254 = vpop.permute.xlu0 %1253
    %v1255 = vlaneseq
    %v1256 = vshrl.u32 %v1255, 7
    %v1257 = vadd.s32 %v1256, 8
    %1258 = vset.pattern.permute.xlu0 %v1257
    %1259 = vperm.xlu0 %1258, %v1248
    %v1260 = vpop.permute.xlu0 %1259
    %v1261 = vlaneseq
    %v1262 = vshrl.u32 %v1261, 7
    %v1263 = vadd.s32 %v1262, 16
    %1264 = vset.pattern.permute.xlu0 %v1263
    %1265 = vperm.xlu0 %1264, %v1248
    %v1266 = vpop.permute.xlu0 %1265
    %vm1267 = vcmp.gt.f32.partialorder %v1235, 0.5
    %vm1268 = vcmp.gt.f32.partialorder %v1241, 0.5
    %vm1269 = vcmp.gt.f32.partialorder %v1247, 0.5
    %vm1270 = vcmp.gt.f32.partialorder %v1254, 0.5
    %vm1271 = vcmp.gt.f32.partialorder %v1260, 0.5
    %vm1272 = vcmp.gt.f32.partialorder %v1266, 0.5
    %v1273 = vsel %vm1267, 1, 0
    %v1274 = vsel %vm1268, 1, 0
    %v1275 = vsel %vm1269, 1, 0
    %v1276 = vsel %vm1270, 1, 0
    %v1277 = vsel %vm1271, 1, 0
    %v1278 = vsel %vm1272, 1, 0
    %vm1279 = vcmp.eq.s32.totalorder %v1273, 1
    %vm1280 = vcmp.eq.s32.totalorder %v1274, 1
    %vm1281 = vcmp.eq.s32.totalorder %v1275, 1
    %vm1282 = vcmp.eq.s32.totalorder %v1276, 1
    %vm1283 = vcmp.eq.s32.totalorder %v1277, 1
    %vm1284 = vcmp.eq.s32.totalorder %v1278, 1
    %1285 = vst [vmem:[#allocation1] ss:$2 sm:$0xff] %v921
    %s1286 = scalar_lea.vmem [#allocation1], 1
    %1287 = vst [vmem:[%s1286] ss:$2 sm:$0xff] %v922
    %s1288 = scalar_lea.vmem [#allocation1], 16
    %1289 = vst [vmem:[%s1288] ss:$2 sm:$0xff] %v923
    %s1290 = scalar_lea.vmem [#allocation1], 17
    %1291 = vst [vmem:[%s1290] ss:$2 sm:$0xff] %v924
    %s1292 = scalar_lea.vmem [#allocation1], 32
    %1293 = vst [vmem:[%s1292] ss:$2 sm:$0xff] %v925
    %v1294 = vld.sshfl [vmem:[#allocation1] sm:$0xff pattern:$0x75316420]
    %v1295 = vld.sshfl [vmem:[#allocation1 + $0x10] sm:$0xff pattern:$0x75316420]
    %v1296 = vld.sshfl [vmem:[#allocation1 + $0x20] sm:$0xff pattern:$0x75316420]
    %s1297 = scalar_lea.vmem [#allocation1], 48
    %1298 = vst [vmem:[%s1297] ss:$2 sm:$0xff] %v926
    %s1299 = scalar_lea.vmem [#allocation1], 49
    %1300 = vst [vmem:[%s1299] ss:$2 sm:$0xff] %v927
    %v1301 = vld.sshfl [vmem:[#allocation1 + $0x30] sm:$0xff pattern:$0x75316420]
    %1302 = vst [vmem:[#allocation1] ss:$2 sm:$0xff] %v928
    %1303 = vst [vmem:[%s1286] ss:$2 sm:$0xff] %v929
    %1304 = vst [vmem:[%s1288] ss:$2 sm:$0xff] %v930
    %v1305 = vld.sshfl [vmem:[#allocation1] sm:$0xff pattern:$0x75316420]
    %v1306 = vld.sshfl [vmem:[#allocation1 + $0x10] sm:$0xff pattern:$0x75316420]
    %v1313 = vsel %vm1279, %v1294, %v1043
    %v1314 = vsel %vm1280, %v1295, %v1043
    %v1315 = vsel %vm1281, %v1296, %v1043
    %v1316 = vsel %vm1282, %v1301, %v1043
    %v1317 = vsel %vm1283, %v1305, %v1043
    %v1318 = vsel %vm1284, %v1306, %v1043
    %v1319 = vsel %vm133, %v1313, -inf
    %v1320 = vsel %vm133, %v1314, -inf
    %v1321 = vsel %vm1080, %v1315, -inf
    %v1322 = vmax.f32 %v1319, %v1321
    %v1323 = vmax.f32 %v1322, %v1320
    %v1324 = vrot.slane %v1323, 4
    %v1325 = vmax.f32 %v1323, %v1324
    %v1326 = vrot.slane %v1325, 2
    %v1327 = vmax.f32 %v1325, %v1326
    %v1328 = vrot.slane %v1327, 1
    %v1329 = vmax.f32 %v1327, %v1328
    %v1330 = vsel %vm133, %v1316, -inf
    %v1331 = vsel %vm133, %v1317, -inf
    %v1332 = vsel %vm1080, %v1318, -inf
    %v1333 = vmax.f32 %v1330, %v1332
    %v1334 = vmax.f32 %v1333, %v1331
    %v1335 = vrot.slane %v1334, 4
    %v1336 = vmax.f32 %v1334, %v1335
    %v1337 = vrot.slane %v1336, 2
    %v1338 = vmax.f32 %v1336, %v1337
    %v1339 = vrot.slane %v1338, 1
    %v1340 = vmax.f32 %v1338, %v1339
    %v1343 = vsel %vm1103, %v1340, %v1329
    %1345 = vst.msk [vmem:[#allocation2 + $0x4] sm:$0x3] %vm1106, %v1343
    %s1346 = scalar_lea.vmem %s3, 6
    %v1347 = vld [vmem:[%s1346] sm:$0x3]
    %v1348 = vperm.slane %v1347, 0
    %v1349 = vlaneseq
    %v1350 = vshrl.u32 %v1349, 7
    %1352 = vset.pattern.permute.xlu0 %v1350
    %1353 = vperm.xlu0 %1352, %v1348
    %v1354 = vpop.permute.xlu0 %1353
    %v1355 = vlaneseq
    %v1356 = vshrl.u32 %v1355, 7
    %v1357 = vadd.s32 %v1356, 8
    %1358 = vset.pattern.permute.xlu0 %v1357
    %1359 = vperm.xlu0 %1358, %v1348
    %v1360 = vpop.permute.xlu0 %1359
    %v1361 = vlaneseq
    %v1362 = vshrl.u32 %v1361, 7
    %v1363 = vadd.s32 %v1362, 16
    %1364 = vset.pattern.permute.xlu0 %v1363
    %1365 = vperm.xlu0 %1364, %v1348
    %v1366 = vpop.permute.xlu0 %1365
    %v1367 = vperm.slane %v1347, 1
    %v1368 = vlaneseq
    %v1369 = vshrl.u32 %v1368, 7
    %1371 = vset.pattern.permute.xlu0 %v1369
    %1372 = vperm.xlu0 %1371, %v1367
    %v1373 = vpop.permute.xlu0 %1372
    %v1374 = vlaneseq
    %v1375 = vshrl.u32 %v1374, 7
    %v1376 = vadd.s32 %v1375, 8
    %1377 = vset.pattern.permute.xlu0 %v1376
    %1378 = vperm.xlu0 %1377, %v1367
    %v1379 = vpop.permute.xlu0 %1378
    %v1380 = vlaneseq
    %v1381 = vshrl.u32 %v1380, 7
    %v1382 = vadd.s32 %v1381, 16
    %1383 = vset.pattern.permute.xlu0 %v1382
    %1384 = vperm.xlu0 %1383, %v1367
    %v1385 = vpop.permute.xlu0 %1384
    %vm1386 = vcmp.gt.f32.partialorder %v1354, 0.5
    %vm1387 = vcmp.gt.f32.partialorder %v1360, 0.5
    %vm1388 = vcmp.gt.f32.partialorder %v1366, 0.5
    %vm1389 = vcmp.gt.f32.partialorder %v1373, 0.5
    %vm1390 = vcmp.gt.f32.partialorder %v1379, 0.5
    %vm1391 = vcmp.gt.f32.partialorder %v1385, 0.5
    %v1392 = vsel %vm1386, 1, 0
    %v1393 = vsel %vm1387, 1, 0
    %v1394 = vsel %vm1388, 1, 0
    %v1395 = vsel %vm1389, 1, 0
    %v1396 = vsel %vm1390, 1, 0
    %v1397 = vsel %vm1391, 1, 0
    %vm1398 = vcmp.eq.s32.totalorder %v1392, 1
    %vm1399 = vcmp.eq.s32.totalorder %v1393, 1
    %vm1400 = vcmp.eq.s32.totalorder %v1394, 1
    %vm1401 = vcmp.eq.s32.totalorder %v1395, 1
    %vm1402 = vcmp.eq.s32.totalorder %v1396, 1
    %vm1403 = vcmp.eq.s32.totalorder %v1397, 1
    %1404 = vst [vmem:[#allocation1] ss:$2 sm:$0xff] %v921
    %s1405 = scalar_lea.vmem [#allocation1], 1
    %1406 = vst [vmem:[%s1405] ss:$2 sm:$0xff] %v922
    %s1407 = scalar_lea.vmem [#allocation1], 16
    %1408 = vst [vmem:[%s1407] ss:$2 sm:$0xff] %v923
    %s1409 = scalar_lea.vmem [#allocation1], 17
    %1410 = vst [vmem:[%s1409] ss:$2 sm:$0xff] %v924
    %s1411 = scalar_lea.vmem [#allocation1], 32
    %1412 = vst [vmem:[%s1411] ss:$2 sm:$0xff] %v925
    %v1413 = vld.sshfl [vmem:[#allocation1] sm:$0xff pattern:$0x75316420]
    %v1414 = vld.sshfl [vmem:[#allocation1 + $0x10] sm:$0xff pattern:$0x75316420]
    %v1415 = vld.sshfl [vmem:[#allocation1 + $0x20] sm:$0xff pattern:$0x75316420]
    %s1416 = scalar_lea.vmem [#allocation1], 48
    %1417 = vst [vmem:[%s1416] ss:$2 sm:$0xff] %v926
    %s1418 = scalar_lea.vmem [#allocation1], 49
    %1419 = vst [vmem:[%s1418] ss:$2 sm:$0xff] %v927
    %v1420 = vld.sshfl [vmem:[#allocation1 + $0x30] sm:$0xff pattern:$0x75316420]
    %1421 = vst [vmem:[#allocation1] ss:$2 sm:$0xff] %v928
    %1422 = vst [vmem:[%s1405] ss:$2 sm:$0xff] %v929
    %1423 = vst [vmem:[%s1407] ss:$2 sm:$0xff] %v930
    %v1424 = vld.sshfl [vmem:[#allocation1] sm:$0xff pattern:$0x75316420]
    %v1425 = vld.sshfl [vmem:[#allocation1 + $0x10] sm:$0xff pattern:$0x75316420]
    %v1432 = vsel %vm1398, %v1413, %v1043
    %v1433 = vsel %vm1399, %v1414, %v1043
    %v1434 = vsel %vm1400, %v1415, %v1043
    %v1435 = vsel %vm1401, %v1420, %v1043
    %v1436 = vsel %vm1402, %v1424, %v1043
    %v1437 = vsel %vm1403, %v1425, %v1043
    %v1438 = vsel %vm133, %v1432, -inf
    %v1439 = vsel %vm133, %v1433, -inf
    %v1440 = vsel %vm1080, %v1434, -inf
    %v1441 = vmax.f32 %v1438, %v1440
    %v1442 = vmax.f32 %v1441, %v1439
    %v1443 = vrot.slane %v1442, 4
    %v1444 = vmax.f32 %v1442, %v1443
    %v1445 = vrot.slane %v1444, 2
    %v1446 = vmax.f32 %v1444, %v1445
    %v1447 = vrot.slane %v1446, 1
    %v1448 = vmax.f32 %v1446, %v1447
    %v1449 = vsel %vm133, %v1435, -inf
    %v1450 = vsel %vm133, %v1436, -inf
    %v1451 = vsel %vm1080, %v1437, -inf
    %v1452 = vmax.f32 %v1449, %v1451
    %v1453 = vmax.f32 %v1452, %v1450
    %v1454 = vrot.slane %v1453, 4
    %v1455 = vmax.f32 %v1453, %v1454
    %v1456 = vrot.slane %v1455, 2
    %v1457 = vmax.f32 %v1455, %v1456
    %v1458 = vrot.slane %v1457, 1
    %v1459 = vmax.f32 %v1457, %v1458
    %v1462 = vsel %vm1103, %v1459, %v1448
    %1464 = vst.msk [vmem:[#allocation2 + $0x6] sm:$0x3] %vm1106, %v1462
    %s1465 = scalar_lea.vmem %s3, 8
    %v1466 = vld [vmem:[%s1465] sm:$0x3]
    %v1467 = vperm.slane %v1466, 0
    %v1468 = vlaneseq
    %v1469 = vshrl.u32 %v1468, 7
    %1471 = vset.pattern.permute.xlu0 %v1469
    %1472 = vperm.xlu0 %1471, %v1467
    %v1473 = vpop.permute.xlu0 %1472
    %v1474 = vlaneseq
    %v1475 = vshrl.u32 %v1474, 7
    %v1476 = vadd.s32 %v1475, 8
    %1477 = vset.pattern.permute.xlu0 %v1476
    %1478 = vperm.xlu0 %1477, %v1467
    %v1479 = vpop.permute.xlu0 %1478
    %v1480 = vlaneseq
    %v1481 = vshrl.u32 %v1480, 7
    %v1482 = vadd.s32 %v1481, 16
    %1483 = vset.pattern.permute.xlu0 %v1482
    %1484 = vperm.xlu0 %1483, %v1467
    %v1485 = vpop.permute.xlu0 %1484
    %v1486 = vperm.slane %v1466, 1
    %v1487 = vlaneseq
    %v1488 = vshrl.u32 %v1487, 7
    %1490 = vset.pattern.permute.xlu0 %v1488
    %1491 = vperm.xlu0 %1490, %v1486
    %v1492 = vpop.permute.xlu0 %1491
    %v1493 = vlaneseq
    %v1494 = vshrl.u32 %v1493, 7
    %v1495 = vadd.s32 %v1494, 8
    %1496 = vset.pattern.permute.xlu0 %v1495
    %1497 = vperm.xlu0 %1496, %v1486
    %v1498 = vpop.permute.xlu0 %1497
    %v1499 = vlaneseq
    %v1500 = vshrl.u32 %v1499, 7
    %v1501 = vadd.s32 %v1500, 16
    %1502 = vset.pattern.permute.xlu0 %v1501
    %1503 = vperm.xlu0 %1502, %v1486
    %v1504 = vpop.permute.xlu0 %1503
    %vm1505 = vcmp.gt.f32.partialorder %v1473, 0.5
    %vm1506 = vcmp.gt.f32.partialorder %v1479, 0.5
    %vm1507 = vcmp.gt.f32.partialorder %v1485, 0.5
    %vm1508 = vcmp.gt.f32.partialorder %v1492, 0.5
    %vm1509 = vcmp.gt.f32.partialorder %v1498, 0.5
    %vm1510 = vcmp.gt.f32.partialorder %v1504, 0.5
    %v1511 = vsel %vm1505, 1, 0
    %v1512 = vsel %vm1506, 1, 0
    %v1513 = vsel %vm1507, 1, 0
    %v1514 = vsel %vm1508, 1, 0
    %v1515 = vsel %vm1509, 1, 0
    %v1516 = vsel %vm1510, 1, 0
    %vm1517 = vcmp.eq.s32.totalorder %v1511, 1
    %vm1518 = vcmp.eq.s32.totalorder %v1512, 1
    %vm1519 = vcmp.eq.s32.totalorder %v1513, 1
    %vm1520 = vcmp.eq.s32.totalorder %v1514, 1
    %vm1521 = vcmp.eq.s32.totalorder %v1515, 1
    %vm1522 = vcmp.eq.s32.totalorder %v1516, 1
    %1523 = vst [vmem:[#allocation1] ss:$2 sm:$0xff] %v921
    %s1524 = scalar_lea.vmem [#allocation1], 1
    %1525 = vst [vmem:[%s1524] ss:$2 sm:$0xff] %v922
    %s1526 = scalar_lea.vmem [#allocation1], 16
    %1527 = vst [vmem:[%s1526] ss:$2 sm:$0xff] %v923
    %s1528 = scalar_lea.vmem [#allocation1], 17
    %1529 = vst [vmem:[%s1528] ss:$2 sm:$0xff] %v924
    %s1530 = scalar_lea.vmem [#allocation1], 32
    %1531 = vst [vmem:[%s1530] ss:$2 sm:$0xff] %v925
    %v1532 = vld.sshfl [vmem:[#allocation1] sm:$0xff pattern:$0x75316420]
    %v1533 = vld.sshfl [vmem:[#allocation1 + $0x10] sm:$0xff pattern:$0x75316420]
    %v1534 = vld.sshfl [vmem:[#allocation1 + $0x20] sm:$0xff pattern:$0x75316420]
    %s1535 = scalar_lea.vmem [#allocation1], 48
    %1536 = vst [vmem:[%s1535] ss:$2 sm:$0xff] %v926
    %s1537 = scalar_lea.vmem [#allocation1], 49
    %1538 = vst [vmem:[%s1537] ss:$2 sm:$0xff] %v927
    %v1539 = vld.sshfl [vmem:[#allocation1 + $0x30] sm:$0xff pattern:$0x75316420]
    %1540 = vst [vmem:[#allocation1] ss:$2 sm:$0xff] %v928
    %1541 = vst [vmem:[%s1524] ss:$2 sm:$0xff] %v929
    %1542 = vst [vmem:[%s1526] ss:$2 sm:$0xff] %v930
    %v1543 = vld.sshfl [vmem:[#allocation1] sm:$0xff pattern:$0x75316420]
    %v1544 = vld.sshfl [vmem:[#allocation1 + $0x10] sm:$0xff pattern:$0x75316420]
    %v1551 = vsel %vm1517, %v1532, %v1043
    %v1552 = vsel %vm1518, %v1533, %v1043
    %v1553 = vsel %vm1519, %v1534, %v1043
    %v1554 = vsel %vm1520, %v1539, %v1043
    %v1555 = vsel %vm1521, %v1543, %v1043
    %v1556 = vsel %vm1522, %v1544, %v1043
    %v1557 = vsel %vm133, %v1551, -inf
    %v1558 = vsel %vm133, %v1552, -inf
    %v1559 = vsel %vm1080, %v1553, -inf
    %v1560 = vmax.f32 %v1557, %v1559
    %v1561 = vmax.f32 %v1560, %v1558
    %v1562 = vrot.slane %v1561, 4
    %v1563 = vmax.f32 %v1561, %v1562
    %v1564 = vrot.slane %v1563, 2
    %v1565 = vmax.f32 %v1563, %v1564
    %v1566 = vrot.slane %v1565, 1
    %v1567 = vmax.f32 %v1565, %v1566
    %v1568 = vsel %vm133, %v1554, -inf
    %v1569 = vsel %vm133, %v1555, -inf
    %v1570 = vsel %vm1080, %v1556, -inf
    %v1571 = vmax.f32 %v1568, %v1570
    %v1572 = vmax.f32 %v1571, %v1569
    %v1573 = vrot.slane %v1572, 4
    %v1574 = vmax.f32 %v1572, %v1573
    %v1575 = vrot.slane %v1574, 2
    %v1576 = vmax.f32 %v1574, %v1575
    %v1577 = vrot.slane %v1576, 1
    %v1578 = vmax.f32 %v1576, %v1577
    %v1581 = vsel %vm1103, %v1578, %v1567
    %1583 = vst.msk [vmem:[#allocation2 + $0x8] sm:$0x3] %vm1106, %v1581
    %s1584 = scalar_lea.vmem %s3, 10
    %v1585 = vld [vmem:[%s1584] sm:$0x3]
    %v1586 = vperm.slane %v1585, 0
    %v1587 = vlaneseq
    %v1588 = vshrl.u32 %v1587, 7
    %1590 = vset.pattern.permute.xlu0 %v1588
    %1591 = vperm.xlu0 %1590, %v1586
    %v1592 = vpop.permute.xlu0 %1591
    %v1593 = vlaneseq
    %v1594 = vshrl.u32 %v1593, 7
    %v1595 = vadd.s32 %v1594, 8
    %1596 = vset.pattern.permute.xlu0 %v1595
    %1597 = vperm.xlu0 %1596, %v1586
    %v1598 = vpop.permute.xlu0 %1597
    %v1599 = vlaneseq
    %v1600 = vshrl.u32 %v1599, 7
    %v1601 = vadd.s32 %v1600, 16
    %1602 = vset.pattern.permute.xlu0 %v1601
    %1603 = vperm.xlu0 %1602, %v1586
    %v1604 = vpop.permute.xlu0 %1603
    %v1605 = vperm.slane %v1585, 1
    %v1606 = vlaneseq
    %v1607 = vshrl.u32 %v1606, 7
    %1609 = vset.pattern.permute.xlu0 %v1607
    %1610 = vperm.xlu0 %1609, %v1605
    %v1611 = vpop.permute.xlu0 %1610
    %v1612 = vlaneseq
    %v1613 = vshrl.u32 %v1612, 7
    %v1614 = vadd.s32 %v1613, 8
    %1615 = vset.pattern.permute.xlu0 %v1614
    %1616 = vperm.xlu0 %1615, %v1605
    %v1617 = vpop.permute.xlu0 %1616
    %v1618 = vlaneseq
    %v1619 = vshrl.u32 %v1618, 7
    %v1620 = vadd.s32 %v1619, 16
    %1621 = vset.pattern.permute.xlu0 %v1620
    %1622 = vperm.xlu0 %1621, %v1605
    %v1623 = vpop.permute.xlu0 %1622
    %vm1624 = vcmp.gt.f32.partialorder %v1592, 0.5
    %vm1625 = vcmp.gt.f32.partialorder %v1598, 0.5
    %vm1626 = vcmp.gt.f32.partialorder %v1604, 0.5
    %vm1627 = vcmp.gt.f32.partialorder %v1611, 0.5
    %vm1628 = vcmp.gt.f32.partialorder %v1617, 0.5
    %vm1629 = vcmp.gt.f32.partialorder %v1623, 0.5
    %v1630 = vsel %vm1624, 1, 0
    %v1631 = vsel %vm1625, 1, 0
    %v1632 = vsel %vm1626, 1, 0
    %v1633 = vsel %vm1627, 1, 0
    %v1634 = vsel %vm1628, 1, 0
    %v1635 = vsel %vm1629, 1, 0
    %vm1636 = vcmp.eq.s32.totalorder %v1630, 1
    %vm1637 = vcmp.eq.s32.totalorder %v1631, 1
    %vm1638 = vcmp.eq.s32.totalorder %v1632, 1
    %vm1639 = vcmp.eq.s32.totalorder %v1633, 1
    %vm1640 = vcmp.eq.s32.totalorder %v1634, 1
    %vm1641 = vcmp.eq.s32.totalorder %v1635, 1
    %1642 = vst [vmem:[#allocation1] ss:$2 sm:$0xff] %v921
    %s1643 = scalar_lea.vmem [#allocation1], 1
    %1644 = vst [vmem:[%s1643] ss:$2 sm:$0xff] %v922
    %s1645 = scalar_lea.vmem [#allocation1], 16
    %1646 = vst [vmem:[%s1645] ss:$2 sm:$0xff] %v923
    %s1647 = scalar_lea.vmem [#allocation1], 17
    %1648 = vst [vmem:[%s1647] ss:$2 sm:$0xff] %v924
    %s1649 = scalar_lea.vmem [#allocation1], 32
    %1650 = vst [vmem:[%s1649] ss:$2 sm:$0xff] %v925
    %v1651 = vld.sshfl [vmem:[#allocation1] sm:$0xff pattern:$0x75316420]
    %v1652 = vld.sshfl [vmem:[#allocation1 + $0x10] sm:$0xff pattern:$0x75316420]
    %v1653 = vld.sshfl [vmem:[#allocation1 + $0x20] sm:$0xff pattern:$0x75316420]
    %s1654 = scalar_lea.vmem [#allocation1], 48
    %1655 = vst [vmem:[%s1654] ss:$2 sm:$0xff] %v926
    %s1656 = scalar_lea.vmem [#allocation1], 49
    %1657 = vst [vmem:[%s1656] ss:$2 sm:$0xff] %v927
    %v1658 = vld.sshfl [vmem:[#allocation1 + $0x30] sm:$0xff pattern:$0x75316420]
    %1659 = vst [vmem:[#allocation1] ss:$2 sm:$0xff] %v928
    %1660 = vst [vmem:[%s1643] ss:$2 sm:$0xff] %v929
    %1661 = vst [vmem:[%s1645] ss:$2 sm:$0xff] %v930
    %v1662 = vld.sshfl [vmem:[#allocation1] sm:$0xff pattern:$0x75316420]
    %v1663 = vld.sshfl [vmem:[#allocation1 + $0x10] sm:$0xff pattern:$0x75316420]
    %v1670 = vsel %vm1636, %v1651, %v1043
    %v1671 = vsel %vm1637, %v1652, %v1043
    %v1672 = vsel %vm1638, %v1653, %v1043
    %v1673 = vsel %vm1639, %v1658, %v1043
    %v1674 = vsel %vm1640, %v1662, %v1043
    %v1675 = vsel %vm1641, %v1663, %v1043
    %v1676 = vsel %vm133, %v1670, -inf
    %v1677 = vsel %vm133, %v1671, -inf
    %v1678 = vsel %vm1080, %v1672, -inf
    %v1679 = vmax.f32 %v1676, %v1678
    %v1680 = vmax.f32 %v1679, %v1677
    %v1681 = vrot.slane %v1680, 4
    %v1682 = vmax.f32 %v1680, %v1681
    %v1683 = vrot.slane %v1682, 2
    %v1684 = vmax.f32 %v1682, %v1683
    %v1685 = vrot.slane %v1684, 1
    %v1686 = vmax.f32 %v1684, %v1685
    %v1687 = vsel %vm133, %v1673, -inf
    %v1688 = vsel %vm133, %v1674, -inf
    %v1689 = vsel %vm1080, %v1675, -inf
    %v1690 = vmax.f32 %v1687, %v1689
    %v1691 = vmax.f32 %v1690, %v1688
    %v1692 = vrot.slane %v1691, 4
    %v1693 = vmax.f32 %v1691, %v1692
    %v1694 = vrot.slane %v1693, 2
    %v1695 = vmax.f32 %v1693, %v1694
    %v1696 = vrot.slane %v1695, 1
    %v1697 = vmax.f32 %v1695, %v1696
    %v1700 = vsel %vm1103, %v1697, %v1686
    %1702 = vst.msk [vmem:[#allocation2 + $0xa] sm:$0x3] %vm1106, %v1700
    %s1703 = scalar_lea.vmem %s3, 12
    %v1704 = vld [vmem:[%s1703] sm:$0x3]
    %v1705 = vperm.slane %v1704, 0
    %v1706 = vlaneseq
    %v1707 = vshrl.u32 %v1706, 7
    %1709 = vset.pattern.permute.xlu0 %v1707
    %1710 = vperm.xlu0 %1709, %v1705
    %v1711 = vpop.permute.xlu0 %1710
    %v1712 = vlaneseq
    %v1713 = vshrl.u32 %v1712, 7
    %v1714 = vadd.s32 %v1713, 8
    %1715 = vset.pattern.permute.xlu0 %v1714
    %1716 = vperm.xlu0 %1715, %v1705
    %v1717 = vpop.permute.xlu0 %1716
    %v1718 = vlaneseq
    %v1719 = vshrl.u32 %v1718, 7
    %v1720 = vadd.s32 %v1719, 16
    %1721 = vset.pattern.permute.xlu0 %v1720
    %1722 = vperm.xlu0 %1721, %v1705
    %v1723 = vpop.permute.xlu0 %1722
    %v1724 = vperm.slane %v1704, 1
    %v1725 = vlaneseq
    %v1726 = vshrl.u32 %v1725, 7
    %1728 = vset.pattern.permute.xlu0 %v1726
    %1729 = vperm.xlu0 %1728, %v1724
    %v1730 = vpop.permute.xlu0 %1729
    %v1731 = vlaneseq
    %v1732 = vshrl.u32 %v1731, 7
    %v1733 = vadd.s32 %v1732, 8
    %1734 = vset.pattern.permute.xlu0 %v1733
    %1735 = vperm.xlu0 %1734, %v1724
    %v1736 = vpop.permute.xlu0 %1735
    %v1737 = vlaneseq
    %v1738 = vshrl.u32 %v1737, 7
    %v1739 = vadd.s32 %v1738, 16
    %1740 = vset.pattern.permute.xlu0 %v1739
    %1741 = vperm.xlu0 %1740, %v1724
    %v1742 = vpop.permute.xlu0 %1741
    %vm1743 = vcmp.gt.f32.partialorder %v1711, 0.5
    %vm1744 = vcmp.gt.f32.partialorder %v1717, 0.5
    %vm1745 = vcmp.gt.f32.partialorder %v1723, 0.5
    %vm1746 = vcmp.gt.f32.partialorder %v1730, 0.5
    %vm1747 = vcmp.gt.f32.partialorder %v1736, 0.5
    %vm1748 = vcmp.gt.f32.partialorder %v1742, 0.5
    %v1749 = vsel %vm1743, 1, 0
    %v1750 = vsel %vm1744, 1, 0
    %v1751 = vsel %vm1745, 1, 0
    %v1752 = vsel %vm1746, 1, 0
    %v1753 = vsel %vm1747, 1, 0
    %v1754 = vsel %vm1748, 1, 0
    %vm1755 = vcmp.eq.s32.totalorder %v1749, 1
    %vm1756 = vcmp.eq.s32.totalorder %v1750, 1
    %vm1757 = vcmp.eq.s32.totalorder %v1751, 1
    %vm1758 = vcmp.eq.s32.totalorder %v1752, 1
    %vm1759 = vcmp.eq.s32.totalorder %v1753, 1
    %vm1760 = vcmp.eq.s32.totalorder %v1754, 1
    %1761 = vst [vmem:[#allocation1] ss:$2 sm:$0xff] %v921
    %s1762 = scalar_lea.vmem [#allocation1], 1
    %1763 = vst [vmem:[%s1762] ss:$2 sm:$0xff] %v922
    %s1764 = scalar_lea.vmem [#allocation1], 16
    %1765 = vst [vmem:[%s1764] ss:$2 sm:$0xff] %v923
    %s1766 = scalar_lea.vmem [#allocation1], 17
    %1767 = vst [vmem:[%s1766] ss:$2 sm:$0xff] %v924
    %s1768 = scalar_lea.vmem [#allocation1], 32
    %1769 = vst [vmem:[%s1768] ss:$2 sm:$0xff] %v925
    %v1770 = vld.sshfl [vmem:[#allocation1] sm:$0xff pattern:$0x75316420]
    %v1771 = vld.sshfl [vmem:[#allocation1 + $0x10] sm:$0xff pattern:$0x75316420]
    %v1772 = vld.sshfl [vmem:[#allocation1 + $0x20] sm:$0xff pattern:$0x75316420]
    %s1773 = scalar_lea.vmem [#allocation1], 48
    %1774 = vst [vmem:[%s1773] ss:$2 sm:$0xff] %v926
    %s1775 = scalar_lea.vmem [#allocation1], 49
    %1776 = vst [vmem:[%s1775] ss:$2 sm:$0xff] %v927
    %v1777 = vld.sshfl [vmem:[#allocation1 + $0x30] sm:$0xff pattern:$0x75316420]
    %1778 = vst [vmem:[#allocation1] ss:$2 sm:$0xff] %v928
    %1779 = vst [vmem:[%s1762] ss:$2 sm:$0xff] %v929
    %1780 = vst [vmem:[%s1764] ss:$2 sm:$0xff] %v930
    %v1781 = vld.sshfl [vmem:[#allocation1] sm:$0xff pattern:$0x75316420]
    %v1782 = vld.sshfl [vmem:[#allocation1 + $0x10] sm:$0xff pattern:$0x75316420]
    %v1789 = vsel %vm1755, %v1770, %v1043
    %v1790 = vsel %vm1756, %v1771, %v1043
    %v1791 = vsel %vm1757, %v1772, %v1043
    %v1792 = vsel %vm1758, %v1777, %v1043
    %v1793 = vsel %vm1759, %v1781, %v1043
    %v1794 = vsel %vm1760, %v1782, %v1043
    %v1795 = vsel %vm133, %v1789, -inf
    %v1796 = vsel %vm133, %v1790, -inf
    %v1797 = vsel %vm1080, %v1791, -inf
    %v1798 = vmax.f32 %v1795, %v1797
    %v1799 = vmax.f32 %v1798, %v1796
    %v1800 = vrot.slane %v1799, 4
    %v1801 = vmax.f32 %v1799, %v1800
    %v1802 = vrot.slane %v1801, 2
    %v1803 = vmax.f32 %v1801, %v1802
    %v1804 = vrot.slane %v1803, 1
    %v1805 = vmax.f32 %v1803, %v1804
    %v1806 = vsel %vm133, %v1792, -inf
    %v1807 = vsel %vm133, %v1793, -inf
    %v1808 = vsel %vm1080, %v1794, -inf
    %v1809 = vmax.f32 %v1806, %v1808
    %v1810 = vmax.f32 %v1809, %v1807
    %v1811 = vrot.slane %v1810, 4
    %v1812 = vmax.f32 %v1810, %v1811
    %v1813 = vrot.slane %v1812, 2
    %v1814 = vmax.f32 %v1812, %v1813
    %v1815 = vrot.slane %v1814, 1
    %v1816 = vmax.f32 %v1814, %v1815
    %v1819 = vsel %vm1103, %v1816, %v1805
    %1821 = vst.msk [vmem:[#allocation2 + $0xc] sm:$0x3] %vm1106, %v1819
    %s1822 = scalar_lea.vmem %s3, 14
    %v1823 = vld [vmem:[%s1822] sm:$0x3]
    %v1824 = vperm.slane %v1823, 0
    %v1825 = vlaneseq
    %v1826 = vshrl.u32 %v1825, 7
    %1828 = vset.pattern.permute.xlu0 %v1826
    %1829 = vperm.xlu0 %1828, %v1824
    %v1830 = vpop.permute.xlu0 %1829
    %v1831 = vlaneseq
    %v1832 = vshrl.u32 %v1831, 7
    %v1833 = vadd.s32 %v1832, 8
    %1834 = vset.pattern.permute.xlu0 %v1833
    %1835 = vperm.xlu0 %1834, %v1824
    %v1836 = vpop.permute.xlu0 %1835
    %v1837 = vlaneseq
    %v1838 = vshrl.u32 %v1837, 7
    %v1839 = vadd.s32 %v1838, 16
    %1840 = vset.pattern.permute.xlu0 %v1839
    %1841 = vperm.xlu0 %1840, %v1824
    %v1842 = vpop.permute.xlu0 %1841
    %v1843 = vperm.slane %v1823, 1
    %v1844 = vlaneseq
    %v1845 = vshrl.u32 %v1844, 7
    %1847 = vset.pattern.permute.xlu0 %v1845
    %1848 = vperm.xlu0 %1847, %v1843
    %v1849 = vpop.permute.xlu0 %1848
    %v1850 = vlaneseq
    %v1851 = vshrl.u32 %v1850, 7
    %v1852 = vadd.s32 %v1851, 8
    %1853 = vset.pattern.permute.xlu0 %v1852
    %1854 = vperm.xlu0 %1853, %v1843
    %v1855 = vpop.permute.xlu0 %1854
    %v1856 = vlaneseq
    %v1857 = vshrl.u32 %v1856, 7
    %v1858 = vadd.s32 %v1857, 16
    %1859 = vset.pattern.permute.xlu0 %v1858
    %1860 = vperm.xlu0 %1859, %v1843
    %v1861 = vpop.permute.xlu0 %1860
    %vm1862 = vcmp.gt.f32.partialorder %v1830, 0.5
    %vm1863 = vcmp.gt.f32.partialorder %v1836, 0.5
    %vm1864 = vcmp.gt.f32.partialorder %v1842, 0.5
    %vm1865 = vcmp.gt.f32.partialorder %v1849, 0.5
    %vm1866 = vcmp.gt.f32.partialorder %v1855, 0.5
    %vm1867 = vcmp.gt.f32.partialorder %v1861, 0.5
    %v1868 = vsel %vm1862, 1, 0
    %v1869 = vsel %vm1863, 1, 0
    %v1870 = vsel %vm1864, 1, 0
    %v1871 = vsel %vm1865, 1, 0
    %v1872 = vsel %vm1866, 1, 0
    %v1873 = vsel %vm1867, 1, 0
    %vm1874 = vcmp.eq.s32.totalorder %v1868, 1
    %vm1875 = vcmp.eq.s32.totalorder %v1869, 1
    %vm1876 = vcmp.eq.s32.totalorder %v1870, 1
    %vm1877 = vcmp.eq.s32.totalorder %v1871, 1
    %vm1878 = vcmp.eq.s32.totalorder %v1872, 1
    %vm1879 = vcmp.eq.s32.totalorder %v1873, 1
    %1880 = vst [vmem:[#allocation1] ss:$2 sm:$0xff] %v921
    %s1881 = scalar_lea.vmem [#allocation1], 1
    %1882 = vst [vmem:[%s1881] ss:$2 sm:$0xff] %v922
    %s1883 = scalar_lea.vmem [#allocation1], 16
    %1884 = vst [vmem:[%s1883] ss:$2 sm:$0xff] %v923
    %s1885 = scalar_lea.vmem [#allocation1], 17
    %1886 = vst [vmem:[%s1885] ss:$2 sm:$0xff] %v924
    %s1887 = scalar_lea.vmem [#allocation1], 32
    %1888 = vst [vmem:[%s1887] ss:$2 sm:$0xff] %v925
    %v1889 = vld.sshfl [vmem:[#allocation1] sm:$0xff pattern:$0x75316420]
    %v1890 = vld.sshfl [vmem:[#allocation1 + $0x10] sm:$0xff pattern:$0x75316420]
    %v1891 = vld.sshfl [vmem:[#allocation1 + $0x20] sm:$0xff pattern:$0x75316420]
    %s1892 = scalar_lea.vmem [#allocation1], 48
    %1893 = vst [vmem:[%s1892] ss:$2 sm:$0xff] %v926
    %s1894 = scalar_lea.vmem [#allocation1], 49
    %1895 = vst [vmem:[%s1894] ss:$2 sm:$0xff] %v927
    %v1896 = vld.sshfl [vmem:[#allocation1 + $0x30] sm:$0xff pattern:$0x75316420]
    %1897 = vst [vmem:[#allocation1] ss:$2 sm:$0xff] %v928
    %1898 = vst [vmem:[%s1881] ss:$2 sm:$0xff] %v929
    %1899 = vst [vmem:[%s1883] ss:$2 sm:$0xff] %v930
    %v1900 = vld.sshfl [vmem:[#allocation1] sm:$0xff pattern:$0x75316420]
    %v1901 = vld.sshfl [vmem:[#allocation1 + $0x10] sm:$0xff pattern:$0x75316420]
    %v1908 = vsel %vm1874, %v1889, %v1043
    %v1909 = vsel %vm1875, %v1890, %v1043
    %v1910 = vsel %vm1876, %v1891, %v1043
    %v1911 = vsel %vm1877, %v1896, %v1043
    %v1912 = vsel %vm1878, %v1900, %v1043
    %v1913 = vsel %vm1879, %v1901, %v1043
    %v1914 = vsel %vm133, %v1908, -inf
    %v1915 = vsel %vm133, %v1909, -inf
    %v1916 = vsel %vm1080, %v1910, -inf
    %v1917 = vmax.f32 %v1914, %v1916
    %v1918 = vmax.f32 %v1917, %v1915
    %v1919 = vrot.slane %v1918, 4
    %v1920 = vmax.f32 %v1918, %v1919
    %v1921 = vrot.slane %v1920, 2
    %v1922 = vmax.f32 %v1920, %v1921
    %v1923 = vrot.slane %v1922, 1
    %v1924 = vmax.f32 %v1922, %v1923
    %v1925 = vsel %vm133, %v1911, -inf
    %v1926 = vsel %vm133, %v1912, -inf
    %v1927 = vsel %vm1080, %v1913, -inf
    %v1928 = vmax.f32 %v1925, %v1927
    %v1929 = vmax.f32 %v1928, %v1926
    %v1930 = vrot.slane %v1929, 4
    %v1931 = vmax.f32 %v1929, %v1930
    %v1932 = vrot.slane %v1931, 2
    %v1933 = vmax.f32 %v1931, %v1932
    %v1934 = vrot.slane %v1933, 1
    %v1935 = vmax.f32 %v1933, %v1934
    %v1938 = vsel %vm1103, %v1935, %v1924
    %1940 = vst.msk [vmem:[#allocation2 + $0xe] sm:$0x3] %vm1106, %v1938
    %v1941 = vld [vmem:[#allocation2] sm:$0xff]
    %v1942 = vld [vmem:[#allocation2 + $0x8] sm:$0xff]
    %v1943 = vpack.c.bf16 %v1942, %v1941
    %v1944 = vld [vmem:[%s11] sm:$0xf]
    %v1945 = vld [vmem:[%s11 + $0x4] sm:$0xf]
    %v1946 = vld [vmem:[%s11 + $0x8] sm:$0xf]
    %v1947 = vld [vmem:[%s11 + $0xc] sm:$0xf]
    %v1952 = vunpack.c.l.b16 %v1944
    %v1953 = vunpack.c.l.b16 %v1945
    %v1954 = vunpack.c.l.b16 %v1946
    %v1955 = vunpack.c.l.b16 %v1947
    %v1956 = vpack.c.b16 %v1953, %v1952
    %v1957 = vpack.c.b16 %v1955, %v1954
    %v1961 = vsel %vm133, %v1943, 0
    %1963 = vmatpush.bf16.msra.mxu0 0
    %1964 = vmatpush.bf16.msra.mxu0 0
    %1965 = vmatpush.bf16.msra.mxu0 0
    %1966 = vmatpush.bf16.msra.mxu0 0
    %1967 = vmatpush.bf16.msra.mxu0 0
    %1968 = vmatpush.bf16.msra.mxu0 0
    %1969 = vmatpush.bf16.msra.mxu0 %v1957
    %1970 = vmatpush.bf16.msra.mxu0 %v1956
    %1971 = vmatmul.bf16.gmra.mxu0 %v1961
    %v1972 = vpop.f32.mrf.mxu0
    %v1973 = vadd.f32 0.0, %v1972
    %v1974 = vpop.f32.mrf.mxu0
    %v1975 = vadd.f32 0.0, %v1974
    %1976 = vdwg.mxu0
    %v1977 = vld [vmem:[%s12] sm:$0xff]
    %v1978 = vld [vmem:[%s12 + $0x8] sm:$0xff]
    %v1979 = vld [vmem:[%s12 + $0x10] sm:$0xff]
    %v1980 = vld [vmem:[%s12 + $0x18] sm:$0xff]
    %v1981 = vld [vmem:[%s13] sm:$0x1]
    %v1982 = vlaneseq
    %v1983 = vand.u32 %v1982, 127
    %v1984 = vand.u32 %v1983, 31
    %vm1985 = vcmp.lt.s32.totalorder %v1984, 16
    %vm1986 = vcmp.ge.s32.totalorder %v1983, 96
    %vm1987 = vcmp.lt.s32.totalorder %v1983, 16
    %v1989 = vsel %vm133, 0.0, 0
    %1991 = vmatpush.msra.mxu0 0.0
    %1992 = vmatpush.msra.mxu0 0.0
    %1993 = vmatpush.msra.mxu0 0.0
    %1994 = vmatpush.msra.mxu0 0.0
    %1995 = vmatpush.msra.mxu0 0.0
    %1996 = vmatpush.msra.mxu0 0.0
    %1997 = vmatpush.msra.mxu0 0.0
    %1998 = vmatpush.msra.mxu0 0.0
    %1999 = vmatpush.msra.mxu0 0.0
    %2000 = vmatpush.msra.mxu0 0.0
    %2001 = vmatpush.msra.mxu0 0.0
    %2002 = vmatpush.msra.mxu0 0.0
    %2003 = vmatpush.msra.mxu0 %v1980
    %2004 = vmatpush.msra.mxu0 %v1979
    %2005 = vmatpush.msra.mxu0 %v1978
    %2006 = vmatpush.msra.mxu0 %v1977
    %2007 = vmatmul.f32.gmra.mxu0 %v1989
    %v2008 = vpop.f32.mrf.mxu0
    %v2009 = vadd.f32 0.0, %v2008
    %2010 = vdwg.mxu0
    %v2011 = vsel %vm1985, 1, 0
    %vm2012 = vcmp.eq.s32.totalorder %v2011, 1
    %v2014 = vrot.slane %v1975, 6
    %v2016 = vsel %vm2012, %v1973, %v2014
    %v2017 = vadd.f32 %v2016, %v2009
    %v2019 = vperm.slane %v1981, 0
    %v2021 = vadd.f32 %v2017, %v2019
    %v2022 = vxor.u32 %v2021, 2147483648
    %v2023 = vmul.f32 %v2022, 1.442695
    %v2024 = vpow.pop %v2023
    %v2025 = vadd.f32 %v2024, 1.0
    %v2026 = vrcp.pop %v2025
    %v2027 = vmul.f32 %v2025, %v2026
    %v2028 = vsub.f32 1.0, %v2027
    %v2029 = vmul.f32 %v2026, %v2028
    %v2030 = vadd.f32 %v2026, %v2029
    %vm2031 = vweird.f32 %v2025
    %vm2032 = vweird.f32 %v2026
    %vm2033 = vmor %vm2031, %vm2032
    %v2034 = vsel %vm2033, %v2026, %v2030
    %v2035 = vand.u32 2147483647, %v2025
    %vm2036 = vcmp.eq.f32.partialorder %v2035, 8.507059e+37
    %v2037 = vand.u32 %v2025, 2147483648
    %v2038 = vor.u32 1.1754944e-38, %v2037
    %v2039 = vsel %vm2036, %v2038, %v2034
    %v2040 = vmul.f32 1.0, %v2039
    %v2041 = vtanh.pop %v2021
    %v2042 = vsel %vm1986, 1, 0
    %vm2043 = vcmp.eq.s32.totalorder %v2042, 1
    %v2044 = vsel %vm2043, %v2041, %v2040
    %v2045 = vmul.f32 %v2044, 0.0
    %2047 = vrot.lane.b32.xlu0 %v2044, 32
    %v2048 = vpop.permute.xlu0 %2047
    %v2050 = vmul.f32 %v2044, %v2048
    %2052 = vrot.lane.b32.xlu0 %v2050, 32
    %v2053 = vpop.permute.xlu0 %2052
    %v2055 = vadd.f32 %v2045, %v2053
    %v2056 = vtanh.pop %v2055
    %2058 = vrot.lane.b32.xlu0 %v2056, 32
    %v2059 = vpop.permute.xlu0 %2058
    %v2061 = vmul.f32 %v2044, %v2059
    %v2062 = vld [vmem:[%s4] sm:$0x3]
    %s2063 = scalar_lea.vmem %s4, 14
    %v2064 = vld [vmem:[%s2063] sm:$0x3]
    %v2065 = vsel %vm1987, 1, 0
    %vm2066 = vcmp.eq.s32.totalorder %v2065, 1
    %2068 = vset.pattern.permute.xlu0 0
    %2069 = vperm.xlu0 %2068, %v2062
    %v2070 = vpop.permute.xlu0 %2069
    %2073 = vset.pattern.permute.xlu0 0
    %2074 = vperm.xlu0 %2073, %v2064
    %v2075 = vpop.permute.xlu0 %2074
    %v2077 = vsel %vm2066, %v2070, %v2075
    %vm2078 = vcmp.gt.f32.partialorder %v2077, 0.5
    %2080 = vrot.lane.b32.xlu0 %v2061, 64
    %v2081 = vpop.permute.xlu0 %2080
    %v2083 = vsel %vm2078, %v2081, 0.0
    %2085 = vrot.lane.b32.xlu0 %v2055, 96
    %v2086 = vpop.permute.xlu0 %2085
    %v2088 = vsel %vm2078, %v2086, 0.0
    %v2089 = vmul.f32 %v2070, %v2061
    %2091 = vrot.lane.b32.xlu0 %v2089, 64
    %v2092 = vpop.permute.xlu0 %2091
    %vm2094 = vcmask 123904
    %2095 = vst.msk [vmem:[#allocation3] sm:$0x3] %vm2094, %v2092
    %v2096 = vmul.f32 %v2075, %v2061
    %2098 = vrot.lane.b32.xlu0 %v2096, 64
    %v2099 = vpop.permute.xlu0 %2098
    %vm2101 = vcmask 255104
    %2102 = vst.msk [vmem:[#allocation3 + $0xe] sm:$0x3] %vm2101, %v2099
    %v2104 = vsel %vm133, %v2083, 0
    %2106 = vmatpush.msra.mxu0 0.0
    %2107 = vmatpush.msra.mxu0 0.0
    %2108 = vmatpush.msra.mxu0 0.0
    %2109 = vmatpush.msra.mxu0 0.0
    %2110 = vmatpush.msra.mxu0 0.0
    %2111 = vmatpush.msra.mxu0 0.0
    %2112 = vmatpush.msra.mxu0 0.0
    %2113 = vmatpush.msra.mxu0 0.0
    %2114 = vmatpush.msra.mxu0 0.0
    %2115 = vmatpush.msra.mxu0 0.0
    %2116 = vmatpush.msra.mxu0 0.0
    %2117 = vmatpush.msra.mxu0 0.0
    %2118 = vmatpush.msra.mxu0 %v1980
    %2119 = vmatpush.msra.mxu0 %v1979
    %2120 = vmatpush.msra.mxu0 %v1978
    %2121 = vmatpush.msra.mxu0 %v1977
    %2122 = vmatmul.f32.gmra.mxu0 %v2104
    %v2123 = vpop.f32.mrf.mxu0
    %v2124 = vadd.f32 0.0, %v2123
    %2125 = vdwg.mxu0
    %v2126 = vrot.slane %v1975, 2
    %v2128 = vsel %vm2012, %v1973, %v2126
    %v2130 = vrot.slane %v2124, 6
    %v2132 = vadd.f32 %v2128, %v2130
    %v2133 = vadd.f32 %v2132, %v2019
    %v2134 = vxor.u32 %v2133, 2147483648
    %v2135 = vmul.f32 %v2134, 1.442695
    %v2136 = vpow.pop %v2135
    %v2137 = vadd.f32 %v2136, 1.0
    %v2138 = vrcp.pop %v2137
    %v2139 = vmul.f32 %v2137, %v2138
    %v2140 = vsub.f32 1.0, %v2139
    %v2141 = vmul.f32 %v2138, %v2140
    %v2142 = vadd.f32 %v2138, %v2141
    %vm2143 = vweird.f32 %v2137
    %vm2144 = vweird.f32 %v2138
    %vm2145 = vmor %vm2143, %vm2144
    %v2146 = vsel %vm2145, %v2138, %v2142
    %v2147 = vand.u32 2147483647, %v2137
    %vm2148 = vcmp.eq.f32.partialorder %v2147, 8.507059e+37
    %v2149 = vand.u32 %v2137, 2147483648
    %v2150 = vor.u32 1.1754944e-38, %v2149
    %v2151 = vsel %vm2148, %v2150, %v2146
    %v2152 = vmul.f32 1.0, %v2151
    %v2153 = vtanh.pop %v2133
    %v2154 = vsel %vm2043, %v2153, %v2152
    %v2156 = vrot.slane %v2088, 6
    %2157 = vrot.lane.b32.xlu0 %v2156, 32
    %v2158 = vpop.permute.xlu0 %2157
    %v2160 = vmul.f32 %v2154, %v2158
    %2162 = vrot.lane.b32.xlu0 %v2154, 32
    %v2163 = vpop.permute.xlu0 %2162
    %v2165 = vmul.f32 %v2154, %v2163
    %2167 = vrot.lane.b32.xlu0 %v2165, 32
    %v2168 = vpop.permute.xlu0 %2167
    %v2170 = vadd.f32 %v2160, %v2168
    %v2171 = vtanh.pop %v2170
    %2173 = vrot.lane.b32.xlu0 %v2171, 32
    %v2174 = vpop.permute.xlu0 %2173
    %v2176 = vmul.f32 %v2154, %v2174
    %s2177 = scalar_lea.vmem %s4, 2
    %v2178 = vld [vmem:[%s2177] sm:$0x3]
    %s2179 = scalar_lea.vmem %s4, 12
    %v2180 = vld [vmem:[%s2179] sm:$0x3]
    %2182 = vset.pattern.permute.xlu0 0
    %2183 = vperm.xlu0 %2182, %v2178
    %v2184 = vpop.permute.xlu0 %2183
    %2187 = vset.pattern.permute.xlu0 0
    %2188 = vperm.xlu0 %2187, %v2180
    %v2189 = vpop.permute.xlu0 %2188
    %v2191 = vsel %vm2066, %v2184, %v2189
    %vm2192 = vcmp.gt.f32.partialorder %v2191, 0.5
    %v2194 = vrot.slane %v2176, 2
    %2195 = vrot.lane.b32.xlu0 %v2194, 64
    %v2196 = vpop.permute.xlu0 %2195
    %v2198 = vsel %vm2192, %v2196, %v2083
    %v2200 = vrot.slane %v2170, 2
    %2201 = vrot.lane.b32.xlu0 %v2200, 96
    %v2202 = vpop.permute.xlu0 %2201
    %v2204 = vsel %vm2192, %v2202, %v2088
    %v2205 = vmul.f32 %v2184, %v2196
    %2206 = vst.msk [vmem:[#allocation3 + $0x2] sm:$0x3] %vm2094, %v2205
    %2207 = vrot.lane.b32.xlu0 %v2194, 48
    %v2208 = vpop.permute.xlu0 %2207
    %v2210 = vmul.f32 %v2189, %v2208
    %2212 = vrot.lane.b32.xlu0 %v2210, 16
    %v2213 = vpop.permute.xlu0 %2212
    %2215 = vst.msk [vmem:[#allocation3 + $0xc] sm:$0x3] %vm2101, %v2213
    %v2217 = vsel %vm133, %v2198, 0
    %2219 = vmatpush.msra.mxu0 0.0
    %2220 = vmatpush.msra.mxu0 0.0
    %2221 = vmatpush.msra.mxu0 0.0
    %2222 = vmatpush.msra.mxu0 0.0
    %2223 = vmatpush.msra.mxu0 0.0
    %2224 = vmatpush.msra.mxu0 0.0
    %2225 = vmatpush.msra.mxu0 0.0
    %2226 = vmatpush.msra.mxu0 0.0
    %2227 = vmatpush.msra.mxu0 0.0
    %2228 = vmatpush.msra.mxu0 0.0
    %2229 = vmatpush.msra.mxu0 0.0
    %2230 = vmatpush.msra.mxu0 0.0
    %2231 = vmatpush.msra.mxu0 %v1980
    %2232 = vmatpush.msra.mxu0 %v1979
    %2233 = vmatpush.msra.mxu0 %v1978
    %2234 = vmatpush.msra.mxu0 %v1977
    %2235 = vmatmul.f32.gmra.mxu0 %v2217
    %v2236 = vpop.f32.mrf.mxu0
    %v2237 = vadd.f32 0.0, %v2236
    %2238 = vdwg.mxu0
    %v2240 = vrot.slane %v2237, 4
    %v2242 = vadd.f32 %v2016, %v2240
    %v2243 = vadd.f32 %v2242, %v2019
    %v2244 = vxor.u32 %v2243, 2147483648
    %v2245 = vmul.f32 %v2244, 1.442695
    %v2246 = vpow.pop %v2245
    %v2247 = vadd.f32 %v2246, 1.0
    %v2248 = vrcp.pop %v2247
    %v2249 = vmul.f32 %v2247, %v2248
    %v2250 = vsub.f32 1.0, %v2249
    %v2251 = vmul.f32 %v2248, %v2250
    %v2252 = vadd.f32 %v2248, %v2251
    %vm2253 = vweird.f32 %v2247
    %vm2254 = vweird.f32 %v2248
    %vm2255 = vmor %vm2253, %vm2254
    %v2256 = vsel %vm2255, %v2248, %v2252
    %v2257 = vand.u32 2147483647, %v2247
    %vm2258 = vcmp.eq.f32.partialorder %v2257, 8.507059e+37
    %v2259 = vand.u32 %v2247, 2147483648
    %v2260 = vor.u32 1.1754944e-38, %v2259
    %v2261 = vsel %vm2258, %v2260, %v2256
    %v2262 = vmul.f32 1.0, %v2261
    %v2263 = vtanh.pop %v2243
    %v2264 = vsel %vm2043, %v2263, %v2262
    %v2266 = vrot.slane %v2204, 4
    %2267 = vrot.lane.b32.xlu0 %v2266, 32
    %v2268 = vpop.permute.xlu0 %2267
    %v2270 = vmul.f32 %v2264, %v2268
    %2272 = vrot.lane.b32.xlu0 %v2264, 32
    %v2273 = vpop.permute.xlu0 %2272
    %v2275 = vmul.f32 %v2264, %v2273
    %2277 = vrot.lane.b32.xlu0 %v2275, 32
    %v2278 = vpop.permute.xlu0 %2277
    %v2280 = vadd.f32 %v2270, %v2278
    %v2281 = vtanh.pop %v2280
    %2283 = vrot.lane.b32.xlu0 %v2281, 32
    %v2284 = vpop.permute.xlu0 %2283
    %v2286 = vmul.f32 %v2264, %v2284
    %s2287 = scalar_lea.vmem %s4, 4
    %v2288 = vld [vmem:[%s2287] sm:$0x3]
    %s2289 = scalar_lea.vmem %s4, 10
    %v2290 = vld [vmem:[%s2289] sm:$0x3]
    %2292 = vset.pattern.permute.xlu0 0
    %2293 = vperm.xlu0 %2292, %v2288
    %v2294 = vpop.permute.xlu0 %2293
    %2297 = vset.pattern.permute.xlu0 0
    %2298 = vperm.xlu0 %2297, %v2290
    %v2299 = vpop.permute.xlu0 %2298
    %v2301 = vsel %vm2066, %v2294, %v2299
    %vm2302 = vcmp.gt.f32.partialorder %v2301, 0.5
    %v2304 = vrot.slane %v2286, 4
    %2305 = vrot.lane.b32.xlu0 %v2304, 64
    %v2306 = vpop.permute.xlu0 %2305
    %v2308 = vsel %vm2302, %v2306, %v2198
    %v2310 = vrot.slane %v2280, 4
    %2311 = vrot.lane.b32.xlu0 %v2310, 96
    %v2312 = vpop.permute.xlu0 %2311
    %v2314 = vsel %vm2302, %v2312, %v2204
    %v2315 = vmul.f32 %v2294, %v2306
    %2316 = vst.msk [vmem:[#allocation3 + $0x4] sm:$0x3] %vm2094, %v2315
    %2317 = vrot.lane.b32.xlu0 %v2304, 48
    %v2318 = vpop.permute.xlu0 %2317
    %v2320 = vmul.f32 %v2299, %v2318
    %2322 = vrot.lane.b32.xlu0 %v2320, 16
    %v2323 = vpop.permute.xlu0 %2322
    %2325 = vst.msk [vmem:[#allocation3 + $0xa] sm:$0x3] %vm2101, %v2323
    %v2327 = vsel %vm133, %v2308, 0
    %2329 = vmatpush.msra.mxu0 0.0
    %2330 = vmatpush.msra.mxu0 0.0
    %2331 = vmatpush.msra.mxu0 0.0
    %2332 = vmatpush.msra.mxu0 0.0
    %2333 = vmatpush.msra.mxu0 0.0
    %2334 = vmatpush.msra.mxu0 0.0
    %2335 = vmatpush.msra.mxu0 0.0
    %2336 = vmatpush.msra.mxu0 0.0
    %2337 = vmatpush.msra.mxu0 0.0
    %2338 = vmatpush.msra.mxu0 0.0
    %2339 = vmatpush.msra.mxu0 0.0
    %2340 = vmatpush.msra.mxu0 0.0
    %2341 = vmatpush.msra.mxu0 %v1980
    %2342 = vmatpush.msra.mxu0 %v1979
    %2343 = vmatpush.msra.mxu0 %v1978
    %2344 = vmatpush.msra.mxu0 %v1977
    %2345 = vmatmul.f32.gmra.mxu0 %v2327
    %v2346 = vpop.f32.mrf.mxu0
    %v2347 = vadd.f32 0.0, %v2346
    %2348 = vdwg.mxu0
    %v2350 = vrot.slane %v2347, 2
    %v2352 = vadd.f32 %v2128, %v2350
    %v2353 = vadd.f32 %v2352, %v2019
    %v2354 = vxor.u32 %v2353, 2147483648
    %v2355 = vmul.f32 %v2354, 1.442695
    %v2356 = vpow.pop %v2355
    %v2357 = vadd.f32 %v2356, 1.0
    %v2358 = vrcp.pop %v2357
    %v2359 = vmul.f32 %v2357, %v2358
    %v2360 = vsub.f32 1.0, %v2359
    %v2361 = vmul.f32 %v2358, %v2360
    %v2362 = vadd.f32 %v2358, %v2361
    %vm2363 = vweird.f32 %v2357
    %vm2364 = vweird.f32 %v2358
    %vm2365 = vmor %vm2363, %vm2364
    %v2366 = vsel %vm2365, %v2358, %v2362
    %v2367 = vand.u32 2147483647, %v2357
    %vm2368 = vcmp.eq.f32.partialorder %v2367, 8.507059e+37
    %v2369 = vand.u32 %v2357, 2147483648
    %v2370 = vor.u32 1.1754944e-38, %v2369
    %v2371 = vsel %vm2368, %v2370, %v2366
    %v2372 = vmul.f32 1.0, %v2371
    %v2373 = vtanh.pop %v2353
    %v2374 = vsel %vm2043, %v2373, %v2372
    %v2376 = vrot.slane %v2314, 2
    %2377 = vrot.lane.b32.xlu0 %v2376, 32
    %v2378 = vpop.permute.xlu0 %2377
    %v2380 = vmul.f32 %v2374, %v2378
    %2382 = vrot.lane.b32.xlu0 %v2374, 32
    %v2383 = vpop.permute.xlu0 %2382
    %v2385 = vmul.f32 %v2374, %v2383
    %2387 = vrot.lane.b32.xlu0 %v2385, 32
    %v2388 = vpop.permute.xlu0 %2387
    %v2390 = vadd.f32 %v2380, %v2388
    %v2391 = vtanh.pop %v2390
    %2393 = vrot.lane.b32.xlu0 %v2391, 32
    %v2394 = vpop.permute.xlu0 %2393
    %v2396 = vmul.f32 %v2374, %v2394
    %s2397 = scalar_lea.vmem %s4, 6
    %v2398 = vld [vmem:[%s2397] sm:$0x3]
    %s2399 = scalar_lea.vmem %s4, 8
    %v2400 = vld [vmem:[%s2399] sm:$0x3]
    %2402 = vset.pattern.permute.xlu0 0
    %2403 = vperm.xlu0 %2402, %v2398
    %v2404 = vpop.permute.xlu0 %2403
    %2407 = vset.pattern.permute.xlu0 0
    %2408 = vperm.xlu0 %2407, %v2400
    %v2409 = vpop.permute.xlu0 %2408
    %v2411 = vsel %vm2066, %v2404, %v2409
    %vm2412 = vcmp.gt.f32.partialorder %v2411, 0.5
    %v2414 = vrot.slane %v2396, 6
    %2415 = vrot.lane.b32.xlu0 %v2414, 64
    %v2416 = vpop.permute.xlu0 %2415
    %v2418 = vsel %vm2412, %v2416, %v2308
    %v2420 = vrot.slane %v2390, 6
    %2421 = vrot.lane.b32.xlu0 %v2420, 96
    %v2422 = vpop.permute.xlu0 %2421
    %v2424 = vsel %vm2412, %v2422, %v2314
    %v2425 = vmul.f32 %v2404, %v2416
    %2426 = vst.msk [vmem:[#allocation3 + $0x6] sm:$0x3] %vm2094, %v2425
    %2427 = vrot.lane.b32.xlu0 %v2414, 48
    %v2428 = vpop.permute.xlu0 %2427
    %v2430 = vmul.f32 %v2409, %v2428
    %2432 = vrot.lane.b32.xlu0 %v2430, 16
    %v2433 = vpop.permute.xlu0 %2432
    %2435 = vst.msk [vmem:[#allocation3 + $0x8] sm:$0x3] %vm2101, %v2433
    %v2437 = vsel %vm133, %v2418, 0
    %2439 = vmatpush.msra.mxu0 0.0
    %2440 = vmatpush.msra.mxu0 0.0
    %2441 = vmatpush.msra.mxu0 0.0
    %2442 = vmatpush.msra.mxu0 0.0
    %2443 = vmatpush.msra.mxu0 0.0
    %2444 = vmatpush.msra.mxu0 0.0
    %2445 = vmatpush.msra.mxu0 0.0
    %2446 = vmatpush.msra.mxu0 0.0
    %2447 = vmatpush.msra.mxu0 0.0
    %2448 = vmatpush.msra.mxu0 0.0
    %2449 = vmatpush.msra.mxu0 0.0
    %2450 = vmatpush.msra.mxu0 0.0
    %2451 = vmatpush.msra.mxu0 %v1980
    %2452 = vmatpush.msra.mxu0 %v1979
    %2453 = vmatpush.msra.mxu0 %v1978
    %2454 = vmatpush.msra.mxu0 %v1977
    %2455 = vmatmul.f32.gmra.mxu0 %v2437
    %v2456 = vpop.f32.mrf.mxu0
    %v2457 = vadd.f32 0.0, %v2456
    %2458 = vdwg.mxu0
    %v2460 = vrot.slane %v1973, 6
    %v2462 = vsel %vm2012, %v1975, %v2460
    %v2463 = vadd.f32 %v2462, %v2457
    %v2464 = vadd.f32 %v2463, %v2019
    %v2465 = vxor.u32 %v2464, 2147483648
    %v2466 = vmul.f32 %v2465, 1.442695
    %v2467 = vpow.pop %v2466
    %v2468 = vadd.f32 %v2467, 1.0
    %v2469 = vrcp.pop %v2468
    %v2470 = vmul.f32 %v2468, %v2469
    %v2471 = vsub.f32 1.0, %v2470
    %v2472 = vmul.f32 %v2469, %v2471
    %v2473 = vadd.f32 %v2469, %v2472
    %vm2474 = vweird.f32 %v2468
    %vm2475 = vweird.f32 %v2469
    %vm2476 = vmor %vm2474, %vm2475
    %v2477 = vsel %vm2476, %v2469, %v2473
    %v2478 = vand.u32 2147483647, %v2468
    %vm2479 = vcmp.eq.f32.partialorder %v2478, 8.507059e+37
    %v2480 = vand.u32 %v2468, 2147483648
    %v2481 = vor.u32 1.1754944e-38, %v2480
    %v2482 = vsel %vm2479, %v2481, %v2477
    %v2483 = vmul.f32 1.0, %v2482
    %v2484 = vtanh.pop %v2464
    %v2485 = vsel %vm2043, %v2484, %v2483
    %2487 = vrot.lane.b32.xlu0 %v2424, 32
    %v2488 = vpop.permute.xlu0 %2487
    %v2490 = vmul.f32 %v2485, %v2488
    %2492 = vrot.lane.b32.xlu0 %v2485, 32
    %v2493 = vpop.permute.xlu0 %2492
    %v2495 = vmul.f32 %v2485, %v2493
    %2497 = vrot.lane.b32.xlu0 %v2495, 32
    %v2498 = vpop.permute.xlu0 %2497
    %v2500 = vadd.f32 %v2490, %v2498
    %v2501 = vtanh.pop %v2500
    %2503 = vrot.lane.b32.xlu0 %v2501, 32
    %v2504 = vpop.permute.xlu0 %2503
    %v2506 = vmul.f32 %v2485, %v2504
    %v2507 = vld [vmem:[%s2399] sm:$0x3]
    %v2508 = vld [vmem:[%s2397] sm:$0x3]
    %2510 = vset.pattern.permute.xlu0 0
    %2511 = vperm.xlu0 %2510, %v2507
    %v2512 = vpop.permute.xlu0 %2511
    %2515 = vset.pattern.permute.xlu0 0
    %2516 = vperm.xlu0 %2515, %v2508
    %v2517 = vpop.permute.xlu0 %2516
    %v2519 = vsel %vm2066, %v2512, %v2517
    %vm2520 = vcmp.gt.f32.partialorder %v2519, 0.5
    %2522 = vrot.lane.b32.xlu0 %v2506, 64
    %v2523 = vpop.permute.xlu0 %2522
    %v2525 = vsel %vm2520, %v2523, %v2418
    %2527 = vrot.lane.b32.xlu0 %v2500, 96
    %v2528 = vpop.permute.xlu0 %2527
    %v2530 = vsel %vm2520, %v2528, %v2424
    %v2531 = vmul.f32 %v2512, %v2506
    %2533 = vrot.lane.b32.xlu0 %v2531, 64
    %v2534 = vpop.permute.xlu0 %2533
    %2536 = vst.msk [vmem:[#allocation3 + $0x8] sm:$0x3] %vm2094, %v2534
    %v2537 = vmul.f32 %v2517, %v2506
    %2539 = vrot.lane.b32.xlu0 %v2537, 64
    %v2540 = vpop.permute.xlu0 %2539
    %2542 = vst.msk [vmem:[#allocation3 + $0x6] sm:$0x3] %vm2101, %v2540
    %v2544 = vsel %vm133, %v2525, 0
    %2546 = vmatpush.msra.mxu0 0.0
    %2547 = vmatpush.msra.mxu0 0.0
    %2548 = vmatpush.msra.mxu0 0.0
    %2549 = vmatpush.msra.mxu0 0.0
    %2550 = vmatpush.msra.mxu0 0.0
    %2551 = vmatpush.msra.mxu0 0.0
    %2552 = vmatpush.msra.mxu0 0.0
    %2553 = vmatpush.msra.mxu0 0.0
    %2554 = vmatpush.msra.mxu0 0.0
    %2555 = vmatpush.msra.mxu0 0.0
    %2556 = vmatpush.msra.mxu0 0.0
    %2557 = vmatpush.msra.mxu0 0.0
    %2558 = vmatpush.msra.mxu0 %v1980
    %2559 = vmatpush.msra.mxu0 %v1979
    %2560 = vmatpush.msra.mxu0 %v1978
    %2561 = vmatpush.msra.mxu0 %v1977
    %2562 = vmatmul.f32.gmra.mxu0 %v2544
    %v2563 = vpop.f32.mrf.mxu0
    %v2564 = vadd.f32 0.0, %v2563
    %2565 = vdwg.mxu0
    %v2566 = vrot.slane %v1973, 2
    %v2568 = vsel %vm2012, %v1975, %v2566
    %v2570 = vrot.slane %v2564, 6
    %v2572 = vadd.f32 %v2568, %v2570
    %v2573 = vadd.f32 %v2572, %v2019
    %v2574 = vxor.u32 %v2573, 2147483648
    %v2575 = vmul.f32 %v2574, 1.442695
    %v2576 = vpow.pop %v2575
    %v2577 = vadd.f32 %v2576, 1.0
    %v2578 = vrcp.pop %v2577
    %v2579 = vmul.f32 %v2577, %v2578
    %v2580 = vsub.f32 1.0, %v2579
    %v2581 = vmul.f32 %v2578, %v2580
    %v2582 = vadd.f32 %v2578, %v2581
    %vm2583 = vweird.f32 %v2577
    %vm2584 = vweird.f32 %v2578
    %vm2585 = vmor %vm2583, %vm2584
    %v2586 = vsel %vm2585, %v2578, %v2582
    %v2587 = vand.u32 2147483647, %v2577
    %vm2588 = vcmp.eq.f32.partialorder %v2587, 8.507059e+37
    %v2589 = vand.u32 %v2577, 2147483648
    %v2590 = vor.u32 1.1754944e-38, %v2589
    %v2591 = vsel %vm2588, %v2590, %v2586
    %v2592 = vmul.f32 1.0, %v2591
    %v2593 = vtanh.pop %v2573
    %v2594 = vsel %vm2043, %v2593, %v2592
    %v2596 = vrot.slane %v2530, 6
    %2597 = vrot.lane.b32.xlu0 %v2596, 32
    %v2598 = vpop.permute.xlu0 %2597
    %v2600 = vmul.f32 %v2594, %v2598
    %2602 = vrot.lane.b32.xlu0 %v2594, 32
    %v2603 = vpop.permute.xlu0 %2602
    %v2605 = vmul.f32 %v2594, %v2603
    %2607 = vrot.lane.b32.xlu0 %v2605, 32
    %v2608 = vpop.permute.xlu0 %2607
    %v2610 = vadd.f32 %v2600, %v2608
    %v2611 = vtanh.pop %v2610
    %2613 = vrot.lane.b32.xlu0 %v2611, 32
    %v2614 = vpop.permute.xlu0 %2613
    %v2616 = vmul.f32 %v2594, %v2614
    %v2617 = vld [vmem:[%s2289] sm:$0x3]
    %v2618 = vld [vmem:[%s2287] sm:$0x3]
    %2620 = vset.pattern.permute.xlu0 0
    %2621 = vperm.xlu0 %2620, %v2617
    %v2622 = vpop.permute.xlu0 %2621
    %2625 = vset.pattern.permute.xlu0 0
    %2626 = vperm.xlu0 %2625, %v2618
    %v2627 = vpop.permute.xlu0 %2626
    %v2629 = vsel %vm2066, %v2622, %v2627
    %vm2630 = vcmp.gt.f32.partialorder %v2629, 0.5
    %v2632 = vrot.slane %v2616, 2
    %2633 = vrot.lane.b32.xlu0 %v2632, 64
    %v2634 = vpop.permute.xlu0 %2633
    %v2636 = vsel %vm2630, %v2634, %v2525
    %v2638 = vrot.slane %v2610, 2
    %2639 = vrot.lane.b32.xlu0 %v2638, 96
    %v2640 = vpop.permute.xlu0 %2639
    %v2642 = vsel %vm2630, %v2640, %v2530
    %v2643 = vmul.f32 %v2622, %v2634
    %2644 = vst.msk [vmem:[#allocation3 + $0xa] sm:$0x3] %vm2094, %v2643
    %2645 = vrot.lane.b32.xlu0 %v2632, 48
    %v2646 = vpop.permute.xlu0 %2645
    %v2648 = vmul.f32 %v2627, %v2646
    %2650 = vrot.lane.b32.xlu0 %v2648, 16
    %v2651 = vpop.permute.xlu0 %2650
    %2653 = vst.msk [vmem:[#allocation3 + $0x4] sm:$0x3] %vm2101, %v2651
    %v2655 = vsel %vm133, %v2636, 0
    %2657 = vmatpush.msra.mxu0 0.0
    %2658 = vmatpush.msra.mxu0 0.0
    %2659 = vmatpush.msra.mxu0 0.0
    %2660 = vmatpush.msra.mxu0 0.0
    %2661 = vmatpush.msra.mxu0 0.0
    %2662 = vmatpush.msra.mxu0 0.0
    %2663 = vmatpush.msra.mxu0 0.0
    %2664 = vmatpush.msra.mxu0 0.0
    %2665 = vmatpush.msra.mxu0 0.0
    %2666 = vmatpush.msra.mxu0 0.0
    %2667 = vmatpush.msra.mxu0 0.0
    %2668 = vmatpush.msra.mxu0 0.0
    %2669 = vmatpush.msra.mxu0 %v1980
    %2670 = vmatpush.msra.mxu0 %v1979
    %2671 = vmatpush.msra.mxu0 %v1978
    %2672 = vmatpush.msra.mxu0 %v1977
    %2673 = vmatmul.f32.gmra.mxu0 %v2655
    %v2674 = vpop.f32.mrf.mxu0
    %v2675 = vadd.f32 0.0, %v2674
    %2676 = vdwg.mxu0
    %v2678 = vrot.slane %v2675, 4
    %v2680 = vadd.f32 %v2462, %v2678
    %v2681 = vadd.f32 %v2680, %v2019
    %v2682 = vxor.u32 %v2681, 2147483648
    %v2683 = vmul.f32 %v2682, 1.442695
    %v2684 = vpow.pop %v2683
    %v2685 = vadd.f32 %v2684, 1.0
    %v2686 = vrcp.pop %v2685
    %v2687 = vmul.f32 %v2685, %v2686
    %v2688 = vsub.f32 1.0, %v2687
    %v2689 = vmul.f32 %v2686, %v2688
    %v2690 = vadd.f32 %v2686, %v2689
    %vm2691 = vweird.f32 %v2685
    %vm2692 = vweird.f32 %v2686
    %vm2693 = vmor %vm2691, %vm2692
    %v2694 = vsel %vm2693, %v2686, %v2690
    %v2695 = vand.u32 2147483647, %v2685
    %vm2696 = vcmp.eq.f32.partialorder %v2695, 8.507059e+37
    %v2697 = vand.u32 %v2685, 2147483648
    %v2698 = vor.u32 1.1754944e-38, %v2697
    %v2699 = vsel %vm2696, %v2698, %v2694
    %v2700 = vmul.f32 1.0, %v2699
    %v2701 = vtanh.pop %v2681
    %v2702 = vsel %vm2043, %v2701, %v2700
    %v2704 = vrot.slane %v2642, 4
    %2705 = vrot.lane.b32.xlu0 %v2704, 32
    %v2706 = vpop.permute.xlu0 %2705
    %v2708 = vmul.f32 %v2702, %v2706
    %2710 = vrot.lane.b32.xlu0 %v2702, 32
    %v2711 = vpop.permute.xlu0 %2710
    %v2713 = vmul.f32 %v2702, %v2711
    %2715 = vrot.lane.b32.xlu0 %v2713, 32
    %v2716 = vpop.permute.xlu0 %2715
    %v2718 = vadd.f32 %v2708, %v2716
    %v2719 = vtanh.pop %v2718
    %2721 = vrot.lane.b32.xlu0 %v2719, 32
    %v2722 = vpop.permute.xlu0 %2721
    %v2724 = vmul.f32 %v2702, %v2722
    %v2725 = vld [vmem:[%s2179] sm:$0x3]
    %v2726 = vld [vmem:[%s2177] sm:$0x3]
    %2728 = vset.pattern.permute.xlu0 0
    %2729 = vperm.xlu0 %2728, %v2725
    %v2730 = vpop.permute.xlu0 %2729
    %2733 = vset.pattern.permute.xlu0 0
    %2734 = vperm.xlu0 %2733, %v2726
    %v2735 = vpop.permute.xlu0 %2734
    %v2737 = vsel %vm2066, %v2730, %v2735
    %vm2738 = vcmp.gt.f32.partialorder %v2737, 0.5
    %v2740 = vrot.slane %v2724, 4
    %2741 = vrot.lane.b32.xlu0 %v2740, 64
    %v2742 = vpop.permute.xlu0 %2741
    %v2744 = vsel %vm2738, %v2742, %v2636
    %v2746 = vrot.slane %v2718, 4
    %2747 = vrot.lane.b32.xlu0 %v2746, 96
    %v2748 = vpop.permute.xlu0 %2747
    %v2750 = vsel %vm2738, %v2748, %v2642
    %v2751 = vmul.f32 %v2730, %v2742
    %2752 = vst.msk [vmem:[#allocation3 + $0xc] sm:$0x3] %vm2094, %v2751
    %2753 = vrot.lane.b32.xlu0 %v2740, 48
    %v2754 = vpop.permute.xlu0 %2753
    %v2756 = vmul.f32 %v2735, %v2754
    %2758 = vrot.lane.b32.xlu0 %v2756, 16
    %v2759 = vpop.permute.xlu0 %2758
    %2761 = vst.msk [vmem:[#allocation3 + $0x2] sm:$0x3] %vm2101, %v2759
    %v2763 = vsel %vm133, %v2744, 0
    %2765 = vmatpush.msra.mxu0 0.0
    %2766 = vmatpush.msra.mxu0 0.0
    %2767 = vmatpush.msra.mxu0 0.0
    %2768 = vmatpush.msra.mxu0 0.0
    %2769 = vmatpush.msra.mxu0 0.0
    %2770 = vmatpush.msra.mxu0 0.0
    %2771 = vmatpush.msra.mxu0 0.0
    %2772 = vmatpush.msra.mxu0 0.0
    %2773 = vmatpush.msra.mxu0 0.0
    %2774 = vmatpush.msra.mxu0 0.0
    %2775 = vmatpush.msra.mxu0 0.0
    %2776 = vmatpush.msra.mxu0 0.0
    %2777 = vmatpush.msra.mxu0 %v1980
    %2778 = vmatpush.msra.mxu0 %v1979
    %2779 = vmatpush.msra.mxu0 %v1978
    %2780 = vmatpush.msra.mxu0 %v1977
    %2781 = vmatmul.f32.gmra.mxu0 %v2763
    %v2782 = vpop.f32.mrf.mxu0
    %v2783 = vadd.f32 0.0, %v2782
    %2784 = vdwg.mxu0
    %v2786 = vrot.slane %v2783, 2
    %v2788 = vadd.f32 %v2568, %v2786
    %v2789 = vadd.f32 %v2788, %v2019
    %v2790 = vxor.u32 %v2789, 2147483648
    %v2791 = vmul.f32 %v2790, 1.442695
    %v2792 = vpow.pop %v2791
    %v2793 = vadd.f32 %v2792, 1.0
    %v2794 = vrcp.pop %v2793
    %v2795 = vmul.f32 %v2793, %v2794
    %v2796 = vsub.f32 1.0, %v2795
    %v2797 = vmul.f32 %v2794, %v2796
    %v2798 = vadd.f32 %v2794, %v2797
    %vm2799 = vweird.f32 %v2793
    %vm2800 = vweird.f32 %v2794
    %vm2801 = vmor %vm2799, %vm2800
    %v2802 = vsel %vm2801, %v2794, %v2798
    %v2803 = vand.u32 2147483647, %v2793
    %vm2804 = vcmp.eq.f32.partialorder %v2803, 8.507059e+37
    %v2805 = vand.u32 %v2793, 2147483648
    %v2806 = vor.u32 1.1754944e-38, %v2805
    %v2807 = vsel %vm2804, %v2806, %v2802
    %v2808 = vmul.f32 1.0, %v2807
    %v2809 = vtanh.pop %v2789
    %v2810 = vsel %vm2043, %v2809, %v2808
    %v2812 = vrot.slane %v2750, 2
    %2813 = vrot.lane.b32.xlu0 %v2812, 32
    %v2814 = vpop.permute.xlu0 %2813
    %v2816 = vmul.f32 %v2810, %v2814
    %2818 = vrot.lane.b32.xlu0 %v2810, 32
    %v2819 = vpop.permute.xlu0 %2818
    %v2821 = vmul.f32 %v2810, %v2819
    %2823 = vrot.lane.b32.xlu0 %v2821, 32
    %v2824 = vpop.permute.xlu0 %2823
    %v2826 = vadd.f32 %v2816, %v2824
    %v2827 = vtanh.pop %v2826
    %2829 = vrot.lane.b32.xlu0 %v2827, 32
    %v2830 = vpop.permute.xlu0 %2829
    %v2832 = vmul.f32 %v2810, %v2830
    %v2833 = vld [vmem:[%s2063] sm:$0x3]
    %v2834 = vld [vmem:[%s4] sm:$0x3]
    %2836 = vset.pattern.permute.xlu0 0
    %2837 = vperm.xlu0 %2836, %v2833
    %v2838 = vpop.permute.xlu0 %2837
    %v2841 = vrot.slane %v2832, 6
    %2842 = vrot.lane.b32.xlu0 %v2841, 64
    %v2843 = vpop.permute.xlu0 %2842
    %v2845 = vmul.f32 %v2838, %v2843
    %2846 = vst.msk [vmem:[#allocation3 + $0xe] sm:$0x3] %vm2094, %v2845
    %2848 = vset.pattern.permute.xlu0 0
    %2849 = vperm.xlu0 %2848, %v2834
    %v2850 = vpop.permute.xlu0 %2849
    %2852 = vrot.lane.b32.xlu0 %v2841, 48
    %v2853 = vpop.permute.xlu0 %2852
    %v2855 = vmul.f32 %v2850, %v2853
    %2857 = vrot.lane.b32.xlu0 %v2855, 16
    %v2858 = vpop.permute.xlu0 %2857
    %2860 = vst.msk [vmem:[#allocation3] sm:$0x3] %vm2101, %v2858
    %v2861 = vld [vmem:[#allocation3] sm:$0xff]
    %v2862 = vld [vmem:[#allocation3 + $0x8] sm:$0xff]
    %v2863 = vpack.c.bf16 %v2862, %v2861
    %v2864 = vld [vmem:[%s14] sm:$0xf]
    %v2865 = vld [vmem:[%s14 + $0x4] sm:$0xf]
    %v2866 = vld [vmem:[%s14 + $0x8] sm:$0xf]
    %v2867 = vld [vmem:[%s14 + $0xc] sm:$0xf]
    %v2868 = vld [vmem:[%s15] sm:$0x1]
    %v2870 = vperm.slane %v2868, 0
    %v2876 = vunpack.c.l.b16 %v2864
    %v2877 = vunpack.c.l.b16 %v2865
    %v2878 = vunpack.c.l.b16 %v2866
    %v2879 = vunpack.c.l.b16 %v2867
    %v2880 = vpack.c.b16 %v2877, %v2876
    %v2881 = vpack.c.b16 %v2879, %v2878
    %v2885 = vsel %vm133, %v2863, 0
    %2887 = vmatpush.bf16.msra.mxu0 0
    %2888 = vmatpush.bf16.msra.mxu0 0
    %2889 = vmatpush.bf16.msra.mxu0 0
    %2890 = vmatpush.bf16.msra.mxu0 0
    %2891 = vmatpush.bf16.msra.mxu0 0
    %2892 = vmatpush.bf16.msra.mxu0 0
    %2893 = vmatpush.bf16.msra.mxu0 %v2881
    %2894 = vmatpush.bf16.msra.mxu0 %v2880
    %2895 = vmatmul.bf16.gmra.mxu0 %v2885
    %v2896 = vpop.f32.mrf.mxu0
    %v2897 = vadd.f32 %v2870, %v2896
    %v2898 = vpop.f32.mrf.mxu0
    %v2899 = vadd.f32 %v2870, %v2898
    %2900 = vdwg.mxu0
    %2901 = vst [vmem:[%s19] sm:$0xff] %v2897
    %2902 = vst [vmem:[%s19 + $0x8] sm:$0xff] %v2899
    %v2903 = vld [vmem:[%s6] sm:$0xff]
    %v2904 = vld [vmem:[%s6 + $0x8] sm:$0xff]
    %v2905 = vmul.f32 %v2897, %v2903
    %v2906 = vmul.f32 %v2899, %v2904
    %v2907 = vadd.f32 %v2905, %v2906
    %2908 = vadd.xlane.f32.xlu0 %v2907
    %v2909 = vpop.xlane.xlu0 %2908
    %v2910 = vrot.slane %v2909, 4
    %v2911 = vadd.f32 %v2909, %v2910
    %v2912 = vrot.slane %v2911, 2
    %v2913 = vadd.f32 %v2911, %v2912
    %v2914 = vrot.slane %v2913, 1
    %v2915 = vadd.f32 %v2913, %v2914
    %s2916 = vtos %v2915
    %s2917 = sld [smem:[#allocation4]]
    %v2918 = vld [vmem:[%s16] sm:$0xff]
    %v2919 = vld [vmem:[%s16 + $0x8] sm:$0xff]
    %v2920 = vld [vmem:[%s16 + $0x10] sm:$0xff]
    %v2921 = vld [vmem:[%s16 + $0x18] sm:$0xff]
    %v2922 = vld [vmem:[%s16 + $0x20] sm:$0xff]
    %v2923 = vld [vmem:[%s16 + $0x28] sm:$0xff]
    %v2924 = vld [vmem:[%s16 + $0x30] sm:$0xff]
    %v2925 = vld [vmem:[%s16 + $0x38] sm:$0xff]
    %v2926 = vld [vmem:[%s16 + $0x40] sm:$0xff]
    %v2927 = vld [vmem:[%s16 + $0x48] sm:$0xff]
    %v2928 = vld [vmem:[%s16 + $0x50] sm:$0xff]
    %v2929 = vld [vmem:[%s16 + $0x58] sm:$0xff]
    %v2930 = vld [vmem:[%s16 + $0x60] sm:$0xff]
    %v2931 = vld [vmem:[%s16 + $0x68] sm:$0xff]
    %v2932 = vld [vmem:[%s16 + $0x70] sm:$0xff]
    %v2933 = vld [vmem:[%s16 + $0x78] sm:$0xff]
    %vm2934 = vcmp.lt.s32.totalorder %v1983, 9
    %v2935 = vld [vmem:[%s17] sm:$0x1]
    %v2937 = vperm.slane %v2935, 0
    %v2939 = vadd.f32 %v2937, %v2897
    %v2940 = vsel %vm500, %v2939, -inf
    %2941 = vmax.xlane.f32.xlu0 %v2940
    %v2942 = vpop.xlane.xlu0 %2941
    %v2943 = vsub.f32 %v2939, %v2942
    %v2944 = vmul.f32 %v2943, 1.442695
    %v2945 = vpow.pop %v2944
    %v2946 = vstv %s2917
    %v2947 = vadd.f32 %v2942, %v2946
    %2948 = vmatpush.msra.mxu0 %v2933
    %2949 = vmatpush.msra.mxu0 %v2932
    %2950 = vmatpush.msra.mxu0 %v2931
    %2951 = vmatpush.msra.mxu0 %v2930
    %2952 = vmatpush.msra.mxu0 %v2929
    %2953 = vmatpush.msra.mxu0 %v2928
    %2954 = vmatpush.msra.mxu0 %v2927
    %2955 = vmatpush.msra.mxu0 %v2926
    %2956 = vmatpush.msra.mxu0 %v2925
    %2957 = vmatpush.msra.mxu0 %v2924
    %2958 = vmatpush.msra.mxu0 %v2923
    %2959 = vmatpush.msra.mxu0 %v2922
    %2960 = vmatpush.msra.mxu0 %v2921
    %2961 = vmatpush.msra.mxu0 %v2920
    %2962 = vmatpush.msra.mxu0 %v2919
    %2963 = vmatpush.msra.mxu0 %v2918
    %2964 = vmatmul.f32.gmra.mxu0 %v2945
    %v2965 = vpop.f32.mrf.mxu0
    %v2966 = vadd.f32 1e-30, %v2965
    %2967 = vdwg.mxu0
    %v2968 = vlog2.pop %v2966
    %v2969 = vmul.f32 %v2968, 0.6931472
    %v2970 = vadd.f32 %v2947, %v2969
    %v2972 = vrot.slane %v2897, 2
    %v2974 = vadd.f32 %v2970, %v2972
    %v2975 = vsel %vm2934, 1, 0
    %vm2976 = vcmp.eq.s32.totalorder %v2975, 1
    %v2977 = vsel %vm2976, %v2974, -1e+09
    %s2978 = scalar_lea.vmem %s5, 2
    %v2979 = vld [vmem:[%s2978] sm:$0x3]
    %vm2980 = vcmp.gt.f32.partialorder %v2979, 0.5
    %v2981 = vsel %vm2980, 1, 0
    %2982 = vset.pattern.permute.xlu0 0
    %2983 = vperm.xlu0 %2982, %v2981
    %v2984 = vpop.permute.xlu0 %2983
    %vm2985 = vcmp.eq.s32.totalorder %v2984, 1
    %v2986 = vsel %vm2985, %v2977, %v2939
    %v2987 = vsel %vm500, %v2986, -inf
    %2988 = vmax.xlane.f32.xlu0 %v2987
    %v2989 = vpop.xlane.xlu0 %2988
    %v2990 = vsub.f32 %v2986, %v2989
    %v2991 = vmul.f32 %v2990, 1.442695
    %v2992 = vpow.pop %v2991
    %v2993 = vadd.f32 %v2989, %v2946
    %2994 = vmatpush.msra.mxu0 %v2933
    %2995 = vmatpush.msra.mxu0 %v2932
    %2996 = vmatpush.msra.mxu0 %v2931
    %2997 = vmatpush.msra.mxu0 %v2930
    %2998 = vmatpush.msra.mxu0 %v2929
    %2999 = vmatpush.msra.mxu0 %v2928
    %3000 = vmatpush.msra.mxu0 %v2927
    %3001 = vmatpush.msra.mxu0 %v2926
    %3002 = vmatpush.msra.mxu0 %v2925
    %3003 = vmatpush.msra.mxu0 %v2924
    %3004 = vmatpush.msra.mxu0 %v2923
    %3005 = vmatpush.msra.mxu0 %v2922
    %3006 = vmatpush.msra.mxu0 %v2921
    %3007 = vmatpush.msra.mxu0 %v2920
    %3008 = vmatpush.msra.mxu0 %v2919
    %3009 = vmatpush.msra.mxu0 %v2918
    %3010 = vmatmul.f32.gmra.mxu0 %v2992
    %v3011 = vpop.f32.mrf.mxu0
    %v3012 = vadd.f32 1e-30, %v3011
    %3013 = vdwg.mxu0
    %v3014 = vlog2.pop %v3012
    %v3015 = vmul.f32 %v3014, 0.6931472
    %v3016 = vadd.f32 %v2993, %v3015
    %v3017 = vrot.slane %v2897, 4
    %v3019 = vadd.f32 %v3016, %v3017
    %v3020 = vsel %vm2976, %v3019, -1e+09
    %s3021 = scalar_lea.vmem %s5, 4
    %v3022 = vld [vmem:[%s3021] sm:$0x3]
    %vm3023 = vcmp.gt.f32.partialorder %v3022, 0.5
    %v3024 = vsel %vm3023, 1, 0
    %3025 = vset.pattern.permute.xlu0 0
    %3026 = vperm.xlu0 %3025, %v3024
    %v3027 = vpop.permute.xlu0 %3026
    %vm3028 = vcmp.eq.s32.totalorder %v3027, 1
    %v3029 = vsel %vm3028, %v3020, %v2986
    %v3030 = vsel %vm500, %v3029, -inf
    %3031 = vmax.xlane.f32.xlu0 %v3030
    %v3032 = vpop.xlane.xlu0 %3031
    %v3033 = vsub.f32 %v3029, %v3032
    %v3034 = vmul.f32 %v3033, 1.442695
    %v3035 = vpow.pop %v3034
    %v3036 = vadd.f32 %v3032, %v2946
    %3037 = vmatpush.msra.mxu0 %v2933
    %3038 = vmatpush.msra.mxu0 %v2932
    %3039 = vmatpush.msra.mxu0 %v2931
    %3040 = vmatpush.msra.mxu0 %v2930
    %3041 = vmatpush.msra.mxu0 %v2929
    %3042 = vmatpush.msra.mxu0 %v2928
    %3043 = vmatpush.msra.mxu0 %v2927
    %3044 = vmatpush.msra.mxu0 %v2926
    %3045 = vmatpush.msra.mxu0 %v2925
    %3046 = vmatpush.msra.mxu0 %v2924
    %3047 = vmatpush.msra.mxu0 %v2923
    %3048 = vmatpush.msra.mxu0 %v2922
    %3049 = vmatpush.msra.mxu0 %v2921
    %3050 = vmatpush.msra.mxu0 %v2920
    %3051 = vmatpush.msra.mxu0 %v2919
    %3052 = vmatpush.msra.mxu0 %v2918
    %3053 = vmatmul.f32.gmra.mxu0 %v3035
    %v3054 = vpop.f32.mrf.mxu0
    %v3055 = vadd.f32 1e-30, %v3054
    %3056 = vdwg.mxu0
    %v3057 = vlog2.pop %v3055
    %v3058 = vmul.f32 %v3057, 0.6931472
    %v3059 = vadd.f32 %v3036, %v3058
    %v3060 = vrot.slane %v2897, 6
    %v3062 = vadd.f32 %v3059, %v3060
    %v3063 = vsel %vm2976, %v3062, -1e+09
    %s3064 = scalar_lea.vmem %s5, 6
    %v3065 = vld [vmem:[%s3064] sm:$0x3]
    %vm3066 = vcmp.gt.f32.partialorder %v3065, 0.5
    %v3067 = vsel %vm3066, 1, 0
    %3068 = vset.pattern.permute.xlu0 0
    %3069 = vperm.xlu0 %3068, %v3067
    %v3070 = vpop.permute.xlu0 %3069
    %vm3071 = vcmp.eq.s32.totalorder %v3070, 1
    %v3072 = vsel %vm3071, %v3063, %v3029
    %v3073 = vsel %vm500, %v3072, -inf
    %3074 = vmax.xlane.f32.xlu0 %v3073
    %v3075 = vpop.xlane.xlu0 %3074
    %v3076 = vsub.f32 %v3072, %v3075
    %v3077 = vmul.f32 %v3076, 1.442695
    %v3078 = vpow.pop %v3077
    %v3079 = vadd.f32 %v3075, %v2946
    %3080 = vmatpush.msra.mxu0 %v2933
    %3081 = vmatpush.msra.mxu0 %v2932
    %3082 = vmatpush.msra.mxu0 %v2931
    %3083 = vmatpush.msra.mxu0 %v2930
    %3084 = vmatpush.msra.mxu0 %v2929
    %3085 = vmatpush.msra.mxu0 %v2928
    %3086 = vmatpush.msra.mxu0 %v2927
    %3087 = vmatpush.msra.mxu0 %v2926
    %3088 = vmatpush.msra.mxu0 %v2925
    %3089 = vmatpush.msra.mxu0 %v2924
    %3090 = vmatpush.msra.mxu0 %v2923
    %3091 = vmatpush.msra.mxu0 %v2922
    %3092 = vmatpush.msra.mxu0 %v2921
    %3093 = vmatpush.msra.mxu0 %v2920
    %3094 = vmatpush.msra.mxu0 %v2919
    %3095 = vmatpush.msra.mxu0 %v2918
    %3096 = vmatmul.f32.gmra.mxu0 %v3078
    %v3097 = vpop.f32.mrf.mxu0
    %v3098 = vadd.f32 1e-30, %v3097
    %3099 = vdwg.mxu0
    %v3100 = vlog2.pop %v3098
    %v3101 = vmul.f32 %v3100, 0.6931472
    %v3102 = vadd.f32 %v3079, %v3101
    %v3103 = vadd.f32 %v3102, %v2899
    %v3104 = vsel %vm2976, %v3103, -1e+09
    %s3105 = scalar_lea.vmem %s5, 8
    %v3106 = vld [vmem:[%s3105] sm:$0x3]
    %vm3107 = vcmp.gt.f32.partialorder %v3106, 0.5
    %v3108 = vsel %vm3107, 1, 0
    %3109 = vset.pattern.permute.xlu0 0
    %3110 = vperm.xlu0 %3109, %v3108
    %v3111 = vpop.permute.xlu0 %3110
    %vm3112 = vcmp.eq.s32.totalorder %v3111, 1
    %v3113 = vsel %vm3112, %v3104, %v3072
    %v3114 = vsel %vm500, %v3113, -inf
    %3115 = vmax.xlane.f32.xlu0 %v3114
    %v3116 = vpop.xlane.xlu0 %3115
    %v3117 = vsub.f32 %v3113, %v3116
    %v3118 = vmul.f32 %v3117, 1.442695
    %v3119 = vpow.pop %v3118
    %v3120 = vadd.f32 %v3116, %v2946
    %3121 = vmatpush.msra.mxu0 %v2933
    %3122 = vmatpush.msra.mxu0 %v2932
    %3123 = vmatpush.msra.mxu0 %v2931
    %3124 = vmatpush.msra.mxu0 %v2930
    %3125 = vmatpush.msra.mxu0 %v2929
    %3126 = vmatpush.msra.mxu0 %v2928
    %3127 = vmatpush.msra.mxu0 %v2927
    %3128 = vmatpush.msra.mxu0 %v2926
    %3129 = vmatpush.msra.mxu0 %v2925
    %3130 = vmatpush.msra.mxu0 %v2924
    %3131 = vmatpush.msra.mxu0 %v2923
    %3132 = vmatpush.msra.mxu0 %v2922
    %3133 = vmatpush.msra.mxu0 %v2921
    %3134 = vmatpush.msra.mxu0 %v2920
    %3135 = vmatpush.msra.mxu0 %v2919
    %3136 = vmatpush.msra.mxu0 %v2918
    %3137 = vmatmul.f32.gmra.mxu0 %v3119
    %v3138 = vpop.f32.mrf.mxu0
    %v3139 = vadd.f32 1e-30, %v3138
    %3140 = vdwg.mxu0
    %v3141 = vlog2.pop %v3139
    %v3142 = vmul.f32 %v3141, 0.6931472
    %v3143 = vadd.f32 %v3120, %v3142
    %v3145 = vrot.slane %v2899, 2
    %v3147 = vadd.f32 %v3143, %v3145
    %v3148 = vsel %vm2976, %v3147, -1e+09
    %s3149 = scalar_lea.vmem %s5, 10
    %v3150 = vld [vmem:[%s3149] sm:$0x3]
    %vm3151 = vcmp.gt.f32.partialorder %v3150, 0.5
    %v3152 = vsel %vm3151, 1, 0
    %3153 = vset.pattern.permute.xlu0 0
    %3154 = vperm.xlu0 %3153, %v3152
    %v3155 = vpop.permute.xlu0 %3154
    %vm3156 = vcmp.eq.s32.totalorder %v3155, 1
    %v3157 = vsel %vm3156, %v3148, %v3113
    %v3158 = vsel %vm500, %v3157, -inf
    %3159 = vmax.xlane.f32.xlu0 %v3158
    %v3160 = vpop.xlane.xlu0 %3159
    %v3161 = vsub.f32 %v3157, %v3160
    %v3162 = vmul.f32 %v3161, 1.442695
    %v3163 = vpow.pop %v3162
    %v3164 = vadd.f32 %v3160, %v2946
    %3165 = vmatpush.msra.mxu0 %v2933
    %3166 = vmatpush.msra.mxu0 %v2932
    %3167 = vmatpush.msra.mxu0 %v2931
    %3168 = vmatpush.msra.mxu0 %v2930
    %3169 = vmatpush.msra.mxu0 %v2929
    %3170 = vmatpush.msra.mxu0 %v2928
    %3171 = vmatpush.msra.mxu0 %v2927
    %3172 = vmatpush.msra.mxu0 %v2926
    %3173 = vmatpush.msra.mxu0 %v2925
    %3174 = vmatpush.msra.mxu0 %v2924
    %3175 = vmatpush.msra.mxu0 %v2923
    %3176 = vmatpush.msra.mxu0 %v2922
    %3177 = vmatpush.msra.mxu0 %v2921
    %3178 = vmatpush.msra.mxu0 %v2920
    %3179 = vmatpush.msra.mxu0 %v2919
    %3180 = vmatpush.msra.mxu0 %v2918
    %3181 = vmatmul.f32.gmra.mxu0 %v3163
    %v3182 = vpop.f32.mrf.mxu0
    %v3183 = vadd.f32 1e-30, %v3182
    %3184 = vdwg.mxu0
    %v3185 = vlog2.pop %v3183
    %v3186 = vmul.f32 %v3185, 0.6931472
    %v3187 = vadd.f32 %v3164, %v3186
    %v3188 = vrot.slane %v2899, 4
    %v3190 = vadd.f32 %v3187, %v3188
    %v3191 = vsel %vm2976, %v3190, -1e+09
    %s3192 = scalar_lea.vmem %s5, 12
    %v3193 = vld [vmem:[%s3192] sm:$0x3]
    %vm3194 = vcmp.gt.f32.partialorder %v3193, 0.5
    %v3195 = vsel %vm3194, 1, 0
    %3196 = vset.pattern.permute.xlu0 0
    %3197 = vperm.xlu0 %3196, %v3195
    %v3198 = vpop.permute.xlu0 %3197
    %vm3199 = vcmp.eq.s32.totalorder %v3198, 1
    %v3200 = vsel %vm3199, %v3191, %v3157
    %v3201 = vsel %vm500, %v3200, -inf
    %3202 = vmax.xlane.f32.xlu0 %v3201
    %v3203 = vpop.xlane.xlu0 %3202
    %v3204 = vsub.f32 %v3200, %v3203
    %v3205 = vmul.f32 %v3204, 1.442695
    %v3206 = vpow.pop %v3205
    %v3207 = vadd.f32 %v3203, %v2946
    %3208 = vmatpush.msra.mxu0 %v2933
    %3209 = vmatpush.msra.mxu0 %v2932
    %3210 = vmatpush.msra.mxu0 %v2931
    %3211 = vmatpush.msra.mxu0 %v2930
    %3212 = vmatpush.msra.mxu0 %v2929
    %3213 = vmatpush.msra.mxu0 %v2928
    %3214 = vmatpush.msra.mxu0 %v2927
    %3215 = vmatpush.msra.mxu0 %v2926
    %3216 = vmatpush.msra.mxu0 %v2925
    %3217 = vmatpush.msra.mxu0 %v2924
    %3218 = vmatpush.msra.mxu0 %v2923
    %3219 = vmatpush.msra.mxu0 %v2922
    %3220 = vmatpush.msra.mxu0 %v2921
    %3221 = vmatpush.msra.mxu0 %v2920
    %3222 = vmatpush.msra.mxu0 %v2919
    %3223 = vmatpush.msra.mxu0 %v2918
    %3224 = vmatmul.f32.gmra.mxu0 %v3206
    %v3225 = vpop.f32.mrf.mxu0
    %v3226 = vadd.f32 1e-30, %v3225
    %3227 = vdwg.mxu0
    %v3228 = vlog2.pop %v3226
    %v3229 = vmul.f32 %v3228, 0.6931472
    %v3230 = vadd.f32 %v3207, %v3229
    %v3231 = vrot.slane %v2899, 6
    %v3233 = vadd.f32 %v3230, %v3231
    %v3234 = vsel %vm2976, %v3233, -1e+09
    %s3235 = scalar_lea.vmem %s5, 14
    %v3236 = vld [vmem:[%s3235] sm:$0x3]
    %vm3237 = vcmp.gt.f32.partialorder %v3236, 0.5
    %v3238 = vsel %vm3237, 1, 0
    %3239 = vset.pattern.permute.xlu0 0
    %3240 = vperm.xlu0 %3239, %v3238
    %v3241 = vpop.permute.xlu0 %3240
    %vm3242 = vcmp.eq.s32.totalorder %v3241, 1
    %v3243 = vsel %vm3242, %v3234, %v3200
    %v3244 = vld [vmem:[%s18] sm:$0x1]
    %v3246 = vperm.slane %v3244, 0
    %v3248 = vadd.f32 %v3243, %v3246
    %v3249 = vsel %vm500, %v3248, -inf
    %3250 = vmax.xlane.f32.xlu0 %v3249
    %v3251 = vpop.xlane.xlu0 %3250
    %v3252 = vsub.f32 %v3248, %v3251
    %v3253 = vmul.f32 %v3252, 1.442695
    %v3254 = vpow.pop %v3253
    %v3255 = vsel %vm500, %v3254, 0.0
    %3256 = vadd.xlane.f32.xlu0 %v3255
    %v3257 = vpop.xlane.xlu0 %3256
    %v3258 = vlog2.pop %v3257
    %v3259 = vmul.f32 %v3258, 0.6931472
    %v3260 = vadd.f32 %v3251, %v3259
    %v3261 = vsel %vm500, %v3260, 0.0
    %v3262 = vrot.slane %v3261, 4
    %v3263 = vadd.f32 %v3261, %v3262
    %v3264 = vrot.slane %v3263, 2
    %v3265 = vadd.f32 %v3263, %v3264
    %v3266 = vrot.slane %v3265, 1
    %v3267 = vadd.f32 %v3265, %v3266
    %v3268 = vstv %s2916
    %v3269 = vsub.f32 %v3267, %v3268
    %vm3270 = vcmask 0
    %3271 = vst.msk [vmem:[#allocation5] sm:$0x1] %vm3270, %v3269
    // Predicated region
    $region78: #{forward.1} parent=1 // pred_check
      _
    $region79: #{forward.1} parent=1 // pred_check_branch
      %3273 = sbr.rel (0) target = $region81
    $region80: #{forward.1} parent=1 // pred_region
      _
    $region81: #{forward.1} parent=1 // pred_fallthru
      _
    // Predicated region
    $region82: #{forward.1} parent=1 // pred_check
      _
    $region83: #{forward.1} parent=1 // pred_check_branch
      %3275 = sbr.rel (0) target = $region85
    $region84: #{forward.1} parent=1 // pred_region
      %3277 = vsyncadd [#allocation6], 0
      %s3279 = sshll.u32 [#allocation5], 4
      %s3280 = int_to_ptr.vmem [resolvable:$true] %s3279
      %s3281 = sshll.u32 %s20, 4
      %s3282 = int_to_ptr.hbm [resolvable:$true] %s3281
      %3284 = dma.vmem_to_hbm [thread:$0]  %s3280, 16, %s3282, [#allocation6]
    $region85: #{forward.1} parent=1 // pred_fallthru
      _
    // Predicated region
    $region86: #{forward.1} parent=1 // pred_check
      _
    $region87: #{forward.1} parent=1 // pred_check_branch
      %3286 = sbr.rel (0) target = $region89
    $region88: #{forward.1} parent=1 // pred_region
      _
    $region89: #{forward.1} parent=1 // pred_fallthru
      _
    // Predicated region
    $region90: #{forward.1} parent=1 // pred_check
      _
    $region91: #{forward.1} parent=1 // pred_check_branch
      %3288 = sbr.rel (0) target = $region93
    $region92: #{forward.1} parent=1 // pred_region
      %3290 = dma.done [#allocation6], 16
    $region93: #{forward.1} parent=1 // pred_fallthru
      _
    %3291 = vsyncpa [#allocation6], 1

</llo_original>
